<compile_context>
chip_gen: v5e
topology: v5e:2x2
jax: 0.10.0
libtpu: 0.0.40
codegen_flags: <defaults>
</compile_context>

<pallas_src>
import functools
import math

import jax
import jax.numpy as jnp
from jax.experimental import pallas as pl
from jax.experimental.pallas import tpu as pltpu

# F.rms_norm(x, ..., eps=None) uses torch.finfo(float32).eps
_RMS_EPS = 1.1920928955078125e-07


def _rms_norm_f32(x, eps):
    # x: (T, D) f32 -> normalize over last dim (matches F.rms_norm, no weight)
    ms = jnp.mean(x * x, axis=-1, keepdims=True)
    return x * jax.lax.rsqrt(ms + eps)


def block_kernel(x_ref, wqkv_ref, wo_ref, wfc_ref, wproj_ref, o_ref,
                 q_s, k_s, v_s, ov_s, *,
                 ln_scale, n_head, eps, q_tile, h_chunk):
    """Grid = (batch, query_tile). One query tile of the fused Block.forward."""
    qi = pl.program_id(1)
    T, D = x_ref.shape[1], x_ref.shape[2]
    hd = D // n_head
    H4 = wfc_ref.shape[1]
    k_tile = q_tile

    # ---- per-batch prelude (qi == 0): RMSNorm + fused QKV into VMEM scratch.
    # Three column-slab matmuls -> bf16 directly; no (T, 3D) f32 intermediate.
    @pl.when(qi == 0)
    def _():
        x_all = x_ref[0].astype(jnp.float32)                    # (T, D)
        xn = (ln_scale * _rms_norm_f32(x_all, eps)).astype(jnp.bfloat16)
        scale = 1.0 / math.sqrt(hd)
        q_s[...] = (jnp.dot(xn, wqkv_ref[:, :D],
                            preferred_element_type=jnp.float32) * scale
                    ).astype(jnp.bfloat16)
        k_s[...] = jnp.dot(xn, wqkv_ref[:, D:2 * D],
                           preferred_element_type=jnp.float32).astype(jnp.bfloat16)
        v_s[...] = jnp.dot(xn, wqkv_ref[:, 2 * D:],
                           preferred_element_type=jnp.float32).astype(jnp.bfloat16)

    q0 = pl.multiple_of(qi * q_tile, q_tile)
    x_t = x_ref[0, pl.ds(q0, q_tile), :].astype(jnp.float32)     # (tq, D) f32
    q_t = q_s[pl.ds(q0, q_tile), :]                              # (tq, D) bf16

    n_kv = qi + 1                                  # causal: kv tiles j <= qi
    row = q0 + jax.lax.broadcasted_iota(jnp.int32, (q_tile, k_tile), 0)
    col = jax.lax.broadcasted_iota(jnp.int32, (q_tile, k_tile), 1)

    # ---- per-head flash-style attention over the causal kv-tile prefix ----
    # NOTE: if hd is not a multiple of 128 the lane slices relayout (perf only).
    for h in range(n_head):
        h0 = h * hd
        q_h = q_t[:, h0:h0 + hd]                                 # (tq, hd) bf16

        def kv_step(j, carry, h0=h0, q_h=q_h):
            m_i, l_i, acc = carry
            k0 = pl.multiple_of(j * k_tile, k_tile)
            k_h = k_s[pl.ds(k0, k_tile), h0:h0 + hd]             # (tk, hd)
            v_h = v_s[pl.ds(k0, k_tile), h0:h0 + hd]             # (tk, hd)
            s = jnp.einsum('qd,kd->qk', q_h, k_h,
                           preferred_element_type=jnp.float32)   # (tq, tk)
            s = jnp.where(row >= k0 + col, s, -1e30)             # diag mask only bites at j==qi
            m_new = jnp.maximum(m_i, jnp.max(s, axis=-1, keepdims=True))
            alpha = jnp.exp(m_i - m_new)
            p = jnp.exp(s - m_new)
            l_new = alpha * l_i + jnp.sum(p, axis=-1, keepdims=True)
            acc_new = alpha * acc + jnp.dot(p.astype(jnp.bfloat16), v_h,
                                            preferred_element_type=jnp.float32)
            return m_new, l_new, acc_new

        m_f, l_f, acc_f = jax.lax.fori_loop(
            0, n_kv, kv_step,
            (jnp.full((q_tile, 1), -1e30, jnp.float32),
             jnp.zeros((q_tile, 1), jnp.float32),
             jnp.zeros((q_tile, hd), jnp.float32)))

        ov_s[:, h0:h0 + hd] = (acc_f * pl.reciprocal(l_f, approx=True)
                               ).astype(jnp.bfloat16)

    # Single K=D output projection over the concatenated head outputs.
    proj = jnp.dot(ov_s[...], wo_ref[...], preferred_element_type=jnp.float32)
    x1 = x_t + proj                                              # residual, f32

    # ---- pre-MLP RMSNorm + hidden-dim-tiled ReLU^2 MLP ----
    xn2 = (ln_scale * _rms_norm_f32(x1, eps)).astype(jnp.bfloat16)
    m_acc = jnp.zeros((q_tile, D), jnp.float32)
    for c0 in range(0, H4, h_chunk):
        c1 = min(c0 + h_chunk, H4)
        hid = jnp.dot(xn2, wfc_ref[:, c0:c1],
                      preferred_element_type=jnp.float32)        # (tq, hc)
        hid = jnp.maximum(hid, 0.0)
        hid = (hid * hid).astype(jnp.bfloat16)                   # ReLU^2
        m_acc = m_acc + jnp.dot(hid, wproj_ref[c0:c1, :],
                                preferred_element_type=jnp.float32)

    o_ref[0] = (x1 + m_acc).astype(o_ref.dtype)


def _vmem_limit_bytes(T, D, H4, q_tile):
    """Size the scoped VMEM limit to the real residency (with headroom)."""
    w = 2 * (3 * D * D + D * D + D * H4 + H4 * D)     # bf16 weights, 1 copy
    w *= 2                                            # allow 2 copies (fallback path)
    xin = 2 * T * D * 4                               # full-T f32 x block, 2 bufs
    out = 2 * q_tile * D * 4                          # output tile, 2 bufs
    scratch = 3 * T * D * 2 + q_tile * D * 2          # q/k/v + head-output scratch
    work = 10 * q_tile * D * 4 + 4 * q_tile * q_tile * 4
    total = w + xin + out + scratch + work + (8 << 20)
    return int(min(max(total, 32 << 20), 128 << 20))


def block_forward(x, w_qkv, w_o, w_fc, w_proj, *, n_head, ln_scale, q_tile=None):
    """Full Block.forward (no cache, no external KV). x: (B, T, D) float32."""
    B, T, D = x.shape
    assert D % n_head == 0
    H4 = w_fc.shape[1]

    if q_tile is None:
        # TODO(synk): chip-specific: q_tile=128 on v5e, 256 on v6e/v7x.
        if T >= 512 and T % 256 == 0:
            q_tile = 256
        elif T >= 256 and T % 128 == 0:
            q_tile = 128
        else:
            q_tile = T
    assert T % q_tile == 0
    n_qt = T // q_tile
    h_chunk = H4 if H4 <= 512 else 512

    # bf16 weights: halves weight VMEM/DMA and feeds the bf16-native MXU.
    w_qkv = w_qkv.astype(jnp.bfloat16)
    w_o = w_o.astype(jnp.bfloat16)
    w_fc = w_fc.astype(jnp.bfloat16)
    w_proj = w_proj.astype(jnp.bfloat16)

    kernel = functools.partial(
        block_kernel, ln_scale=float(ln_scale), n_head=n_head, eps=_RMS_EPS,
        q_tile=q_tile, h_chunk=h_chunk)

    def build(single_buffer_weights):
        def wspec(shape):
            kwargs = {}
            if single_buffer_weights:
                # Constant index_map -> double-buffering is pure VMEM waste.
                kwargs = dict(pipeline_mode=pl.Buffered(1))
            return pl.BlockSpec(shape, lambda b, qi: (0, 0), **kwargs)

        return pl.pallas_call(
            kernel,
            out_shape=jax.ShapeDtypeStruct((B, T, D), jnp.float32),
            grid_spec=pltpu.PrefetchScalarGridSpec(
                num_scalar_prefetch=0,
                grid=(B, n_qt),
                in_specs=[
                    pl.BlockSpec((1, T, D), lambda b, qi: (b, 0, 0)),
                    wspec((D, 3 * D)),
                    wspec((D, D)),
                    wspec((D, H4)),
                    wspec((H4, D)),
                ],
                out_specs=pl.BlockSpec((1, q_tile, D), lambda b, qi: (b, qi, 0)),
                scratch_shapes=[
                    pltpu.VMEM((T, D), jnp.bfloat16),       # q (1/sqrt(hd) folded)
                    pltpu.VMEM((T, D), jnp.bfloat16),       # k
                    pltpu.VMEM((T, D), jnp.bfloat16),       # v
                    pltpu.VMEM((q_tile, D), jnp.bfloat16),  # concatenated head outs
                ]),
            compiler_params=pltpu.CompilerParams(
                dimension_semantics=("parallel", "arbitrary"),
                vmem_limit_bytes=_vmem_limit_bytes(T, D, H4, q_tile)),
        )

    try:
        return build(True)(x, w_qkv, w_o, w_fc, w_proj)
    except Exception:
        # pl.Buffered(1) not accepted by this jax build -> default pipelining.
        return build(False)(x, w_qkv, w_o, w_fc, w_proj)


def block_reference(x, w_qkv, w_o, w_fc, w_proj, *, n_head, ln_scale):
    """Pure-JAX f32 reference of the same forward pass (for sanity check)."""
    B, T, D = x.shape
    hd = D // n_head

    def rms(v):
        return v * jax.lax.rsqrt(jnp.mean(v * v, -1, keepdims=True) + _RMS_EPS)

    xn = ln_scale * rms(x)
    qkv = xn @ w_qkv
    q, k, v = jnp.split(qkv, 3, axis=-1)
    q = q.reshape(B, T, n_head, hd).transpose(0, 2, 1, 3)
    k = k.reshape(B, T, n_head, hd).transpose(0, 2, 1, 3)
    v = v.reshape(B, T, n_head, hd).transpose(0, 2, 1, 3)
    s = jnp.einsum('bhqd,bhkd->bhqk', q, k) / math.sqrt(hd)
    mask = jnp.tril(jnp.ones((T, T), dtype=bool))
    s = jnp.where(mask, s, -jnp.inf)
    p = jax.nn.softmax(s, axis=-1)
    o = jnp.einsum('bhqk,bhkd->bhqd', p, v).transpose(0, 2, 1, 3).reshape(B, T, D)
    x1 = x + o @ w_o
    xn2 = ln_scale * rms(x1)
    h = xn2 @ w_fc
    h = jnp.maximum(h, 0.0) ** 2
    return x1 + h @ w_proj


if __name__ == "__main__":
    # Small shapes consistent with the module's forward; q_tile=8 so the
    # query-tile grid axis, the qi==0 prelude and the dynamic kv-tile loop
    # are all exercised.
    B, T, D = 2, 16, 32
    n_head = 4
    layer_depth = 2
    layer_norm_scaling = True
    ln_scale = 1.0 / math.sqrt(layer_depth) if layer_norm_scaling else 1.0

    key = jax.random.PRNGKey(0)
    kx, kqkv, ko, kfc, kproj = jax.random.split(key, 5)

    x = jax.random.normal(kx, (B, T, D), dtype=jnp.float32)
    # Deterministic parameter init (nn.Linear-like, bias=False), std=0.02
    w_qkv = 0.02 * jax.random.normal(kqkv, (D, 3 * D), dtype=jnp.float32)
    w_o = 0.02 * jax.random.normal(ko, (D, D), dtype=jnp.float32)
    w_fc = 0.02 * jax.random.normal(kfc, (D, 4 * D), dtype=jnp.float32)
    w_proj = 0.02 * jax.random.normal(kproj, (4 * D, D), dtype=jnp.float32)

    out = block_forward(x, w_qkv, w_o, w_fc, w_proj,
                        n_head=n_head, ln_scale=ln_scale, q_tile=8)
    jax.block_until_ready(out)

    assert out.shape == (B, T, D)
    assert bool(jnp.all(jnp.isfinite(out)))

    ref = block_reference(x, w_qkv, w_o, w_fc, w_proj,
                          n_head=n_head, ln_scale=ln_scale)
    # bf16 matmul operands + approx reciprocal -> loose but meaningful check.
    assert bool(jnp.allclose(out, ref, atol=2e-2, rtol=2e-2))

    print("KERNEL_OK")
</pallas_src>

<mosaic_0001>
module attributes {stable_mosaic.version = 11 : i64} {
  func.func @block_kernel(%arg0: i32, %arg1: i32, %arg2: memref<1x16x32xf32, #tpu.memory_space<vmem>>, %arg3: memref<32x96xbf16, #tpu.memory_space<vmem>>, %arg4: memref<32x32xbf16, #tpu.memory_space<vmem>>, %arg5: memref<32x128xbf16, #tpu.memory_space<vmem>>, %arg6: memref<128x32xbf16, #tpu.memory_space<vmem>>, %arg7: memref<1x8x32xf32, #tpu.memory_space<vmem>>, %arg8: memref<16x32xbf16, #tpu.memory_space<vmem>>, %arg9: memref<16x32xbf16, #tpu.memory_space<vmem>>, %arg10: memref<16x32xbf16, #tpu.memory_space<vmem>>, %arg11: memref<8x32xbf16, #tpu.memory_space<vmem>>) attributes {dimension_semantics = [#tpu.dimension_semantics<parallel>, #tpu.dimension_semantics<arbitrary>], iteration_bounds = array<i64: 2, 2>, scalar_prefetch = 0 : i64, scratch_operands = 4 : i64, tpu.core_type = #tpu.core_type<tc>, window_params = [{transform_indices = @transform_0, window_bounds = array<i64: 1, 16, 32>}, {pipeline_mode = #tpu.pipeline_mode<synchronous>, transform_indices = @transform_1, window_bounds = array<i64: 32, 96>}, {pipeline_mode = #tpu.pipeline_mode<synchronous>, transform_indices = @transform_2, window_bounds = array<i64: 32, 32>}, {pipeline_mode = #tpu.pipeline_mode<synchronous>, transform_indices = @transform_3, window_bounds = array<i64: 32, 128>}, {pipeline_mode = #tpu.pipeline_mode<synchronous>, transform_indices = @transform_4, window_bounds = array<i64: 128, 32>}, {transform_indices = @transform_5, window_bounds = array<i64: 1, 8, 32>}]} {
    %c0_i32 = arith.constant 0 : i32
    %0 = arith.cmpi eq, %arg1, %c0_i32 : i32
    %1 = arith.extui %0 : i1 to i32
    %c0_i32_0 = arith.constant 0 : i32
    %2 = arith.cmpi ne, %1, %c0_i32_0 : i32
    scf.if %2 {
      %c0_47 = arith.constant 0 : index
      %c0_48 = arith.constant 0 : index
      %c0_49 = arith.constant 0 : index
      %94 = vector.load %arg2[%c0_47, %c0_48, %c0_49] : memref<1x16x32xf32, #tpu.memory_space<vmem>>, vector<1x16x32xf32>
      %95 = vector.shape_cast %94 : vector<1x16x32xf32> to vector<16x32xf32>
      %96 = arith.mulf %95, %95 : vector<16x32xf32>
      %cst_50 = arith.constant dense<0.000000e+00> : vector<16xf32>
      %97 = vector.multi_reduction <add>, %96, %cst_50 [1] : vector<16x32xf32> to vector<16xf32>
      %98 = vector.shape_cast %97 : vector<16xf32> to vector<16x1xf32>
      %cst_51 = arith.constant 3.200000e+01 : f32
      %99 = vector.broadcast %cst_51 : f32 to vector<16x1xf32>
      %100 = arith.divf %98, %99 : vector<16x1xf32>
      %cst_52 = arith.constant 1.1920929E-7 : f32
      %101 = vector.broadcast %cst_52 : f32 to vector<16x1xf32>
      %102 = arith.addf %100, %101 : vector<16x1xf32>
      %103 = math.rsqrt %102 : vector<16x1xf32>
      %104 = vector.broadcast %103 : vector<16x1xf32> to vector<16x32xf32>
      %105 = arith.mulf %95, %104 : vector<16x32xf32>
      %cst_53 = arith.constant 0.707106769 : f32
      %106 = vector.broadcast %cst_53 : f32 to vector<16x32xf32>
      %107 = arith.mulf %106, %105 : vector<16x32xf32>
      %108 = arith.truncf %107 : vector<16x32xf32> to vector<16x32xbf16>
      %c0_54 = arith.constant 0 : index
      %c0_55 = arith.constant 0 : index
      %109 = vector.load %arg3[%c0_54, %c0_55] : memref<32x96xbf16, #tpu.memory_space<vmem>>, vector<32x32xbf16>
      %cst_56 = arith.constant dense<0.000000e+00> : vector<16x32xf32>
      %110 = tpu.matmul %108, %109, %cst_56 {dimension_numbers = #tpu.dot_dimension_numbers<[1], [0], [0], [1], [0, 0, 1, 1], [], []>} : vector<16x32xbf16>, vector<32x32xbf16>, vector<16x32xf32> -> vector<16x32xf32>
      %cst_57 = arith.constant 0.353553385 : f32
      %111 = vector.broadcast %cst_57 : f32 to vector<16x32xf32>
      %112 = arith.mulf %110, %111 : vector<16x32xf32>
      %113 = arith.truncf %112 : vector<16x32xf32> to vector<16x32xbf16>
      %c0_58 = arith.constant 0 : index
      %c0_59 = arith.constant 0 : index
      %114 = vector.load %arg8[%c0_58, %c0_59] : memref<16x32xbf16, #tpu.memory_space<vmem>>, vector<16x32xbf16>
      tpu.vector_store %arg8[%c0_58, %c0_59], %113 {strides = array<i32>} : memref<16x32xbf16, #tpu.memory_space<vmem>>, vector<16x32xbf16>,
      %c0_60 = arith.constant 0 : index
      %c32 = arith.constant 32 : index
      %115 = vector.load %arg3[%c0_60, %c32] : memref<32x96xbf16, #tpu.memory_space<vmem>>, vector<32x32xbf16>
      %cst_61 = arith.constant dense<0.000000e+00> : vector<16x32xf32>
      %116 = tpu.matmul %108, %115, %cst_61 {dimension_numbers = #tpu.dot_dimension_numbers<[1], [0], [0], [1], [0, 0, 1, 1], [], []>} : vector<16x32xbf16>, vector<32x32xbf16>, vector<16x32xf32> -> vector<16x32xf32>
      %117 = arith.truncf %116 : vector<16x32xf32> to vector<16x32xbf16>
      %c0_62 = arith.constant 0 : index
      %c0_63 = arith.constant 0 : index
      %118 = vector.load %arg9[%c0_62, %c0_63] : memref<16x32xbf16, #tpu.memory_space<vmem>>, vector<16x32xbf16>
      tpu.vector_store %arg9[%c0_62, %c0_63], %117 {strides = array<i32>} : memref<16x32xbf16, #tpu.memory_space<vmem>>, vector<16x32xbf16>,
      %c0_64 = arith.constant 0 : index
      %c64 = arith.constant 64 : index
      %119 = vector.load %arg3[%c0_64, %c64] : memref<32x96xbf16, #tpu.memory_space<vmem>>, vector<32x32xbf16>
      %cst_65 = arith.constant dense<0.000000e+00> : vector<16x32xf32>
      %120 = tpu.matmul %108, %119, %cst_65 {dimension_numbers = #tpu.dot_dimension_numbers<[1], [0], [0], [1], [0, 0, 1, 1], [], []>} : vector<16x32xbf16>, vector<32x32xbf16>, vector<16x32xf32> -> vector<16x32xf32>
      %121 = arith.truncf %120 : vector<16x32xf32> to vector<16x32xbf16>
      %c0_66 = arith.constant 0 : index
      %c0_67 = arith.constant 0 : index
      %122 = vector.load %arg10[%c0_66, %c0_67] : memref<16x32xbf16, #tpu.memory_space<vmem>>, vector<16x32xbf16>
      tpu.vector_store %arg10[%c0_66, %c0_67], %121 {strides = array<i32>} : memref<16x32xbf16, #tpu.memory_space<vmem>>, vector<16x32xbf16>,
    } else {
    }
    %c8_i32 = arith.constant 8 : i32
    %3 = arith.muli %arg1, %c8_i32 : i32
    %4 = tpu.assume_multiple %3, 8 : i32
    %c0 = arith.constant 0 : index
    %5 = arith.index_cast %4 : i32 to index
    %c0_1 = arith.constant 0 : index
    %6 = vector.load %arg2[%c0, %5, %c0_1] : memref<1x16x32xf32, #tpu.memory_space<vmem>>, vector<1x8x32xf32>
    %7 = vector.shape_cast %6 : vector<1x8x32xf32> to vector<8x32xf32>
    %8 = arith.index_cast %4 : i32 to index
    %c0_2 = arith.constant 0 : index
    %9 = vector.load %arg8[%8, %c0_2] : memref<16x32xbf16, #tpu.memory_space<vmem>>, vector<8x32xbf16>
    %c1_i32 = arith.constant 1 : i32
    %10 = arith.addi %arg1, %c1_i32 : i32
    %11 = tpu.iota {dimensions = array<i32: 0>} : vector<8x8xi32>
    %12 = vector.broadcast %4 : i32 to vector<8x8xi32>
    %13 = arith.addi %12, %11 : vector<8x8xi32>
    %14 = tpu.iota {dimensions = array<i32: 1>} : vector<8x8xi32>
    %15 = vector.extract_strided_slice %9 {offsets = [0, 0], sizes = [8, 8], strides = [1, 1]} : vector<8x32xbf16> to vector<8x8xbf16>
    %cst = arith.constant -1.000000e+30 : f32
    %16 = vector.broadcast %cst : f32 to vector<8x1xf32>
    %cst_3 = arith.constant 0.000000e+00 : f32
    %17 = vector.broadcast %cst_3 : f32 to vector<8x1xf32>
    %cst_4 = arith.constant 0.000000e+00 : f32
    %18 = vector.broadcast %cst_4 : f32 to vector<8x8xf32>
    %c0_i32_5 = arith.constant 0 : i32
    %19 = arith.subi %10, %c0_i32_5 : i32
    %20 = arith.addi %c0_i32_5, %19 : i32
    %c1_i32_6 = arith.constant 1 : i32
    %21:3 = scf.for %arg12 = %c0_i32_5 to %20 step %c1_i32_6 iter_args(%arg13 = %16, %arg14 = %17, %arg15 = %18) -> (vector<8x1xf32>, vector<8x1xf32>, vector<8x8xf32>)  : i32 {
      %c8_i32_47 = arith.constant 8 : i32
      %94 = arith.muli %arg12, %c8_i32_47 : i32
      %95 = tpu.assume_multiple %94, 8 : i32
      %96 = arith.index_cast %95 : i32 to index
      %c0_48 = arith.constant 0 : index
      %97 = vector.load %arg9[%96, %c0_48] : memref<16x32xbf16, #tpu.memory_space<vmem>>, vector<8x8xbf16>
      %98 = arith.index_cast %95 : i32 to index
      %c0_49 = arith.constant 0 : index
      %99 = vector.load %arg10[%98, %c0_49] : memref<16x32xbf16, #tpu.memory_space<vmem>>, vector<8x8xbf16>
      "tpu.trace_start"() <{level = 10 : i32, message = "qd,kd->qk"}> : () -> ()
      %cst_50 = arith.constant dense<0.000000e+00> : vector<8x8xf32>
      %100 = tpu.matmul %15, %97, %cst_50 {dimension_numbers = #tpu.dot_dimension_numbers<[1], [1], [0], [0], [0, 0, 1, 0], [], []>} : vector<8x8xbf16>, vector<8x8xbf16>, vector<8x8xf32> -> vector<8x8xf32>
      "tpu.trace_stop"() : () -> ()
      %101 = vector.broadcast %95 : i32 to vector<8x8xi32>
      %102 = arith.addi %101, %14 : vector<8x8xi32>
      %103 = arith.cmpi sge, %13, %102 : vector<8x8xi32>
      %cst_51 = arith.constant -1.000000e+30 : f32
      %104 = vector.broadcast %cst_51 : f32 to vector<8x8xf32>
      %105 = arith.select %103, %100, %104 : vector<8x8xi1>, vector<8x8xf32>
      %cst_52 = arith.constant dense<0xFF800000> : vector<8xf32>
      %106 = vector.multi_reduction <maximumf>, %105, %cst_52 [1] : vector<8x8xf32> to vector<8xf32>
      %107 = vector.shape_cast %106 : vector<8xf32> to vector<8x1xf32>
      %108 = arith.maximumf %arg13, %107 : vector<8x1xf32>
      %109 = arith.subf %arg13, %108 : vector<8x1xf32>
      %110 = math.exp %109 : vector<8x1xf32>
      %111 = vector.broadcast %108 : vector<8x1xf32> to vector<8x8xf32>
      %112 = arith.subf %105, %111 : vector<8x8xf32>
      %113 = math.exp %112 : vector<8x8xf32>
      %114 = arith.mulf %110, %arg14 : vector<8x1xf32>
      %cst_53 = arith.constant dense<0.000000e+00> : vector<8xf32>
      %115 = vector.multi_reduction <add>, %113, %cst_53 [1] : vector<8x8xf32> to vector<8xf32>
      %116 = vector.shape_cast %115 : vector<8xf32> to vector<8x1xf32>
      %117 = arith.addf %114, %116 : vector<8x1xf32>
      %118 = vector.broadcast %110 : vector<8x1xf32> to vector<8x8xf32>
      %119 = arith.mulf %118, %arg15 : vector<8x8xf32>
      %120 = arith.truncf %113 : vector<8x8xf32> to vector<8x8xbf16>
      %cst_54 = arith.constant dense<0.000000e+00> : vector<8x8xf32>
      %121 = tpu.matmul %120, %99, %cst_54 {dimension_numbers = #tpu.dot_dimension_numbers<[1], [0], [0], [1], [0, 0, 1, 1], [], []>} : vector<8x8xbf16>, vector<8x8xbf16>, vector<8x8xf32> -> vector<8x8xf32>
      %122 = arith.addf %119, %121 : vector<8x8xf32>
      scf.yield %108, %117, %122 : vector<8x1xf32>, vector<8x1xf32>, vector<8x8xf32>
    }
    %22 = tpu.reciprocal %21#1 {approx = true} : vector<8x1xf32> -> vector<8x1xf32>
    %23 = vector.broadcast %22 : vector<8x1xf32> to vector<8x8xf32>
    %24 = arith.mulf %21#2, %23 : vector<8x8xf32>
    %25 = arith.truncf %24 : vector<8x8xf32> to vector<8x8xbf16>
    %c0_7 = arith.constant 0 : index
    %c0_8 = arith.constant 0 : index
    %26 = vector.load %arg11[%c0_7, %c0_8] : memref<8x32xbf16, #tpu.memory_space<vmem>>, vector<8x8xbf16>
    tpu.vector_store %arg11[%c0_7, %c0_8], %25 {strides = array<i32>} : memref<8x32xbf16, #tpu.memory_space<vmem>>, vector<8x8xbf16>,
    %27 = vector.extract_strided_slice %9 {offsets = [0, 8], sizes = [8, 8], strides = [1, 1]} : vector<8x32xbf16> to vector<8x8xbf16>
    %cst_9 = arith.constant -1.000000e+30 : f32
    %28 = vector.broadcast %cst_9 : f32 to vector<8x1xf32>
    %cst_10 = arith.constant 0.000000e+00 : f32
    %29 = vector.broadcast %cst_10 : f32 to vector<8x1xf32>
    %cst_11 = arith.constant 0.000000e+00 : f32
    %30 = vector.broadcast %cst_11 : f32 to vector<8x8xf32>
    %c0_i32_12 = arith.constant 0 : i32
    %31 = arith.subi %10, %c0_i32_12 : i32
    %32 = arith.addi %c0_i32_12, %31 : i32
    %c1_i32_13 = arith.constant 1 : i32
    %33:3 = scf.for %arg12 = %c0_i32_12 to %32 step %c1_i32_13 iter_args(%arg13 = %28, %arg14 = %29, %arg15 = %30) -> (vector<8x1xf32>, vector<8x1xf32>, vector<8x8xf32>)  : i32 {
      %c8_i32_47 = arith.constant 8 : i32
      %94 = arith.muli %arg12, %c8_i32_47 : i32
      %95 = tpu.assume_multiple %94, 8 : i32
      %96 = arith.index_cast %95 : i32 to index
      %c8_48 = arith.constant 8 : index
      %97 = vector.load %arg9[%96, %c8_48] : memref<16x32xbf16, #tpu.memory_space<vmem>>, vector<8x8xbf16>
      %98 = arith.index_cast %95 : i32 to index
      %c8_49 = arith.constant 8 : index
      %99 = vector.load %arg10[%98, %c8_49] : memref<16x32xbf16, #tpu.memory_space<vmem>>, vector<8x8xbf16>
      "tpu.trace_start"() <{level = 10 : i32, message = "qd,kd->qk"}> : () -> ()
      %cst_50 = arith.constant dense<0.000000e+00> : vector<8x8xf32>
      %100 = tpu.matmul %27, %97, %cst_50 {dimension_numbers = #tpu.dot_dimension_numbers<[1], [1], [0], [0], [0, 0, 1, 0], [], []>} : vector<8x8xbf16>, vector<8x8xbf16>, vector<8x8xf32> -> vector<8x8xf32>
      "tpu.trace_stop"() : () -> ()
      %101 = vector.broadcast %95 : i32 to vector<8x8xi32>
      %102 = arith.addi %101, %14 : vector<8x8xi32>
      %103 = arith.cmpi sge, %13, %102 : vector<8x8xi32>
      %cst_51 = arith.constant -1.000000e+30 : f32
      %104 = vector.broadcast %cst_51 : f32 to vector<8x8xf32>
      %105 = arith.select %103, %100, %104 : vector<8x8xi1>, vector<8x8xf32>
      %cst_52 = arith.constant dense<0xFF800000> : vector<8xf32>
      %106 = vector.multi_reduction <maximumf>, %105, %cst_52 [1] : vector<8x8xf32> to vector<8xf32>
      %107 = vector.shape_cast %106 : vector<8xf32> to vector<8x1xf32>
      %108 = arith.maximumf %arg13, %107 : vector<8x1xf32>
      %109 = arith.subf %arg13, %108 : vector<8x1xf32>
      %110 = math.exp %109 : vector<8x1xf32>
      %111 = vector.broadcast %108 : vector<8x1xf32> to vector<8x8xf32>
      %112 = arith.subf %105, %111 : vector<8x8xf32>
      %113 = math.exp %112 : vector<8x8xf32>
      %114 = arith.mulf %110, %arg14 : vector<8x1xf32>
      %cst_53 = arith.constant dense<0.000000e+00> : vector<8xf32>
      %115 = vector.multi_reduction <add>, %113, %cst_53 [1] : vector<8x8xf32> to vector<8xf32>
      %116 = vector.shape_cast %115 : vector<8xf32> to vector<8x1xf32>
      %117 = arith.addf %114, %116 : vector<8x1xf32>
      %118 = vector.broadcast %110 : vector<8x1xf32> to vector<8x8xf32>
      %119 = arith.mulf %118, %arg15 : vector<8x8xf32>
      %120 = arith.truncf %113 : vector<8x8xf32> to vector<8x8xbf16>
      %cst_54 = arith.constant dense<0.000000e+00> : vector<8x8xf32>
      %121 = tpu.matmul %120, %99, %cst_54 {dimension_numbers = #tpu.dot_dimension_numbers<[1], [0], [0], [1], [0, 0, 1, 1], [], []>} : vector<8x8xbf16>, vector<8x8xbf16>, vector<8x8xf32> -> vector<8x8xf32>
      %122 = arith.addf %119, %121 : vector<8x8xf32>
      scf.yield %108, %117, %122 : vector<8x1xf32>, vector<8x1xf32>, vector<8x8xf32>
    }
    %34 = tpu.reciprocal %33#1 {approx = true} : vector<8x1xf32> -> vector<8x1xf32>
    %35 = vector.broadcast %34 : vector<8x1xf32> to vector<8x8xf32>
    %36 = arith.mulf %33#2, %35 : vector<8x8xf32>
    %37 = arith.truncf %36 : vector<8x8xf32> to vector<8x8xbf16>
    %c0_14 = arith.constant 0 : index
    %c8 = arith.constant 8 : index
    %38 = vector.load %arg11[%c0_14, %c8] : memref<8x32xbf16, #tpu.memory_space<vmem>>, vector<8x8xbf16>
    tpu.vector_store %arg11[%c0_14, %c8], %37 {strides = array<i32>} : memref<8x32xbf16, #tpu.memory_space<vmem>>, vector<8x8xbf16>,
    %39 = vector.extract_strided_slice %9 {offsets = [0, 16], sizes = [8, 8], strides = [1, 1]} : vector<8x32xbf16> to vector<8x8xbf16>
    %cst_15 = arith.constant -1.000000e+30 : f32
    %40 = vector.broadcast %cst_15 : f32 to vector<8x1xf32>
    %cst_16 = arith.constant 0.000000e+00 : f32
    %41 = vector.broadcast %cst_16 : f32 to vector<8x1xf32>
    %cst_17 = arith.constant 0.000000e+00 : f32
    %42 = vector.broadcast %cst_17 : f32 to vector<8x8xf32>
    %c0_i32_18 = arith.constant 0 : i32
    %43 = arith.subi %10, %c0_i32_18 : i32
    %44 = arith.addi %c0_i32_18, %43 : i32
    %c1_i32_19 = arith.constant 1 : i32
    %45:3 = scf.for %arg12 = %c0_i32_18 to %44 step %c1_i32_19 iter_args(%arg13 = %40, %arg14 = %41, %arg15 = %42) -> (vector<8x1xf32>, vector<8x1xf32>, vector<8x8xf32>)  : i32 {
      %c8_i32_47 = arith.constant 8 : i32
      %94 = arith.muli %arg12, %c8_i32_47 : i32
      %95 = tpu.assume_multiple %94, 8 : i32
      %96 = arith.index_cast %95 : i32 to index
      %c16_48 = arith.constant 16 : index
      %97 = vector.load %arg9[%96, %c16_48] : memref<16x32xbf16, #tpu.memory_space<vmem>>, vector<8x8xbf16>
      %98 = arith.index_cast %95 : i32 to index
      %c16_49 = arith.constant 16 : index
      %99 = vector.load %arg10[%98, %c16_49] : memref<16x32xbf16, #tpu.memory_space<vmem>>, vector<8x8xbf16>
      "tpu.trace_start"() <{level = 10 : i32, message = "qd,kd->qk"}> : () -> ()
      %cst_50 = arith.constant dense<0.000000e+00> : vector<8x8xf32>
      %100 = tpu.matmul %39, %97, %cst_50 {dimension_numbers = #tpu.dot_dimension_numbers<[1], [1], [0], [0], [0, 0, 1, 0], [], []>} : vector<8x8xbf16>, vector<8x8xbf16>, vector<8x8xf32> -> vector<8x8xf32>
      "tpu.trace_stop"() : () -> ()
      %101 = vector.broadcast %95 : i32 to vector<8x8xi32>
      %102 = arith.addi %101, %14 : vector<8x8xi32>
      %103 = arith.cmpi sge, %13, %102 : vector<8x8xi32>
      %cst_51 = arith.constant -1.000000e+30 : f32
      %104 = vector.broadcast %cst_51 : f32 to vector<8x8xf32>
      %105 = arith.select %103, %100, %104 : vector<8x8xi1>, vector<8x8xf32>
      %cst_52 = arith.constant dense<0xFF800000> : vector<8xf32>
      %106 = vector.multi_reduction <maximumf>, %105, %cst_52 [1] : vector<8x8xf32> to vector<8xf32>
      %107 = vector.shape_cast %106 : vector<8xf32> to vector<8x1xf32>
      %108 = arith.maximumf %arg13, %107 : vector<8x1xf32>
      %109 = arith.subf %arg13, %108 : vector<8x1xf32>
      %110 = math.exp %109 : vector<8x1xf32>
      %111 = vector.broadcast %108 : vector<8x1xf32> to vector<8x8xf32>
      %112 = arith.subf %105, %111 : vector<8x8xf32>
      %113 = math.exp %112 : vector<8x8xf32>
      %114 = arith.mulf %110, %arg14 : vector<8x1xf32>
      %cst_53 = arith.constant dense<0.000000e+00> : vector<8xf32>
      %115 = vector.multi_reduction <add>, %113, %cst_53 [1] : vector<8x8xf32> to vector<8xf32>
      %116 = vector.shape_cast %115 : vector<8xf32> to vector<8x1xf32>
      %117 = arith.addf %114, %116 : vector<8x1xf32>
      %118 = vector.broadcast %110 : vector<8x1xf32> to vector<8x8xf32>
      %119 = arith.mulf %118, %arg15 : vector<8x8xf32>
      %120 = arith.truncf %113 : vector<8x8xf32> to vector<8x8xbf16>
      %cst_54 = arith.constant dense<0.000000e+00> : vector<8x8xf32>
      %121 = tpu.matmul %120, %99, %cst_54 {dimension_numbers = #tpu.dot_dimension_numbers<[1], [0], [0], [1], [0, 0, 1, 1], [], []>} : vector<8x8xbf16>, vector<8x8xbf16>, vector<8x8xf32> -> vector<8x8xf32>
      %122 = arith.addf %119, %121 : vector<8x8xf32>
      scf.yield %108, %117, %122 : vector<8x1xf32>, vector<8x1xf32>, vector<8x8xf32>
    }
    %46 = tpu.reciprocal %45#1 {approx = true} : vector<8x1xf32> -> vector<8x1xf32>
    %47 = vector.broadcast %46 : vector<8x1xf32> to vector<8x8xf32>
    %48 = arith.mulf %45#2, %47 : vector<8x8xf32>
    %49 = arith.truncf %48 : vector<8x8xf32> to vector<8x8xbf16>
    %c0_20 = arith.constant 0 : index
    %c16 = arith.constant 16 : index
    %50 = vector.load %arg11[%c0_20, %c16] : memref<8x32xbf16, #tpu.memory_space<vmem>>, vector<8x8xbf16>
    tpu.vector_store %arg11[%c0_20, %c16], %49 {strides = array<i32>} : memref<8x32xbf16, #tpu.memory_space<vmem>>, vector<8x8xbf16>,
    %51 = vector.extract_strided_slice %9 {offsets = [0, 24], sizes = [8, 8], strides = [1, 1]} : vector<8x32xbf16> to vector<8x8xbf16>
    %cst_21 = arith.constant -1.000000e+30 : f32
    %52 = vector.broadcast %cst_21 : f32 to vector<8x1xf32>
    %cst_22 = arith.constant 0.000000e+00 : f32
    %53 = vector.broadcast %cst_22 : f32 to vector<8x1xf32>
    %cst_23 = arith.constant 0.000000e+00 : f32
    %54 = vector.broadcast %cst_23 : f32 to vector<8x8xf32>
    %c0_i32_24 = arith.constant 0 : i32
    %55 = arith.subi %10, %c0_i32_24 : i32
    %56 = arith.addi %c0_i32_24, %55 : i32
    %c1_i32_25 = arith.constant 1 : i32
    %57:3 = scf.for %arg12 = %c0_i32_24 to %56 step %c1_i32_25 iter_args(%arg13 = %52, %arg14 = %53, %arg15 = %54) -> (vector<8x1xf32>, vector<8x1xf32>, vector<8x8xf32>)  : i32 {
      %c8_i32_47 = arith.constant 8 : i32
      %94 = arith.muli %arg12, %c8_i32_47 : i32
      %95 = tpu.assume_multiple %94, 8 : i32
      %96 = arith.index_cast %95 : i32 to index
      %c24_48 = arith.constant 24 : index
      %97 = vector.load %arg9[%96, %c24_48] : memref<16x32xbf16, #tpu.memory_space<vmem>>, vector<8x8xbf16>
      %98 = arith.index_cast %95 : i32 to index
      %c24_49 = arith.constant 24 : index
      %99 = vector.load %arg10[%98, %c24_49] : memref<16x32xbf16, #tpu.memory_space<vmem>>, vector<8x8xbf16>
      "tpu.trace_start"() <{level = 10 : i32, message = "qd,kd->qk"}> : () -> ()
      %cst_50 = arith.constant dense<0.000000e+00> : vector<8x8xf32>
      %100 = tpu.matmul %51, %97, %cst_50 {dimension_numbers = #tpu.dot_dimension_numbers<[1], [1], [0], [0], [0, 0, 1, 0], [], []>} : vector<8x8xbf16>, vector<8x8xbf16>, vector<8x8xf32> -> vector<8x8xf32>
      "tpu.trace_stop"() : () -> ()
      %101 = vector.broadcast %95 : i32 to vector<8x8xi32>
      %102 = arith.addi %101, %14 : vector<8x8xi32>
      %103 = arith.cmpi sge, %13, %102 : vector<8x8xi32>
      %cst_51 = arith.constant -1.000000e+30 : f32
      %104 = vector.broadcast %cst_51 : f32 to vector<8x8xf32>
      %105 = arith.select %103, %100, %104 : vector<8x8xi1>, vector<8x8xf32>
      %cst_52 = arith.constant dense<0xFF800000> : vector<8xf32>
      %106 = vector.multi_reduction <maximumf>, %105, %cst_52 [1] : vector<8x8xf32> to vector<8xf32>
      %107 = vector.shape_cast %106 : vector<8xf32> to vector<8x1xf32>
      %108 = arith.maximumf %arg13, %107 : vector<8x1xf32>
      %109 = arith.subf %arg13, %108 : vector<8x1xf32>
      %110 = math.exp %109 : vector<8x1xf32>
      %111 = vector.broadcast %108 : vector<8x1xf32> to vector<8x8xf32>
      %112 = arith.subf %105, %111 : vector<8x8xf32>
      %113 = math.exp %112 : vector<8x8xf32>
      %114 = arith.mulf %110, %arg14 : vector<8x1xf32>
      %cst_53 = arith.constant dense<0.000000e+00> : vector<8xf32>
      %115 = vector.multi_reduction <add>, %113, %cst_53 [1] : vector<8x8xf32> to vector<8xf32>
      %116 = vector.shape_cast %115 : vector<8xf32> to vector<8x1xf32>
      %117 = arith.addf %114, %116 : vector<8x1xf32>
      %118 = vector.broadcast %110 : vector<8x1xf32> to vector<8x8xf32>
      %119 = arith.mulf %118, %arg15 : vector<8x8xf32>
      %120 = arith.truncf %113 : vector<8x8xf32> to vector<8x8xbf16>
      %cst_54 = arith.constant dense<0.000000e+00> : vector<8x8xf32>
      %121 = tpu.matmul %120, %99, %cst_54 {dimension_numbers = #tpu.dot_dimension_numbers<[1], [0], [0], [1], [0, 0, 1, 1], [], []>} : vector<8x8xbf16>, vector<8x8xbf16>, vector<8x8xf32> -> vector<8x8xf32>
      %122 = arith.addf %119, %121 : vector<8x8xf32>
      scf.yield %108, %117, %122 : vector<8x1xf32>, vector<8x1xf32>, vector<8x8xf32>
    }
    %58 = tpu.reciprocal %57#1 {approx = true} : vector<8x1xf32> -> vector<8x1xf32>
    %59 = vector.broadcast %58 : vector<8x1xf32> to vector<8x8xf32>
    %60 = arith.mulf %57#2, %59 : vector<8x8xf32>
    %61 = arith.truncf %60 : vector<8x8xf32> to vector<8x8xbf16>
    %c0_26 = arith.constant 0 : index
    %c24 = arith.constant 24 : index
    %62 = vector.load %arg11[%c0_26, %c24] : memref<8x32xbf16, #tpu.memory_space<vmem>>, vector<8x8xbf16>
    tpu.vector_store %arg11[%c0_26, %c24], %61 {strides = array<i32>} : memref<8x32xbf16, #tpu.memory_space<vmem>>, vector<8x8xbf16>,
    %c0_27 = arith.constant 0 : index
    %c0_28 = arith.constant 0 : index
    %63 = vector.load %arg11[%c0_27, %c0_28] : memref<8x32xbf16, #tpu.memory_space<vmem>>, vector<8x32xbf16>
    %c0_29 = arith.constant 0 : index
    %c0_30 = arith.constant 0 : index
    %64 = vector.load %arg4[%c0_29, %c0_30] : memref<32x32xbf16, #tpu.memory_space<vmem>>, vector<32x32xbf16>
    %cst_31 = arith.constant dense<0.000000e+00> : vector<8x32xf32>
    %65 = tpu.matmul %63, %64, %cst_31 {dimension_numbers = #tpu.dot_dimension_numbers<[1], [0], [0], [1], [0, 0, 1, 1], [], []>} : vector<8x32xbf16>, vector<32x32xbf16>, vector<8x32xf32> -> vector<8x32xf32>
    %66 = arith.addf %7, %65 : vector<8x32xf32>
    %67 = arith.mulf %66, %66 : vector<8x32xf32>
    %cst_32 = arith.constant dense<0.000000e+00> : vector<8xf32>
    %68 = vector.multi_reduction <add>, %67, %cst_32 [1] : vector<8x32xf32> to vector<8xf32>
    %69 = vector.shape_cast %68 : vector<8xf32> to vector<8x1xf32>
    %cst_33 = arith.constant 3.200000e+01 : f32
    %70 = vector.broadcast %cst_33 : f32 to vector<8x1xf32>
    %71 = arith.divf %69, %70 : vector<8x1xf32>
    %cst_34 = arith.constant 1.1920929E-7 : f32
    %72 = vector.broadcast %cst_34 : f32 to vector<8x1xf32>
    %73 = arith.addf %71, %72 : vector<8x1xf32>
    %74 = math.rsqrt %73 : vector<8x1xf32>
    %75 = vector.broadcast %74 : vector<8x1xf32> to vector<8x32xf32>
    %76 = arith.mulf %66, %75 : vector<8x32xf32>
    %cst_35 = arith.constant 0.707106769 : f32
    %77 = vector.broadcast %cst_35 : f32 to vector<8x32xf32>
    %78 = arith.mulf %77, %76 : vector<8x32xf32>
    %79 = arith.truncf %78 : vector<8x32xf32> to vector<8x32xbf16>
    %cst_36 = arith.constant 0.000000e+00 : f32
    %80 = vector.broadcast %cst_36 : f32 to vector<8x32xf32>
    %c0_37 = arith.constant 0 : index
    %c0_38 = arith.constant 0 : index
    %81 = vector.load %arg5[%c0_37, %c0_38] : memref<32x128xbf16, #tpu.memory_space<vmem>>, vector<32x128xbf16>
    %cst_39 = arith.constant dense<0.000000e+00> : vector<8x128xf32>
    %82 = tpu.matmul %79, %81, %cst_39 {dimension_numbers = #tpu.dot_dimension_numbers<[1], [0], [0], [1], [0, 0, 1, 1], [], []>} : vector<8x32xbf16>, vector<32x128xbf16>, vector<8x128xf32> -> vector<8x128xf32>
    %cst_40 = arith.constant 0.000000e+00 : f32
    %83 = vector.broadcast %cst_40 : f32 to vector<8x128xf32>
    %84 = arith.maximumf %82, %83 : vector<8x128xf32>
    %85 = arith.mulf %84, %84 : vector<8x128xf32>
    %86 = arith.truncf %85 : vector<8x128xf32> to vector<8x128xbf16>
    %c0_41 = arith.constant 0 : index
    %c0_42 = arith.constant 0 : index
    %87 = vector.load %arg6[%c0_41, %c0_42] : memref<128x32xbf16, #tpu.memory_space<vmem>>, vector<128x32xbf16>
    %cst_43 = arith.constant dense<0.000000e+00> : vector<8x32xf32>
    %88 = tpu.matmul %86, %87, %cst_43 {dimension_numbers = #tpu.dot_dimension_numbers<[1], [0], [0], [1], [0, 0, 1, 1], [], []>} : vector<8x128xbf16>, vector<128x32xbf16>, vector<8x32xf32> -> vector<8x32xf32>
    %89 = arith.addf %80, %88 : vector<8x32xf32>
    %90 = arith.addf %66, %89 : vector<8x32xf32>
    %c0_44 = arith.constant 0 : index
    %c0_45 = arith.constant 0 : index
    %c0_46 = arith.constant 0 : index
    %91 = vector.load %arg7[%c0_44, %c0_45, %c0_46] : memref<1x8x32xf32, #tpu.memory_space<vmem>>, vector<1x8x32xf32>
    %92 = vector.shape_cast %91 : vector<1x8x32xf32> to vector<8x32xf32>
    %93 = vector.shape_cast %90 : vector<8x32xf32> to vector<1x8x32xf32>
    tpu.vector_store %arg7[%c0_44, %c0_45, %c0_46], %93 {strides = array<i32>} : memref<1x8x32xf32, #tpu.memory_space<vmem>>, vector<1x8x32xf32>,
    return
  }
  func.func @transform_0(%arg0: i32, %arg1: i32) -> (i32, i32, i32) {
    %c0_i32 = arith.constant 0 : i32
    %c0_i32_0 = arith.constant 0 : i32
    %c0_i32_1 = arith.constant 0 : i32
    return %arg0, %c0_i32, %c0_i32_0 : i32, i32, i32
  }
  func.func @transform_1(%arg0: i32, %arg1: i32) -> (i32, i32) {
    %c0_i32 = arith.constant 0 : i32
    %c0_i32_0 = arith.constant 0 : i32
    %c0_i32_1 = arith.constant 0 : i32
    return %c0_i32, %c0_i32_0 : i32, i32
  }
  func.func @transform_2(%arg0: i32, %arg1: i32) -> (i32, i32) {
    %c0_i32 = arith.constant 0 : i32
    %c0_i32_0 = arith.constant 0 : i32
    %c0_i32_1 = arith.constant 0 : i32
    return %c0_i32, %c0_i32_0 : i32, i32
  }
  func.func @transform_3(%arg0: i32, %arg1: i32) -> (i32, i32) {
    %c0_i32 = arith.constant 0 : i32
    %c0_i32_0 = arith.constant 0 : i32
    %c0_i32_1 = arith.constant 0 : i32
    return %c0_i32, %c0_i32_0 : i32, i32
  }
  func.func @transform_4(%arg0: i32, %arg1: i32) -> (i32, i32) {
    %c0_i32 = arith.constant 0 : i32
    %c0_i32_0 = arith.constant 0 : i32
    %c0_i32_1 = arith.constant 0 : i32
    return %c0_i32, %c0_i32_0 : i32, i32
  }
  func.func @transform_5(%arg0: i32, %arg1: i32) -> (i32, i32, i32) {
    %c0_i32 = arith.constant 0 : i32
    %c0_i32_0 = arith.constant 0 : i32
    return %arg0, %arg1, %c0_i32 : i32, i32, i32
  }
}

module attributes {stable_mosaic.version = 11 : i64} {
  func.func @block_kernel(%arg0: i32, %arg1: i32, %arg2: memref<1x16x32xf32, #tpu.memory_space<vmem>>, %arg3: memref<32x96xbf16, #tpu.memory_space<vmem>>, %arg4: memref<32x32xbf16, #tpu.memory_space<vmem>>, %arg5: memref<32x128xbf16, #tpu.memory_space<vmem>>, %arg6: memref<128x32xbf16, #tpu.memory_space<vmem>>, %arg7: memref<1x8x32xf32, #tpu.memory_space<vmem>>, %arg8: memref<16x32xbf16, #tpu.memory_space<vmem>>, %arg9: memref<16x32xbf16, #tpu.memory_space<vmem>>, %arg10: memref<16x32xbf16, #tpu.memory_space<vmem>>, %arg11: memref<8x32xbf16, #tpu.memory_space<vmem>>) attributes {dimension_semantics = [#tpu.dimension_semantics<parallel>, #tpu.dimension_semantics<arbitrary>], iteration_bounds = array<i64: 2, 2>, scalar_prefetch = 0 : i64, scratch_operands = 4 : i64, tpu.core_type = #tpu.core_type<tc>, window_params = [{transform_indices = @transform_0, window_bounds = array<i64: 1, 16, 32>}, {pipeline_mode = #tpu.pipeline_mode<synchronous>, transform_indices = @transform_1, window_bounds = array<i64: 32, 96>}, {pipeline_mode = #tpu.pipeline_mode<synchronous>, transform_indices = @transform_2, window_bounds = array<i64: 32, 32>}, {pipeline_mode = #tpu.pipeline_mode<synchronous>, transform_indices = @transform_3, window_bounds = array<i64: 32, 128>}, {pipeline_mode = #tpu.pipeline_mode<synchronous>, transform_indices = @transform_4, window_bounds = array<i64: 128, 32>}, {transform_indices = @transform_5, window_bounds = array<i64: 1, 8, 32>}]} {
    %c0_i32 = arith.constant 0 : i32
    %0 = arith.cmpi eq, %arg1, %c0_i32 : i32
    %1 = arith.extui %0 : i1 to i32
    %c0_i32_0 = arith.constant 0 : i32
    %2 = arith.cmpi ne, %1, %c0_i32_0 : i32
    scf.if %2 {
      %c0_47 = arith.constant 0 : index
      %c0_48 = arith.constant 0 : index
      %c0_49 = arith.constant 0 : index
      %94 = vector.load %arg2[%c0_47, %c0_48, %c0_49] : memref<1x16x32xf32, #tpu.memory_space<vmem>>, vector<1x16x32xf32>
      %95 = vector.shape_cast %94 : vector<1x16x32xf32> to vector<16x32xf32>
      %96 = arith.mulf %95, %95 : vector<16x32xf32>
      %cst_50 = arith.constant dense<0.000000e+00> : vector<16xf32>
      %97 = vector.multi_reduction <add>, %96, %cst_50 [1] : vector<16x32xf32> to vector<16xf32>
      %98 = vector.shape_cast %97 : vector<16xf32> to vector<16x1xf32>
      %cst_51 = arith.constant 3.200000e+01 : f32
      %99 = vector.broadcast %cst_51 : f32 to vector<16x1xf32>
      %100 = arith.divf %98, %99 : vector<16x1xf32>
      %cst_52 = arith.constant 1.1920929E-7 : f32
      %101 = vector.broadcast %cst_52 : f32 to vector<16x1xf32>
      %102 = arith.addf %100, %101 : vector<16x1xf32>
      %103 = math.rsqrt %102 : vector<16x1xf32>
      %104 = vector.broadcast %103 : vector<16x1xf32> to vector<16x32xf32>
      %105 = arith.mulf %95, %104 : vector<16x32xf32>
      %cst_53 = arith.constant 0.707106769 : f32
      %106 = vector.broadcast %cst_53 : f32 to vector<16x32xf32>
      %107 = arith.mulf %106, %105 : vector<16x32xf32>
      %108 = arith.truncf %107 : vector<16x32xf32> to vector<16x32xbf16>
      %c0_54 = arith.constant 0 : index
      %c0_55 = arith.constant 0 : index
      %109 = vector.load %arg3[%c0_54, %c0_55] : memref<32x96xbf16, #tpu.memory_space<vmem>>, vector<32x32xbf16>
      %cst_56 = arith.constant dense<0.000000e+00> : vector<16x32xf32>
      %110 = tpu.matmul %108, %109, %cst_56 {dimension_numbers = #tpu.dot_dimension_numbers<[1], [0], [0], [1], [0, 0, 1, 1], [], []>} : vector<16x32xbf16>, vector<32x32xbf16>, vector<16x32xf32> -> vector<16x32xf32>
      %cst_57 = arith.constant 0.353553385 : f32
      %111 = vector.broadcast %cst_57 : f32 to vector<16x32xf32>
      %112 = arith.mulf %110, %111 : vector<16x32xf32>
      %113 = arith.truncf %112 : vector<16x32xf32> to vector<16x32xbf16>
      %c0_58 = arith.constant 0 : index
      %c0_59 = arith.constant 0 : index
      %114 = vector.load %arg8[%c0_58, %c0_59] : memref<16x32xbf16, #tpu.memory_space<vmem>>, vector<16x32xbf16>
      tpu.vector_store %arg8[%c0_58, %c0_59], %113 {strides = array<i32>} : memref<16x32xbf16, #tpu.memory_space<vmem>>, vector<16x32xbf16>,
      %c0_60 = arith.constant 0 : index
      %c32 = arith.constant 32 : index
      %115 = vector.load %arg3[%c0_60, %c32] : memref<32x96xbf16, #tpu.memory_space<vmem>>, vector<32x32xbf16>
      %cst_61 = arith.constant dense<0.000000e+00> : vector<16x32xf32>
      %116 = tpu.matmul %108, %115, %cst_61 {dimension_numbers = #tpu.dot_dimension_numbers<[1], [0], [0], [1], [0, 0, 1, 1], [], []>} : vector<16x32xbf16>, vector<32x32xbf16>, vector<16x32xf32> -> vector<16x32xf32>
      %117 = arith.truncf %116 : vector<16x32xf32> to vector<16x32xbf16>
      %c0_62 = arith.constant 0 : index
      %c0_63 = arith.constant 0 : index
      %118 = vector.load %arg9[%c0_62, %c0_63] : memref<16x32xbf16, #tpu.memory_space<vmem>>, vector<16x32xbf16>
      tpu.vector_store %arg9[%c0_62, %c0_63], %117 {strides = array<i32>} : memref<16x32xbf16, #tpu.memory_space<vmem>>, vector<16x32xbf16>,
      %c0_64 = arith.constant 0 : index
      %c64 = arith.constant 64 : index
      %119 = vector.load %arg3[%c0_64, %c64] : memref<32x96xbf16, #tpu.memory_space<vmem>>, vector<32x32xbf16>
      %cst_65 = arith.constant dense<0.000000e+00> : vector<16x32xf32>
      %120 = tpu.matmul %108, %119, %cst_65 {dimension_numbers = #tpu.dot_dimension_numbers<[1], [0], [0], [1], [0, 0, 1, 1], [], []>} : vector<16x32xbf16>, vector<32x32xbf16>, vector<16x32xf32> -> vector<16x32xf32>
      %121 = arith.truncf %120 : vector<16x32xf32> to vector<16x32xbf16>
      %c0_66 = arith.constant 0 : index
      %c0_67 = arith.constant 0 : index
      %122 = vector.load %arg10[%c0_66, %c0_67] : memref<16x32xbf16, #tpu.memory_space<vmem>>, vector<16x32xbf16>
      tpu.vector_store %arg10[%c0_66, %c0_67], %121 {strides = array<i32>} : memref<16x32xbf16, #tpu.memory_space<vmem>>, vector<16x32xbf16>,
    } else {
    }
    %c8_i32 = arith.constant 8 : i32
    %3 = arith.muli %arg1, %c8_i32 : i32
    %4 = tpu.assume_multiple %3, 8 : i32
    %c0 = arith.constant 0 : index
    %5 = arith.index_cast %4 : i32 to index
    %c0_1 = arith.constant 0 : index
    %6 = vector.load %arg2[%c0, %5, %c0_1] : memref<1x16x32xf32, #tpu.memory_space<vmem>>, vector<1x8x32xf32>
    %7 = vector.shape_cast %6 : vector<1x8x32xf32> to vector<8x32xf32>
    %8 = arith.index_cast %4 : i32 to index
    %c0_2 = arith.constant 0 : index
    %9 = vector.load %arg8[%8, %c0_2] : memref<16x32xbf16, #tpu.memory_space<vmem>>, vector<8x32xbf16>
    %c1_i32 = arith.constant 1 : i32
    %10 = arith.addi %arg1, %c1_i32 : i32
    %11 = tpu.iota {dimensions = array<i32: 0>} : vector<8x8xi32>
    %12 = vector.broadcast %4 : i32 to vector<8x8xi32>
    %13 = arith.addi %12, %11 : vector<8x8xi32>
    %14 = tpu.iota {dimensions = array<i32: 1>} : vector<8x8xi32>
    %15 = vector.extract_strided_slice %9 {offsets = [0, 0], sizes = [8, 8], strides = [1, 1]} : vector<8x32xbf16> to vector<8x8xbf16>
    %cst = arith.constant -1.000000e+30 : f32
    %16 = vector.broadcast %cst : f32 to vector<8x1xf32>
    %cst_3 = arith.constant 0.000000e+00 : f32
    %17 = vector.broadcast %cst_3 : f32 to vector<8x1xf32>
    %cst_4 = arith.constant 0.000000e+00 : f32
    %18 = vector.broadcast %cst_4 : f32 to vector<8x8xf32>
    %c0_i32_5 = arith.constant 0 : i32
    %19 = arith.subi %10, %c0_i32_5 : i32
    %20 = arith.addi %c0_i32_5, %19 : i32
    %c1_i32_6 = arith.constant 1 : i32
    %21:3 = scf.for %arg12 = %c0_i32_5 to %20 step %c1_i32_6 iter_args(%arg13 = %16, %arg14 = %17, %arg15 = %18) -> (vector<8x1xf32>, vector<8x1xf32>, vector<8x8xf32>)  : i32 {
      %c8_i32_47 = arith.constant 8 : i32
      %94 = arith.muli %arg12, %c8_i32_47 : i32
      %95 = tpu.assume_multiple %94, 8 : i32
      %96 = arith.index_cast %95 : i32 to index
      %c0_48 = arith.constant 0 : index
      %97 = vector.load %arg9[%96, %c0_48] : memref<16x32xbf16, #tpu.memory_space<vmem>>, vector<8x8xbf16>
      %98 = arith.index_cast %95 : i32 to index
      %c0_49 = arith.constant 0 : index
      %99 = vector.load %arg10[%98, %c0_49] : memref<16x32xbf16, #tpu.memory_space<vmem>>, vector<8x8xbf16>
      "tpu.trace_start"() <{level = 10 : i32, message = "qd,kd->qk"}> : () -> ()
      %cst_50 = arith.constant dense<0.000000e+00> : vector<8x8xf32>
      %100 = tpu.matmul %15, %97, %cst_50 {dimension_numbers = #tpu.dot_dimension_numbers<[1], [1], [0], [0], [0, 0, 1, 0], [], []>} : vector<8x8xbf16>, vector<8x8xbf16>, vector<8x8xf32> -> vector<8x8xf32>
      "tpu.trace_stop"() : () -> ()
      %101 = vector.broadcast %95 : i32 to vector<8x8xi32>
      %102 = arith.addi %101, %14 : vector<8x8xi32>
      %103 = arith.cmpi sge, %13, %102 : vector<8x8xi32>
      %cst_51 = arith.constant -1.000000e+30 : f32
      %104 = vector.broadcast %cst_51 : f32 to vector<8x8xf32>
      %105 = arith.select %103, %100, %104 : vector<8x8xi1>, vector<8x8xf32>
      %cst_52 = arith.constant dense<0xFF800000> : vector<8xf32>
      %106 = vector.multi_reduction <maximumf>, %105, %cst_52 [1] : vector<8x8xf32> to vector<8xf32>
      %107 = vector.shape_cast %106 : vector<8xf32> to vector<8x1xf32>
      %108 = arith.maximumf %arg13, %107 : vector<8x1xf32>
      %109 = arith.subf %arg13, %108 : vector<8x1xf32>
      %110 = math.exp %109 : vector<8x1xf32>
      %111 = vector.broadcast %108 : vector<8x1xf32> to vector<8x8xf32>
      %112 = arith.subf %105, %111 : vector<8x8xf32>
      %113 = math.exp %112 : vector<8x8xf32>
      %114 = arith.mulf %110, %arg14 : vector<8x1xf32>
      %cst_53 = arith.constant dense<0.000000e+00> : vector<8xf32>
      %115 = vector.multi_reduction <add>, %113, %cst_53 [1] : vector<8x8xf32> to vector<8xf32>
      %116 = vector.shape_cast %115 : vector<8xf32> to vector<8x1xf32>
      %117 = arith.addf %114, %116 : vector<8x1xf32>
      %118 = vector.broadcast %110 : vector<8x1xf32> to vector<8x8xf32>
      %119 = arith.mulf %118, %arg15 : vector<8x8xf32>
      %120 = arith.truncf %113 : vector<8x8xf32> to vector<8x8xbf16>
      %cst_54 = arith.constant dense<0.000000e+00> : vector<8x8xf32>
      %121 = tpu.matmul %120, %99, %cst_54 {dimension_numbers = #tpu.dot_dimension_numbers<[1], [0], [0], [1], [0, 0, 1, 1], [], []>} : vector<8x8xbf16>, vector<8x8xbf16>, vector<8x8xf32> -> vector<8x8xf32>
      %122 = arith.addf %119, %121 : vector<8x8xf32>
      scf.yield %108, %117, %122 : vector<8x1xf32>, vector<8x1xf32>, vector<8x8xf32>
    }
    %22 = tpu.reciprocal %21#1 {approx = true} : vector<8x1xf32> -> vector<8x1xf32>
    %23 = vector.broadcast %22 : vector<8x1xf32> to vector<8x8xf32>
    %24 = arith.mulf %21#2, %23 : vector<8x8xf32>
    %25 = arith.truncf %24 : vector<8x8xf32> to vector<8x8xbf16>
    %c0_7 = arith.constant 0 : index
    %c0_8 = arith.constant 0 : index
    %26 = vector.load %arg11[%c0_7, %c0_8] : memref<8x32xbf16, #tpu.memory_space<vmem>>, vector<8x8xbf16>
    tpu.vector_store %arg11[%c0_7, %c0_8], %25 {strides = array<i32>} : memref<8x32xbf16, #tpu.memory_space<vmem>>, vector<8x8xbf16>,
    %27 = vector.extract_strided_slice %9 {offsets = [0, 8], sizes = [8, 8], strides = [1, 1]} : vector<8x32xbf16> to vector<8x8xbf16>
    %cst_9 = arith.constant -1.000000e+30 : f32
    %28 = vector.broadcast %cst_9 : f32 to vector<8x1xf32>
    %cst_10 = arith.constant 0.000000e+00 : f32
    %29 = vector.broadcast %cst_10 : f32 to vector<8x1xf32>
    %cst_11 = arith.constant 0.000000e+00 : f32
    %30 = vector.broadcast %cst_11 : f32 to vector<8x8xf32>
    %c0_i32_12 = arith.constant 0 : i32
    %31 = arith.subi %10, %c0_i32_12 : i32
    %32 = arith.addi %c0_i32_12, %31 : i32
    %c1_i32_13 = arith.constant 1 : i32
    %33:3 = scf.for %arg12 = %c0_i32_12 to %32 step %c1_i32_13 iter_args(%arg13 = %28, %arg14 = %29, %arg15 = %30) -> (vector<8x1xf32>, vector<8x1xf32>, vector<8x8xf32>)  : i32 {
      %c8_i32_47 = arith.constant 8 : i32
      %94 = arith.muli %arg12, %c8_i32_47 : i32
      %95 = tpu.assume_multiple %94, 8 : i32
      %96 = arith.index_cast %95 : i32 to index
      %c8_48 = arith.constant 8 : index
      %97 = vector.load %arg9[%96, %c8_48] : memref<16x32xbf16, #tpu.memory_space<vmem>>, vector<8x8xbf16>
      %98 = arith.index_cast %95 : i32 to index
      %c8_49 = arith.constant 8 : index
      %99 = vector.load %arg10[%98, %c8_49] : memref<16x32xbf16, #tpu.memory_space<vmem>>, vector<8x8xbf16>
      "tpu.trace_start"() <{level = 10 : i32, message = "qd,kd->qk"}> : () -> ()
      %cst_50 = arith.constant dense<0.000000e+00> : vector<8x8xf32>
      %100 = tpu.matmul %27, %97, %cst_50 {dimension_numbers = #tpu.dot_dimension_numbers<[1], [1], [0], [0], [0, 0, 1, 0], [], []>} : vector<8x8xbf16>, vector<8x8xbf16>, vector<8x8xf32> -> vector<8x8xf32>
      "tpu.trace_stop"() : () -> ()
      %101 = vector.broadcast %95 : i32 to vector<8x8xi32>
      %102 = arith.addi %101, %14 : vector<8x8xi32>
      %103 = arith.cmpi sge, %13, %102 : vector<8x8xi32>
      %cst_51 = arith.constant -1.000000e+30 : f32
      %104 = vector.broadcast %cst_51 : f32 to vector<8x8xf32>
      %105 = arith.select %103, %100, %104 : vector<8x8xi1>, vector<8x8xf32>
      %cst_52 = arith.constant dense<0xFF800000> : vector<8xf32>
      %106 = vector.multi_reduction <maximumf>, %105, %cst_52 [1] : vector<8x8xf32> to vector<8xf32>
      %107 = vector.shape_cast %106 : vector<8xf32> to vector<8x1xf32>
      %108 = arith.maximumf %arg13, %107 : vector<8x1xf32>
      %109 = arith.subf %arg13, %108 : vector<8x1xf32>
      %110 = math.exp %109 : vector<8x1xf32>
      %111 = vector.broadcast %108 : vector<8x1xf32> to vector<8x8xf32>
      %112 = arith.subf %105, %111 : vector<8x8xf32>
      %113 = math.exp %112 : vector<8x8xf32>
      %114 = arith.mulf %110, %arg14 : vector<8x1xf32>
      %cst_53 = arith.constant dense<0.000000e+00> : vector<8xf32>
      %115 = vector.multi_reduction <add>, %113, %cst_53 [1] : vector<8x8xf32> to vector<8xf32>
      %116 = vector.shape_cast %115 : vector<8xf32> to vector<8x1xf32>
      %117 = arith.addf %114, %116 : vector<8x1xf32>
      %118 = vector.broadcast %110 : vector<8x1xf32> to vector<8x8xf32>
      %119 = arith.mulf %118, %arg15 : vector<8x8xf32>
      %120 = arith.truncf %113 : vector<8x8xf32> to vector<8x8xbf16>
      %cst_54 = arith.constant dense<0.000000e+00> : vector<8x8xf32>
      %121 = tpu.matmul %120, %99, %cst_54 {dimension_numbers = #tpu.dot_dimension_numbers<[1], [0], [0], [1], [0, 0, 1, 1], [], []>} : vector<8x8xbf16>, vector<8x8xbf16>, vector<8x8xf32> -> vector<8x8xf32>
      %122 = arith.addf %119, %121 : vector<8x8xf32>
      scf.yield %108, %117, %122 : vector<8x1xf32>, vector<8x1xf32>, vector<8x8xf32>
    }
    %34 = tpu.reciprocal %33#1 {approx = true} : vector<8x1xf32> -> vector<8x1xf32>
    %35 = vector.broadcast %34 : vector<8x1xf32> to vector<8x8xf32>
    %36 = arith.mulf %33#2, %35 : vector<8x8xf32>
    %37 = arith.truncf %36 : vector<8x8xf32> to vector<8x8xbf16>
    %c0_14 = arith.constant 0 : index
    %c8 = arith.constant 8 : index
    %38 = vector.load %arg11[%c0_14, %c8] : memref<8x32xbf16, #tpu.memory_space<vmem>>, vector<8x8xbf16>
    tpu.vector_store %arg11[%c0_14, %c8], %37 {strides = array<i32>} : memref<8x32xbf16, #tpu.memory_space<vmem>>, vector<8x8xbf16>,
    %39 = vector.extract_strided_slice %9 {offsets = [0, 16], sizes = [8, 8], strides = [1, 1]} : vector<8x32xbf16> to vector<8x8xbf16>
    %cst_15 = arith.constant -1.000000e+30 : f32
    %40 = vector.broadcast %cst_15 : f32 to vector<8x1xf32>
    %cst_16 = arith.constant 0.000000e+00 : f32
    %41 = vector.broadcast %cst_16 : f32 to vector<8x1xf32>
    %cst_17 = arith.constant 0.000000e+00 : f32
    %42 = vector.broadcast %cst_17 : f32 to vector<8x8xf32>
    %c0_i32_18 = arith.constant 0 : i32
    %43 = arith.subi %10, %c0_i32_18 : i32
    %44 = arith.addi %c0_i32_18, %43 : i32
    %c1_i32_19 = arith.constant 1 : i32
    %45:3 = scf.for %arg12 = %c0_i32_18 to %44 step %c1_i32_19 iter_args(%arg13 = %40, %arg14 = %41, %arg15 = %42) -> (vector<8x1xf32>, vector<8x1xf32>, vector<8x8xf32>)  : i32 {
      %c8_i32_47 = arith.constant 8 : i32
      %94 = arith.muli %arg12, %c8_i32_47 : i32
      %95 = tpu.assume_multiple %94, 8 : i32
      %96 = arith.index_cast %95 : i32 to index
      %c16_48 = arith.constant 16 : index
      %97 = vector.load %arg9[%96, %c16_48] : memref<16x32xbf16, #tpu.memory_space<vmem>>, vector<8x8xbf16>
      %98 = arith.index_cast %95 : i32 to index
      %c16_49 = arith.constant 16 : index
      %99 = vector.load %arg10[%98, %c16_49] : memref<16x32xbf16, #tpu.memory_space<vmem>>, vector<8x8xbf16>
      "tpu.trace_start"() <{level = 10 : i32, message = "qd,kd->qk"}> : () -> ()
      %cst_50 = arith.constant dense<0.000000e+00> : vector<8x8xf32>
      %100 = tpu.matmul %39, %97, %cst_50 {dimension_numbers = #tpu.dot_dimension_numbers<[1], [1], [0], [0], [0, 0, 1, 0], [], []>} : vector<8x8xbf16>, vector<8x8xbf16>, vector<8x8xf32> -> vector<8x8xf32>
      "tpu.trace_stop"() : () -> ()
      %101 = vector.broadcast %95 : i32 to vector<8x8xi32>
      %102 = arith.addi %101, %14 : vector<8x8xi32>
      %103 = arith.cmpi sge, %13, %102 : vector<8x8xi32>
      %cst_51 = arith.constant -1.000000e+30 : f32
      %104 = vector.broadcast %cst_51 : f32 to vector<8x8xf32>
      %105 = arith.select %103, %100, %104 : vector<8x8xi1>, vector<8x8xf32>
      %cst_52 = arith.constant dense<0xFF800000> : vector<8xf32>
      %106 = vector.multi_reduction <maximumf>, %105, %cst_52 [1] : vector<8x8xf32> to vector<8xf32>
      %107 = vector.shape_cast %106 : vector<8xf32> to vector<8x1xf32>
      %108 = arith.maximumf %arg13, %107 : vector<8x1xf32>
      %109 = arith.subf %arg13, %108 : vector<8x1xf32>
      %110 = math.exp %109 : vector<8x1xf32>
      %111 = vector.broadcast %108 : vector<8x1xf32> to vector<8x8xf32>
      %112 = arith.subf %105, %111 : vector<8x8xf32>
      %113 = math.exp %112 : vector<8x8xf32>
      %114 = arith.mulf %110, %arg14 : vector<8x1xf32>
      %cst_53 = arith.constant dense<0.000000e+00> : vector<8xf32>
      %115 = vector.multi_reduction <add>, %113, %cst_53 [1] : vector<8x8xf32> to vector<8xf32>
      %116 = vector.shape_cast %115 : vector<8xf32> to vector<8x1xf32>
      %117 = arith.addf %114, %116 : vector<8x1xf32>
      %118 = vector.broadcast %110 : vector<8x1xf32> to vector<8x8xf32>
      %119 = arith.mulf %118, %arg15 : vector<8x8xf32>
      %120 = arith.truncf %113 : vector<8x8xf32> to vector<8x8xbf16>
      %cst_54 = arith.constant dense<0.000000e+00> : vector<8x8xf32>
      %121 = tpu.matmul %120, %99, %cst_54 {dimension_numbers = #tpu.dot_dimension_numbers<[1], [0], [0], [1], [0, 0, 1, 1], [], []>} : vector<8x8xbf16>, vector<8x8xbf16>, vector<8x8xf32> -> vector<8x8xf32>
      %122 = arith.addf %119, %121 : vector<8x8xf32>
      scf.yield %108, %117, %122 : vector<8x1xf32>, vector<8x1xf32>, vector<8x8xf32>
    }
    %46 = tpu.reciprocal %45#1 {approx = true} : vector<8x1xf32> -> vector<8x1xf32>
    %47 = vector.broadcast %46 : vector<8x1xf32> to vector<8x8xf32>
    %48 = arith.mulf %45#2, %47 : vector<8x8xf32>
    %49 = arith.truncf %48 : vector<8x8xf32> to vector<8x8xbf16>
    %c0_20 = arith.constant 0 : index
    %c16 = arith.constant 16 : index
    %50 = vector.load %arg11[%c0_20, %c16] : memref<8x32xbf16, #tpu.memory_space<vmem>>, vector<8x8xbf16>
    tpu.vector_store %arg11[%c0_20, %c16], %49 {strides = array<i32>} : memref<8x32xbf16, #tpu.memory_space<vmem>>, vector<8x8xbf16>,
    %51 = vector.extract_strided_slice %9 {offsets = [0, 24], sizes = [8, 8], strides = [1, 1]} : vector<8x32xbf16> to vector<8x8xbf16>
    %cst_21 = arith.constant -1.000000e+30 : f32
    %52 = vector.broadcast %cst_21 : f32 to vector<8x1xf32>
    %cst_22 = arith.constant 0.000000e+00 : f32
    %53 = vector.broadcast %cst_22 : f32 to vector<8x1xf32>
    %cst_23 = arith.constant 0.000000e+00 : f32
    %54 = vector.broadcast %cst_23 : f32 to vector<8x8xf32>
    %c0_i32_24 = arith.constant 0 : i32
    %55 = arith.subi %10, %c0_i32_24 : i32
    %56 = arith.addi %c0_i32_24, %55 : i32
    %c1_i32_25 = arith.constant 1 : i32
    %57:3 = scf.for %arg12 = %c0_i32_24 to %56 step %c1_i32_25 iter_args(%arg13 = %52, %arg14 = %53, %arg15 = %54) -> (vector<8x1xf32>, vector<8x1xf32>, vector<8x8xf32>)  : i32 {
      %c8_i32_47 = arith.constant 8 : i32
      %94 = arith.muli %arg12, %c8_i32_47 : i32
      %95 = tpu.assume_multiple %94, 8 : i32
      %96 = arith.index_cast %95 : i32 to index
      %c24_48 = arith.constant 24 : index
      %97 = vector.load %arg9[%96, %c24_48] : memref<16x32xbf16, #tpu.memory_space<vmem>>, vector<8x8xbf16>
      %98 = arith.index_cast %95 : i32 to index
      %c24_49 = arith.constant 24 : index
      %99 = vector.load %arg10[%98, %c24_49] : memref<16x32xbf16, #tpu.memory_space<vmem>>, vector<8x8xbf16>
      "tpu.trace_start"() <{level = 10 : i32, message = "qd,kd->qk"}> : () -> ()
      %cst_50 = arith.constant dense<0.000000e+00> : vector<8x8xf32>
      %100 = tpu.matmul %51, %97, %cst_50 {dimension_numbers = #tpu.dot_dimension_numbers<[1], [1], [0], [0], [0, 0, 1, 0], [], []>} : vector<8x8xbf16>, vector<8x8xbf16>, vector<8x8xf32> -> vector<8x8xf32>
      "tpu.trace_stop"() : () -> ()
      %101 = vector.broadcast %95 : i32 to vector<8x8xi32>
      %102 = arith.addi %101, %14 : vector<8x8xi32>
      %103 = arith.cmpi sge, %13, %102 : vector<8x8xi32>
      %cst_51 = arith.constant -1.000000e+30 : f32
      %104 = vector.broadcast %cst_51 : f32 to vector<8x8xf32>
      %105 = arith.select %103, %100, %104 : vector<8x8xi1>, vector<8x8xf32>
      %cst_52 = arith.constant dense<0xFF800000> : vector<8xf32>
      %106 = vector.multi_reduction <maximumf>, %105, %cst_52 [1] : vector<8x8xf32> to vector<8xf32>
      %107 = vector.shape_cast %106 : vector<8xf32> to vector<8x1xf32>
      %108 = arith.maximumf %arg13, %107 : vector<8x1xf32>
      %109 = arith.subf %arg13, %108 : vector<8x1xf32>
      %110 = math.exp %109 : vector<8x1xf32>
      %111 = vector.broadcast %108 : vector<8x1xf32> to vector<8x8xf32>
      %112 = arith.subf %105, %111 : vector<8x8xf32>
      %113 = math.exp %112 : vector<8x8xf32>
      %114 = arith.mulf %110, %arg14 : vector<8x1xf32>
      %cst_53 = arith.constant dense<0.000000e+00> : vector<8xf32>
      %115 = vector.multi_reduction <add>, %113, %cst_53 [1] : vector<8x8xf32> to vector<8xf32>
      %116 = vector.shape_cast %115 : vector<8xf32> to vector<8x1xf32>
      %117 = arith.addf %114, %116 : vector<8x1xf32>
      %118 = vector.broadcast %110 : vector<8x1xf32> to vector<8x8xf32>
      %119 = arith.mulf %118, %arg15 : vector<8x8xf32>
      %120 = arith.truncf %113 : vector<8x8xf32> to vector<8x8xbf16>
      %cst_54 = arith.constant dense<0.000000e+00> : vector<8x8xf32>
      %121 = tpu.matmul %120, %99, %cst_54 {dimension_numbers = #tpu.dot_dimension_numbers<[1], [0], [0], [1], [0, 0, 1, 1], [], []>} : vector<8x8xbf16>, vector<8x8xbf16>, vector<8x8xf32> -> vector<8x8xf32>
      %122 = arith.addf %119, %121 : vector<8x8xf32>
      scf.yield %108, %117, %122 : vector<8x1xf32>, vector<8x1xf32>, vector<8x8xf32>
    }
    %58 = tpu.reciprocal %57#1 {approx = true} : vector<8x1xf32> -> vector<8x1xf32>
    %59 = vector.broadcast %58 : vector<8x1xf32> to vector<8x8xf32>
    %60 = arith.mulf %57#2, %59 : vector<8x8xf32>
    %61 = arith.truncf %60 : vector<8x8xf32> to vector<8x8xbf16>
    %c0_26 = arith.constant 0 : index
    %c24 = arith.constant 24 : index
    %62 = vector.load %arg11[%c0_26, %c24] : memref<8x32xbf16, #tpu.memory_space<vmem>>, vector<8x8xbf16>
    tpu.vector_store %arg11[%c0_26, %c24], %61 {strides = array<i32>} : memref<8x32xbf16, #tpu.memory_space<vmem>>, vector<8x8xbf16>,
    %c0_27 = arith.constant 0 : index
    %c0_28 = arith.constant 0 : index
    %63 = vector.load %arg11[%c0_27, %c0_28] : memref<8x32xbf16, #tpu.memory_space<vmem>>, vector<8x32xbf16>
    %c0_29 = arith.constant 0 : index
    %c0_30 = arith.constant 0 : index
    %64 = vector.load %arg4[%c0_29, %c0_30] : memref<32x32xbf16, #tpu.memory_space<vmem>>, vector<32x32xbf16>
    %cst_31 = arith.constant dense<0.000000e+00> : vector<8x32xf32>
    %65 = tpu.matmul %63, %64, %cst_31 {dimension_numbers = #tpu.dot_dimension_numbers<[1], [0], [0], [1], [0, 0, 1, 1], [], []>} : vector<8x32xbf16>, vector<32x32xbf16>, vector<8x32xf32> -> vector<8x32xf32>
    %66 = arith.addf %7, %65 : vector<8x32xf32>
    %67 = arith.mulf %66, %66 : vector<8x32xf32>
    %cst_32 = arith.constant dense<0.000000e+00> : vector<8xf32>
    %68 = vector.multi_reduction <add>, %67, %cst_32 [1] : vector<8x32xf32> to vector<8xf32>
    %69 = vector.shape_cast %68 : vector<8xf32> to vector<8x1xf32>
    %cst_33 = arith.constant 3.200000e+01 : f32
    %70 = vector.broadcast %cst_33 : f32 to vector<8x1xf32>
    %71 = arith.divf %69, %70 : vector<8x1xf32>
    %cst_34 = arith.constant 1.1920929E-7 : f32
    %72 = vector.broadcast %cst_34 : f32 to vector<8x1xf32>
    %73 = arith.addf %71, %72 : vector<8x1xf32>
    %74 = math.rsqrt %73 : vector<8x1xf32>
    %75 = vector.broadcast %74 : vector<8x1xf32> to vector<8x32xf32>
    %76 = arith.mulf %66, %75 : vector<8x32xf32>
    %cst_35 = arith.constant 0.707106769 : f32
    %77 = vector.broadcast %cst_35 : f32 to vector<8x32xf32>
    %78 = arith.mulf %77, %76 : vector<8x32xf32>
    %79 = arith.truncf %78 : vector<8x32xf32> to vector<8x32xbf16>
    %cst_36 = arith.constant 0.000000e+00 : f32
    %80 = vector.broadcast %cst_36 : f32 to vector<8x32xf32>
    %c0_37 = arith.constant 0 : index
    %c0_38 = arith.constant 0 : index
    %81 = vector.load %arg5[%c0_37, %c0_38] : memref<32x128xbf16, #tpu.memory_space<vmem>>, vector<32x128xbf16>
    %cst_39 = arith.constant dense<0.000000e+00> : vector<8x128xf32>
    %82 = tpu.matmul %79, %81, %cst_39 {dimension_numbers = #tpu.dot_dimension_numbers<[1], [0], [0], [1], [0, 0, 1, 1], [], []>} : vector<8x32xbf16>, vector<32x128xbf16>, vector<8x128xf32> -> vector<8x128xf32>
    %cst_40 = arith.constant 0.000000e+00 : f32
    %83 = vector.broadcast %cst_40 : f32 to vector<8x128xf32>
    %84 = arith.maximumf %82, %83 : vector<8x128xf32>
    %85 = arith.mulf %84, %84 : vector<8x128xf32>
    %86 = arith.truncf %85 : vector<8x128xf32> to vector<8x128xbf16>
    %c0_41 = arith.constant 0 : index
    %c0_42 = arith.constant 0 : index
    %87 = vector.load %arg6[%c0_41, %c0_42] : memref<128x32xbf16, #tpu.memory_space<vmem>>, vector<128x32xbf16>
    %cst_43 = arith.constant dense<0.000000e+00> : vector<8x32xf32>
    %88 = tpu.matmul %86, %87, %cst_43 {dimension_numbers = #tpu.dot_dimension_numbers<[1], [0], [0], [1], [0, 0, 1, 1], [], []>} : vector<8x128xbf16>, vector<128x32xbf16>, vector<8x32xf32> -> vector<8x32xf32>
    %89 = arith.addf %80, %88 : vector<8x32xf32>
    %90 = arith.addf %66, %89 : vector<8x32xf32>
    %c0_44 = arith.constant 0 : index
    %c0_45 = arith.constant 0 : index
    %c0_46 = arith.constant 0 : index
    %91 = vector.load %arg7[%c0_44, %c0_45, %c0_46] : memref<1x8x32xf32, #tpu.memory_space<vmem>>, vector<1x8x32xf32>
    %92 = vector.shape_cast %91 : vector<1x8x32xf32> to vector<8x32xf32>
    %93 = vector.shape_cast %90 : vector<8x32xf32> to vector<1x8x32xf32>
    tpu.vector_store %arg7[%c0_44, %c0_45, %c0_46], %93 {strides = array<i32>} : memref<1x8x32xf32, #tpu.memory_space<vmem>>, vector<1x8x32xf32>,
    return
  }
  func.func @transform_0(%arg0: i32, %arg1: i32) -> (i32, i32, i32) {
    %c0_i32 = arith.constant 0 : i32
    %c0_i32_0 = arith.constant 0 : i32
    %c0_i32_1 = arith.constant 0 : i32
    return %arg0, %c0_i32, %c0_i32_0 : i32, i32, i32
  }
  func.func @transform_1(%arg0: i32, %arg1: i32) -> (i32, i32) {
    %c0_i32 = arith.constant 0 : i32
    %c0_i32_0 = arith.constant 0 : i32
    %c0_i32_1 = arith.constant 0 : i32
    return %c0_i32, %c0_i32_0 : i32, i32
  }
  func.func @transform_2(%arg0: i32, %arg1: i32) -> (i32, i32) {
    %c0_i32 = arith.constant 0 : i32
    %c0_i32_0 = arith.constant 0 : i32
    %c0_i32_1 = arith.constant 0 : i32
    return %c0_i32, %c0_i32_0 : i32, i32
  }
  func.func @transform_3(%arg0: i32, %arg1: i32) -> (i32, i32) {
    %c0_i32 = arith.constant 0 : i32
    %c0_i32_0 = arith.constant 0 : i32
    %c0_i32_1 = arith.constant 0 : i32
    return %c0_i32, %c0_i32_0 : i32, i32
  }
  func.func @transform_4(%arg0: i32, %arg1: i32) -> (i32, i32) {
    %c0_i32 = arith.constant 0 : i32
    %c0_i32_0 = arith.constant 0 : i32
    %c0_i32_1 = arith.constant 0 : i32
    return %c0_i32, %c0_i32_0 : i32, i32
  }
  func.func @transform_5(%arg0: i32, %arg1: i32) -> (i32, i32, i32) {
    %c0_i32 = arith.constant 0 : i32
    %c0_i32_0 = arith.constant 0 : i32
    return %arg0, %arg1, %c0_i32 : i32, i32, i32
  }
}

</mosaic_0001>

<llo_original>
// kernel: tpu_custom_call.1
$region0: #{tpu_custom_call.1}
  #allocation0 [shape = 'u32[]', space=smem, size = 0x4, offset = 0x4, fixed_abs, tag = 'smem constant byte address 0x4 - core index']
  #allocation1 [shape = 'u32[72,128]{1,0:T(1,128)}', space=vmem, size = 0x9000, scoped, tag = 'internal scratch']
  #allocation2 [shape = 'bf16[16,32]{1,0:T(8,128)(2,1)}', space=vmem, size = 0x1000, scoped, tag = 'scratch operand']
  #allocation3 [shape = 'bf16[16,32]{1,0:T(8,128)(2,1)}', space=vmem, size = 0x1000, scoped, tag = 'scratch operand']
  #allocation4 [shape = 'bf16[16,32]{1,0:T(8,128)(2,1)}', space=vmem, size = 0x1000, scoped, tag = 'scratch operand']
  #allocation5 [shape = 'bf16[8,32]{1,0:T(8,128)(2,1)}', space=vmem, size = 0x800, scoped, tag = 'scratch operand']
  %s0 = inlined_call_operand.vmem [shape: f32[2,16,32], index: 0, kind: input, shape index: {}]
  %s1 = inlined_call_operand.vmem [shape: bf16[32,96], index: 1, kind: input, shape index: {}]
  %s2 = inlined_call_operand.vmem [shape: bf16[32,32], index: 2, kind: input, shape index: {}]
  %s3 = inlined_call_operand.vmem [shape: bf16[32,128], index: 3, kind: input, shape index: {}]
  %s4 = inlined_call_operand.vmem [shape: bf16[128,32], index: 4, kind: input, shape index: {}]
  %s5 = inlined_call_operand.hbm [shape: f32[2,16,32], index: 5, kind: output, shape index: {}]
  %s6 = sld [smem:[#allocation0]]
  $region85: #{tpu_custom_call.1} parent=0
    _
  %s8 = ssub.s32 1, %s6
  %s9 = scalar_select 0, %s8, %s6
  $region1: #{tpu_custom_call.1} parent=0
    #allocation6 [shape = 'u8[8192]{0}', space=vmem, size = 0x2000, scoped, tag = 'output window, operand 0']
    #allocation7 [shape = 's32[2]{0}', space=sflag, size = 0x8, scoped, tag = 'scoped memory for tpu_custom_call.1']
    %10 = vsyncpa [#allocation7], 0
    %s11 = scalar_lea.sflag [#allocation7], 1
    %12 = vsyncpa %s11, 0
    loop: start=0, step=1, limit=6
    $region2: #{tpu_custom_call.1} parent=1 // loop_pre_header
      _
    $region3: #{tpu_custom_call.1} parent=1 // loop_header
      %s14 = sphi 0, %s18
      %p15 = scmp.ge.s32.totalorder %s14, 6
      %s21 = sphi 0, %s33
      %s22 = sphi 0, %s29
      %s23 = sphi 0, %s21
      %s24 = sphi 0, %s22
      %s25 = sphi 0, %s23
      %s26 = sphi 0, %s24
      %s36 = sphi 0, %s38
      %s39 = sphi 0, %s36
      %s40 = sphi 0, %s39
      %s56 = sphi 0, %s40
      %s60 = sphi 0, %s60
      %s62 = sphi 0, %s60
      %s63 = sphi 0, %s62
      %s77 = sphi 0, %s63
      %s81 = sphi 0, %s81
      %s83 = sphi 0, %s81
      %s84 = sphi 0, %s83
      %s98 = sphi 0, %s84
      %s102 = sphi 0, %s102
      %s104 = sphi 0, %s102
      %s105 = sphi 0, %s104
      %s119 = sphi 0, %s105
      %s123 = sphi 0, %s123
      %s125 = sphi 0, %s123
      %s126 = sphi 0, %s125
      %s140 = sphi 0, %s126
      %s148 = sphi 0, %s150
      %s151 = sphi 0, %s148
      %s152 = sphi 0, %s151
      %s168 = sphi 0, %s152
    $region4: #{tpu_custom_call.1} parent=1 // loop_header_branch
      %17 = sbr.rel (%p15) target = $region8
    $region5: #{tpu_custom_call.1} parent=1 // loop_body
      %s19 = ssub.s32 %s14, 1
      %s20 = ssub.s32 %s14, 2
      %s27 = sadd.s32 1, %s22
      %p28 = scmp.ge.s32.totalorder %s27, 2
      %s29 = scalar_select %p28, 0, %s27
      %s30 = sadd.s32 1, %s21
      %s31 = scalar_select %p28, %s30, %s21
      %p32 = scmp.ge.s32.totalorder %s31, 2
      %s33 = scalar_select %p32, 0, %s31
      %s34 = ssub.s32 %s21, %s33
      %p35 = scmp.eq.s32.totalorder %s34, 0
      %s37 = sadd.s32 %s36, 1
      %s38 = scalar_select %p35, %s36, %s37
      %p41 = pneg %p35
      %p42 = scmp.eq.s32.totalorder %s14, 3
      %p43 = por %p41, %p42
      %p44 = scmp.ne.s32.totalorder %s36, %s39
      %p45 = scmp.eq.s32.totalorder %s14, 0
      %p46 = por %p44, %p45
      %p47 = scmp.ne.s32.totalorder %s36, %s39
      %p48 = scmp.eq.s32.totalorder %s19, 3
      %p49 = por %p47, %p48
      %p50 = scmp.ne.s32.totalorder %s39, %s40
      %p51 = scmp.eq.s32.totalorder %s19, 0
      %p52 = por %p50, %p51
      %p53 = scmp.ne.s32.totalorder %s39, %s40
      %p54 = scmp.eq.s32.totalorder %s20, 3
      %p55 = por %p53, %p54
      %p57 = scmp.ne.s32.totalorder %s40, %s56
      %p58 = scmp.eq.s32.totalorder %s20, 0
      %p59 = por %p57, %p58
      %s61 = sadd.s32 %s60, 1
      %p64 = scmp.eq.s32.totalorder %s14, 3
      %p65 = scmp.ne.s32.totalorder %s60, %s62
      %p66 = scmp.eq.s32.totalorder %s14, 0
      %p67 = por %p65, %p66
      %p68 = scmp.ne.s32.totalorder %s60, %s62
      %p69 = scmp.eq.s32.totalorder %s19, 3
      %p70 = por %p68, %p69
      %p71 = scmp.ne.s32.totalorder %s62, %s63
      %p72 = scmp.eq.s32.totalorder %s19, 0
      %p73 = por %p71, %p72
      %p74 = scmp.ne.s32.totalorder %s62, %s63
      %p75 = scmp.eq.s32.totalorder %s20, 3
      %p76 = por %p74, %p75
      %p78 = scmp.ne.s32.totalorder %s63, %s77
      %p79 = scmp.eq.s32.totalorder %s20, 0
      %p80 = por %p78, %p79
      %s82 = sadd.s32 %s81, 1
      %p85 = scmp.eq.s32.totalorder %s14, 3
      %p86 = scmp.ne.s32.totalorder %s81, %s83
      %p87 = scmp.eq.s32.totalorder %s14, 0
      %p88 = por %p86, %p87
      %p89 = scmp.ne.s32.totalorder %s81, %s83
      %p90 = scmp.eq.s32.totalorder %s19, 3
      %p91 = por %p89, %p90
      %p92 = scmp.ne.s32.totalorder %s83, %s84
      %p93 = scmp.eq.s32.totalorder %s19, 0
      %p94 = por %p92, %p93
      %p95 = scmp.ne.s32.totalorder %s83, %s84
      %p96 = scmp.eq.s32.totalorder %s20, 3
      %p97 = por %p95, %p96
      %p99 = scmp.ne.s32.totalorder %s84, %s98
      %p100 = scmp.eq.s32.totalorder %s20, 0
      %p101 = por %p99, %p100
      %s103 = sadd.s32 %s102, 1
      %p106 = scmp.eq.s32.totalorder %s14, 3
      %p107 = scmp.ne.s32.totalorder %s102, %s104
      %p108 = scmp.eq.s32.totalorder %s14, 0
      %p109 = por %p107, %p108
      %p110 = scmp.ne.s32.totalorder %s102, %s104
      %p111 = scmp.eq.s32.totalorder %s19, 3
      %p112 = por %p110, %p111
      %p113 = scmp.ne.s32.totalorder %s104, %s105
      %p114 = scmp.eq.s32.totalorder %s19, 0
      %p115 = por %p113, %p114
      %p116 = scmp.ne.s32.totalorder %s104, %s105
      %p117 = scmp.eq.s32.totalorder %s20, 3
      %p118 = por %p116, %p117
      %p120 = scmp.ne.s32.totalorder %s105, %s119
      %p121 = scmp.eq.s32.totalorder %s20, 0
      %p122 = por %p120, %p121
      %s124 = sadd.s32 %s123, 1
      %p127 = scmp.eq.s32.totalorder %s14, 3
      %p128 = scmp.ne.s32.totalorder %s123, %s125
      %p129 = scmp.eq.s32.totalorder %s14, 0
      %p130 = por %p128, %p129
      %p131 = scmp.ne.s32.totalorder %s123, %s125
      %p132 = scmp.eq.s32.totalorder %s19, 3
      %p133 = por %p131, %p132
      %p134 = scmp.ne.s32.totalorder %s125, %s126
      %p135 = scmp.eq.s32.totalorder %s19, 0
      %p136 = por %p134, %p135
      %p137 = scmp.ne.s32.totalorder %s125, %s126
      %p138 = scmp.eq.s32.totalorder %s20, 3
      %p139 = por %p137, %p138
      %p141 = scmp.ne.s32.totalorder %s126, %s140
      %p142 = scmp.eq.s32.totalorder %s20, 0
      %p143 = por %p141, %p142
      %s144 = ssub.s32 %s21, %s33
      %s145 = ssub.s32 %s22, %s29
      %s146 = sor.u32 %s144, %s145
      %p147 = scmp.eq.s32.totalorder %s146, 0
      %s149 = sadd.s32 %s148, 1
      %s150 = scalar_select %p147, %s148, %s149
      %p153 = pneg %p147
      %p154 = scmp.eq.s32.totalorder %s14, 3
      %p155 = por %p153, %p154
      %p156 = scmp.ne.s32.totalorder %s148, %s151
      %p157 = scmp.eq.s32.totalorder %s14, 0
      %p158 = por %p156, %p157
      %p159 = scmp.ne.s32.totalorder %s148, %s151
      %p160 = scmp.eq.s32.totalorder %s19, 3
      %p161 = por %p159, %p160
      %p162 = scmp.ne.s32.totalorder %s151, %s152
      %p163 = scmp.eq.s32.totalorder %s19, 0
      %p164 = por %p162, %p163
      %p165 = scmp.ne.s32.totalorder %s151, %s152
      %p166 = scmp.eq.s32.totalorder %s20, 3
      %p167 = por %p165, %p166
      %p169 = scmp.ne.s32.totalorder %s152, %s168
      %p170 = scmp.eq.s32.totalorder %s20, 0
      %p171 = por %p169, %p170
      %p172 = scmp.le.s32.totalorder 1, %s14
      %p173 = scmp.lt.s32.totalorder %s14, 5
      %p174 = pnand %p172, %p173
      %p175 = pneg %p174
      // Predicated region
      $region9: #{tpu_custom_call.1} parent=5 // pred_check
        _
      $region10: #{tpu_custom_call.1} parent=5 // pred_check_branch
        %177 = sbr.rel (%p174) target = $region12
      $region11: #{tpu_custom_call.1} parent=5 // pred_region
        %s178 = ssub.s32 %s14, 1
        // Predicated region
        $region13: #{tpu_custom_call.1} parent=11 // pred_check
          %p179 = pneg %p73
        $region14: #{tpu_custom_call.1} parent=11 // pred_check_branch
          %181 = sbr.rel (%p179) target = $region16
        $region15: #{tpu_custom_call.1} parent=11 // pred_region
          _
        $region16: #{tpu_custom_call.1} parent=11 // pred_fallthru
          _
        // Predicated region
        $region17: #{tpu_custom_call.1} parent=11 // pred_check
          %p182 = pneg %p94
        $region18: #{tpu_custom_call.1} parent=11 // pred_check_branch
          %184 = sbr.rel (%p182) target = $region20
        $region19: #{tpu_custom_call.1} parent=11 // pred_region
          _
        $region20: #{tpu_custom_call.1} parent=11 // pred_fallthru
          _
        // Predicated region
        $region21: #{tpu_custom_call.1} parent=11 // pred_check
          %p185 = pneg %p115
        $region22: #{tpu_custom_call.1} parent=11 // pred_check_branch
          %187 = sbr.rel (%p185) target = $region24
        $region23: #{tpu_custom_call.1} parent=11 // pred_region
          _
        $region24: #{tpu_custom_call.1} parent=11 // pred_fallthru
          _
        // Predicated region
        $region25: #{tpu_custom_call.1} parent=11 // pred_check
          %p188 = pneg %p136
        $region26: #{tpu_custom_call.1} parent=11 // pred_check_branch
          %190 = sbr.rel (%p188) target = $region28
        $region27: #{tpu_custom_call.1} parent=11 // pred_region
          _
        $region28: #{tpu_custom_call.1} parent=11 // pred_fallthru
          _
      $region12: #{tpu_custom_call.1} parent=5 // pred_fallthru
        _
      %p191 = scmp.lt.s32.totalorder %s14, 4
      // Predicated region
      $region29: #{tpu_custom_call.1} parent=5 // pred_check
        %p192 = pneg %p191
      $region30: #{tpu_custom_call.1} parent=5 // pred_check_branch
        %194 = sbr.rel (%p192) target = $region32
      $region31: #{tpu_custom_call.1} parent=5 // pred_region
        // Predicated region
        $region33: #{tpu_custom_call.1} parent=31 // pred_check
          %p195 = pneg %p46
        $region34: #{tpu_custom_call.1} parent=31 // pred_check_branch
          %197 = sbr.rel (%p195) target = $region36
        $region35: #{tpu_custom_call.1} parent=31 // pred_region
          %p198 = scmp.lt.s32.totalorder %s21, 1
          %s199 = scalar_select %p198, %s21, 1
          %s200 = smul.addr %s199, 2
          %s201 = smul.addr %s200, 8
          %s202 = scalar_lea.vmem %s0, %s201
        $region36: #{tpu_custom_call.1} parent=31 // pred_fallthru
          _
      $region32: #{tpu_custom_call.1} parent=5 // pred_fallthru
        _
      %p203 = scmp.le.s32.totalorder 1, %s14
      %p204 = scmp.lt.s32.totalorder %s14, 5
      %p205 = pnand %p203, %p204
      %p206 = pneg %p205
      // Predicated region
      $region37: #{tpu_custom_call.1} parent=5 // pred_check
        _
      $region38: #{tpu_custom_call.1} parent=5 // pred_check_branch
        %208 = sbr.rel (%p205) target = $region40
      $region39: #{tpu_custom_call.1} parent=5 // pred_region
        %s209 = ssub.s32 %s14, 1
        %p210 = scmp.lt.s32.totalorder %s23, 1
        %s211 = scalar_select %p210, %s23, 1
        %s212 = smul.addr %s211, 2
        %s213 = smul.addr %s212, 8
        %s214 = scalar_lea.vmem %s0, %s213
        %p215 = pneg %p52
        %p216 = pneg %p49
        %p217 = pneg %p73
        %p218 = pneg %p70
        %p219 = pneg %p94
        %p220 = pneg %p91
        %p221 = pneg %p115
        %p222 = pneg %p112
        %p223 = pneg %p136
        %p224 = pneg %p133
        %p225 = pneg %p164
        %p226 = pneg %p161
        %s227 = sand.u32 %s151, 1
        %s228 = scalar_lea.sflag [#allocation7], %s227
        %s229 = sand.u32 %s151, 1
        %s230 = smul.addr %s229, 8
        %s231 = scalar_lea.vmem [#allocation6], %s230
        %p232 = scmp.lt.s32.totalorder %s23, 1
        %s233 = scalar_select %p232, %s23, 1
        %s234 = smul.addr %s233, 2
        %s235 = smul.addr %s234, 8
        %s236 = scalar_lea.vmem %s0, %s235
        %p238 = scmp.eq.s32.totalorder %s24, 0
        // Predicated region
        $region41: #{tpu_custom_call.1} parent=39 // pred_check
          %p239 = pneg %p238
        $region42: #{tpu_custom_call.1} parent=39 // pred_check_branch
          %241 = sbr.rel (%p239) target = $region44
        $region43: #{tpu_custom_call.1} parent=39 // pred_region
          %v242 = vld [vmem:[%s236] sm:$0xff]
          %v243 = vld [vmem:[%s236 + $0x8] sm:$0xff]
          %v244 = vmul.f32 %v242, %v242
          %v245 = vmul.f32 %v243, %v243
          %vm246 = vcmask 261120
          %v247 = vsel %vm246, %v244, 0.0
          %248 = vadd.xlane.f32.xlu0 %v247
          %v249 = vpop.xlane.xlu0 %248
          %v250 = vsel %vm246, %v245, 0.0
          %251 = vadd.xlane.f32.xlu0 %v250
          %v252 = vpop.xlane.xlu0 %251
          %v253 = vrcp.pop 32.0
          %v254 = vmul.f32 32.0, %v253
          %v255 = vsub.f32 1.0, %v254
          %v256 = vmul.f32 %v253, %v255
          %v257 = vadd.f32 %v253, %v256
          %vm258 = vweird.f32 %v253
          %v259 = vsel %vm258, %v253, %v257
          %v260 = vmul.f32 %v249, %v259
          %v261 = vmul.f32 %v252, %v259
          %v262 = vadd.f32 %v260, 1.1920929e-07
          %v263 = vadd.f32 %v261, 1.1920929e-07
          %v264 = vrsqrt.pop %v262
          %v265 = vmul.f32 %v264, %v262
          %v266 = vmul.f32 %v265, %v264
          %v267 = vmul.f32 0.5, %v266
          %v268 = vsub.f32 1.5, %v267
          %v269 = vmul.f32 %v264, %v268
          %vm270 = vweird.f32 %v262
          %vm271 = vweird.f32 %v264
          %vm272 = vmor %vm270, %vm271
          %v273 = vsel %vm272, %v264, %v269
          %v274 = vrsqrt.pop %v263
          %v275 = vmul.f32 %v274, %v263
          %v276 = vmul.f32 %v275, %v274
          %v277 = vmul.f32 0.5, %v276
          %v278 = vsub.f32 1.5, %v277
          %v279 = vmul.f32 %v274, %v278
          %vm280 = vweird.f32 %v263
          %vm281 = vweird.f32 %v274
          %vm282 = vmor %vm280, %vm281
          %v283 = vsel %vm282, %v274, %v279
          %v284 = vmul.f32 %v242, %v273
          %v285 = vmul.f32 %v243, %v283
          %v286 = vmul.f32 %v284, 0.70710677
          %v287 = vmul.f32 %v285, 0.70710677
          %v288 = vpack.c.bf16 %v287, %v286
          %v289 = vld [vmem:[%s1] sm:$0xf]
          %v290 = vld [vmem:[%s1 + $0x4] sm:$0xf]
          %v291 = vld [vmem:[%s1 + $0x8] sm:$0xf]
          %v292 = vld [vmem:[%s1 + $0xc] sm:$0xf]
          %v297 = vunpack.c.l.b16 %v289
          %v298 = vunpack.c.l.b16 %v290
          %v299 = vunpack.c.l.b16 %v291
          %v300 = vunpack.c.l.b16 %v292
          %v301 = vpack.c.b16 %v298, %v297
          %v302 = vpack.c.b16 %v300, %v299
          %v306 = vsel %vm246, %v288, 0
          %308 = vmatpush.bf16.msra.mxu0 0
          %309 = vmatpush.bf16.msra.mxu0 0
          %310 = vmatpush.bf16.msra.mxu0 0
          %311 = vmatpush.bf16.msra.mxu0 0
          %312 = vmatpush.bf16.msra.mxu0 0
          %313 = vmatpush.bf16.msra.mxu0 0
          %314 = vmatpush.bf16.msra.mxu0 %v302
          %315 = vmatpush.bf16.msra.mxu0 %v301
          %316 = vmatmul.bf16.gmra.mxu0 %v306
          %v317 = vpop.f32.mrf.mxu0
          %v318 = vadd.f32 0.0, %v317
          %v319 = vpop.f32.mrf.mxu0
          %v320 = vadd.f32 0.0, %v319
          %321 = vdwg.mxu0
          %v322 = vmul.f32 %v318, 0.35355338
          %v323 = vmul.f32 %v320, 0.35355338
          %v324 = vpack.c.bf16 %v322, %v322
          %v325 = vpack.c.bf16 %v323, %v323
          %vm326 = vcmask 257024
          %327 = vst.msk [vmem:[#allocation2] sm:$0xf] %vm326, %v324
          %328 = vst.msk [vmem:[#allocation2 + $0x4] sm:$0xf] %vm326, %v325
          %v329 = vld [vmem:[%s1] sm:$0xf]
          %v330 = vld [vmem:[%s1 + $0x4] sm:$0xf]
          %v331 = vld [vmem:[%s1 + $0x8] sm:$0xf]
          %v332 = vld [vmem:[%s1 + $0xc] sm:$0xf]
          %v337 = vunpack.c.l.b16 %v329
          %v338 = vunpack.c.l.b16 %v330
          %v339 = vunpack.c.l.b16 %v331
          %v340 = vunpack.c.l.b16 %v332
          %v341 = vpack.c.b16 %v338, %v337
          %v342 = vpack.c.b16 %v340, %v339
          %343 = vrot.lane.b32.xlu0 %v341, 96
          %v344 = vpop.permute.xlu0 %343
          %345 = vrot.lane.b32.xlu0 %v342, 96
          %v346 = vpop.permute.xlu0 %345
          %349 = vmatpush.bf16.msra.mxu0 0
          %350 = vmatpush.bf16.msra.mxu0 0
          %351 = vmatpush.bf16.msra.mxu0 0
          %352 = vmatpush.bf16.msra.mxu0 0
          %353 = vmatpush.bf16.msra.mxu0 0
          %354 = vmatpush.bf16.msra.mxu0 0
          %355 = vmatpush.bf16.msra.mxu0 %v346
          %356 = vmatpush.bf16.msra.mxu0 %v344
          %357 = vmatmul.bf16.gmra.mxu0 %v306
          %v358 = vpop.f32.mrf.mxu0
          %v359 = vadd.f32 0.0, %v358
          %v360 = vpop.f32.mrf.mxu0
          %v361 = vadd.f32 0.0, %v360
          %362 = vdwg.mxu0
          %v363 = vpack.c.bf16 %v359, %v359
          %v364 = vpack.c.bf16 %v361, %v361
          %365 = vst.msk [vmem:[#allocation3] sm:$0xf] %vm326, %v363
          %366 = vst.msk [vmem:[#allocation3 + $0x4] sm:$0xf] %vm326, %v364
          %v367 = vld [vmem:[%s1] sm:$0xf]
          %v368 = vld [vmem:[%s1 + $0x4] sm:$0xf]
          %v369 = vld [vmem:[%s1 + $0x8] sm:$0xf]
          %v370 = vld [vmem:[%s1 + $0xc] sm:$0xf]
          %v375 = vunpack.c.l.b16 %v367
          %v376 = vunpack.c.l.b16 %v368
          %v377 = vunpack.c.l.b16 %v369
          %v378 = vunpack.c.l.b16 %v370
          %v379 = vpack.c.b16 %v376, %v375
          %v380 = vpack.c.b16 %v378, %v377
          %381 = vrot.lane.b32.xlu0 %v379, 64
          %v382 = vpop.permute.xlu0 %381
          %383 = vrot.lane.b32.xlu0 %v380, 64
          %v384 = vpop.permute.xlu0 %383
          %387 = vmatpush.bf16.msra.mxu0 0
          %388 = vmatpush.bf16.msra.mxu0 0
          %389 = vmatpush.bf16.msra.mxu0 0
          %390 = vmatpush.bf16.msra.mxu0 0
          %391 = vmatpush.bf16.msra.mxu0 0
          %392 = vmatpush.bf16.msra.mxu0 0
          %393 = vmatpush.bf16.msra.mxu0 %v384
          %394 = vmatpush.bf16.msra.mxu0 %v382
          %395 = vmatmul.bf16.gmra.mxu0 %v306
          %v396 = vpop.f32.mrf.mxu0
          %v397 = vadd.f32 0.0, %v396
          %v398 = vpop.f32.mrf.mxu0
          %v399 = vadd.f32 0.0, %v398
          %400 = vdwg.mxu0
          %v401 = vpack.c.bf16 %v397, %v397
          %v402 = vpack.c.bf16 %v399, %v399
          %403 = vst.msk [vmem:[#allocation4] sm:$0xf] %vm326, %v401
          %404 = vst.msk [vmem:[#allocation4 + $0x4] sm:$0xf] %vm326, %v402
        $region44: #{tpu_custom_call.1} parent=39 // pred_fallthru
          _
        %s405 = smul.u32 %s24, 8
        %s406 = scalar_lea.vmem %s236, %s405
        %v407 = vld [vmem:[%s406] sm:$0xff]
        %s408 = sshra.s32 %s405, 3
        %s409 = sand.u32 %s405, 7
        %s410 = smul.addr %s408, 4
        %s411 = scalar_lea.vmem [#allocation2], %s410
        %v412 = vld [vmem:[%s411] sm:$0xf]
        %s413 = sadd.s32 %s24, 1
        %v414 = vlaneseq
        %v415 = vshrl.u32 %v414, 7
        %v416 = vstv %s405
        %v417 = vadd.s32 %v416, %v415
        %v418 = vlaneseq
        %v419 = vand.u32 %v418, 127
        // While loop
        $region45: #{tpu_custom_call.1} parent=39 // loop_pre_header
          _
        $region46: #{tpu_custom_call.1} parent=39 // loop_header
          %s421 = sphi 0, %s423
          %p422 = scmp.ge.s32.totalorder %s421, %s413
          %v426 = vphi -1e+30, %v465
          %v427 = vphi 0.0, %v476
          %v428 = vphi 0.0, %v499
        $region47: #{tpu_custom_call.1} parent=39 // loop_header_branch
          %425 = sbr.rel (%p422) target = $region51
        $region48: #{tpu_custom_call.1} parent=39 // loop_body
          %s429 = smul.u32 %s421, 8
          %s430 = sshra.s32 %s429, 3
          %s431 = sand.u32 %s429, 7
          %s432 = smul.addr %s430, 4
          %s433 = scalar_lea.vmem [#allocation3], %s432
          %v434 = vld [vmem:[%s433] sm:$0xf]
          %s435 = smul.addr %s430, 4
          %s436 = scalar_lea.vmem [#allocation4], %s435
          %v437 = vld [vmem:[%s436] sm:$0xf]
          %vm438 = vcmask 64512
          %v440 = vsel %vm438, %v412, 0
          %v443 = vsel %vm438, %v434, 0
          %445 = vmatpush.bf16.xpose.msra.mxu0 0
          %446 = vmatpush.bf16.xpose.msra.mxu0 0
          %447 = vmatpush.bf16.xpose.msra.mxu0 0
          %448 = vmatpush.bf16.xpose.msra.mxu0 0
          %449 = vmatpush.bf16.xpose.msra.mxu0 0
          %450 = vmatpush.bf16.xpose.msra.mxu0 0
          %451 = vmatpush.bf16.xpose.msra.mxu0 0
          %452 = vmatpush.bf16.xpose.msra.mxu0 %v443
          %453 = vmatmul.bf16.gmra.mxu0 %v440
          %v454 = vpop.f32.mrf.mxu0
          %v455 = vadd.f32 0.0, %v454
          %v456 = vpop.f32.mrf.mxu0
          %457 = vdwg.mxu0
          %v458 = vstv %s429
          %v459 = vadd.s32 %v458, %v419
          %vm460 = vcmp.ge.s32.totalorder %v417, %v459
          %v461 = vsel %vm460, %v455, -1e+30
          %v462 = vsel %vm438, %v461, -inf
          %463 = vmax.xlane.f32.xlu0 %v462
          %v464 = vpop.xlane.xlu0 %463
          %v465 = vmax.f32 %v426, %v464
          %v466 = vsub.f32 %v426, %v465
          %v467 = vmul.f32 %v466, 1.442695
          %v468 = vpow.pop %v467
          %v469 = vsub.f32 %v461, %v465
          %v470 = vmul.f32 %v469, 1.442695
          %v471 = vpow.pop %v470
          %v472 = vmul.f32 %v468, %v427
          %v473 = vsel %vm438, %v471, 0.0
          %474 = vadd.xlane.f32.xlu0 %v473
          %v475 = vpop.xlane.xlu0 %474
          %v476 = vadd.f32 %v472, %v475
          %v477 = vmul.f32 %v468, %v428
          %v478 = vpack.c.bf16 %v471, %v471
          %v480 = vsel %vm438, %v478, 0
          %vm482 = vcmask 1043456
          %v484 = vsel %vm482, %v437, 0
          %486 = vmatpush.bf16.msra.mxu0 0
          %487 = vmatpush.bf16.msra.mxu0 0
          %488 = vmatpush.bf16.msra.mxu0 0
          %489 = vmatpush.bf16.msra.mxu0 0
          %490 = vmatpush.bf16.msra.mxu0 0
          %491 = vmatpush.bf16.msra.mxu0 0
          %492 = vmatpush.bf16.msra.mxu0 0
          %493 = vmatpush.bf16.msra.mxu0 %v484
          %494 = vmatmul.bf16.gmra.mxu0 %v480
          %v495 = vpop.f32.mrf.mxu0
          %v496 = vadd.f32 0.0, %v495
          %v497 = vpop.f32.mrf.mxu0
          %498 = vdwg.mxu0
          %v499 = vadd.f32 %v477, %v496
        $region49: #{tpu_custom_call.1} parent=39 // loop_footer
          %s423 = sadd.s32 %s421, 1
        $region50: #{tpu_custom_call.1} parent=39 // loop_footer_branch
          %420 = sbr.rel target = $region46
        $region51: #{tpu_custom_call.1} parent=39 // loop_exit
          _
        %v500 = vrcp.pop %v427
        %v501 = vmul.f32 %v428, %v500
        %v502 = vpack.c.bf16 %v501, %v501
        %vm503 = vcmask 60416
        %504 = vst.msk [vmem:[#allocation5] sm:$0xf] %vm503, %v502
        // While loop
        $region52: #{tpu_custom_call.1} parent=39 // loop_pre_header
          _
        $region53: #{tpu_custom_call.1} parent=39 // loop_header
          %s506 = sphi 0, %s508
          %p507 = scmp.ge.s32.totalorder %s506, %s413
          %v511 = vphi -1e+30, %v560
          %v512 = vphi 0.0, %v571
          %v513 = vphi 0.0, %v599
        $region54: #{tpu_custom_call.1} parent=39 // loop_header_branch
          %510 = sbr.rel (%p507) target = $region58
        $region55: #{tpu_custom_call.1} parent=39 // loop_body
          %s514 = smul.u32 %s506, 8
          %s515 = sshra.s32 %s514, 3
          %s516 = sand.u32 %s514, 7
          %s517 = smul.addr %s515, 4
          %s518 = scalar_lea.vmem [#allocation3], %s517
          %v519 = vld [vmem:[%s518] sm:$0xf]
          %s520 = smul.addr %s515, 4
          %s521 = scalar_lea.vmem [#allocation4], %s520
          %v522 = vld [vmem:[%s521] sm:$0xf]
          %v524 = vunpack.c.l.b16 %v412
          %v525 = vpack.c.b16 %v524, %v524
          %526 = vrot.lane.b32.xlu0 %v525, 120
          %v527 = vpop.permute.xlu0 %526
          %v529 = vunpack.c.l.b16 %v519
          %v530 = vpack.c.b16 %v529, %v529
          %531 = vrot.lane.b32.xlu0 %v530, 120
          %v532 = vpop.permute.xlu0 %531
          %vm533 = vcmask 64512
          %v535 = vsel %vm533, %v527, 0
          %v538 = vsel %vm533, %v532, 0
          %540 = vmatpush.bf16.xpose.msra.mxu0 0
          %541 = vmatpush.bf16.xpose.msra.mxu0 0
          %542 = vmatpush.bf16.xpose.msra.mxu0 0
          %543 = vmatpush.bf16.xpose.msra.mxu0 0
          %544 = vmatpush.bf16.xpose.msra.mxu0 0
          %545 = vmatpush.bf16.xpose.msra.mxu0 0
          %546 = vmatpush.bf16.xpose.msra.mxu0 0
          %547 = vmatpush.bf16.xpose.msra.mxu0 %v538
          %548 = vmatmul.bf16.gmra.mxu0 %v535
          %v549 = vpop.f32.mrf.mxu0
          %v550 = vadd.f32 0.0, %v549
          %v551 = vpop.f32.mrf.mxu0
          %552 = vdwg.mxu0
          %v553 = vstv %s514
          %v554 = vadd.s32 %v553, %v419
          %vm555 = vcmp.ge.s32.totalorder %v417, %v554
          %v556 = vsel %vm555, %v550, -1e+30
          %v557 = vsel %vm533, %v556, -inf
          %558 = vmax.xlane.f32.xlu0 %v557
          %v559 = vpop.xlane.xlu0 %558
          %v560 = vmax.f32 %v511, %v559
          %v561 = vsub.f32 %v511, %v560
          %v562 = vmul.f32 %v561, 1.442695
          %v563 = vpow.pop %v562
          %v564 = vsub.f32 %v556, %v560
          %v565 = vmul.f32 %v564, 1.442695
          %v566 = vpow.pop %v565
          %v567 = vmul.f32 %v563, %v512
          %v568 = vsel %vm533, %v566, 0.0
          %569 = vadd.xlane.f32.xlu0 %v568
          %v570 = vpop.xlane.xlu0 %569
          %v571 = vadd.f32 %v567, %v570
          %v572 = vmul.f32 %v563, %v513
          %v573 = vpack.c.bf16 %v566, %v566
          %v575 = vunpack.c.l.b16 %v522
          %v576 = vpack.c.b16 %v575, %v575
          %577 = vrot.lane.b32.xlu0 %v576, 120
          %v578 = vpop.permute.xlu0 %577
          %v580 = vsel %vm533, %v573, 0
          %vm582 = vcmask 1043456
          %v584 = vsel %vm582, %v578, 0
          %586 = vmatpush.bf16.msra.mxu0 0
          %587 = vmatpush.bf16.msra.mxu0 0
          %588 = vmatpush.bf16.msra.mxu0 0
          %589 = vmatpush.bf16.msra.mxu0 0
          %590 = vmatpush.bf16.msra.mxu0 0
          %591 = vmatpush.bf16.msra.mxu0 0
          %592 = vmatpush.bf16.msra.mxu0 0
          %593 = vmatpush.bf16.msra.mxu0 %v584
          %594 = vmatmul.bf16.gmra.mxu0 %v580
          %v595 = vpop.f32.mrf.mxu0
          %v596 = vadd.f32 0.0, %v595
          %v597 = vpop.f32.mrf.mxu0
          %598 = vdwg.mxu0
          %v599 = vadd.f32 %v572, %v596
        $region56: #{tpu_custom_call.1} parent=39 // loop_footer
          %s508 = sadd.s32 %s506, 1
        $region57: #{tpu_custom_call.1} parent=39 // loop_footer_branch
          %505 = sbr.rel target = $region53
        $region58: #{tpu_custom_call.1} parent=39 // loop_exit
          _
        %v600 = vrcp.pop %v512
        %v601 = vmul.f32 %v513, %v600
        %v602 = vpack.c.bf16 %v601, %v601
        %604 = vrot.lane.b32.xlu0 %v602, 8
        %v605 = vpop.permute.xlu0 %604
        %vm607 = vcmask 126016
        %608 = vst.msk [vmem:[#allocation5] sm:$0xf] %vm607, %v605
        // While loop
        $region59: #{tpu_custom_call.1} parent=39 // loop_pre_header
          _
        $region60: #{tpu_custom_call.1} parent=39 // loop_header
          %s610 = sphi 0, %s612
          %p611 = scmp.ge.s32.totalorder %s610, %s413
          %v615 = vphi -1e+30, %v664
          %v616 = vphi 0.0, %v675
          %v617 = vphi 0.0, %v703
        $region61: #{tpu_custom_call.1} parent=39 // loop_header_branch
          %614 = sbr.rel (%p611) target = $region65
        $region62: #{tpu_custom_call.1} parent=39 // loop_body
          %s618 = smul.u32 %s610, 8
          %s619 = sshra.s32 %s618, 3
          %s620 = sand.u32 %s618, 7
          %s621 = smul.addr %s619, 4
          %s622 = scalar_lea.vmem [#allocation3], %s621
          %v623 = vld [vmem:[%s622] sm:$0xf]
          %s624 = smul.addr %s619, 4
          %s625 = scalar_lea.vmem [#allocation4], %s624
          %v626 = vld [vmem:[%s625] sm:$0xf]
          %v628 = vunpack.c.l.b16 %v412
          %v629 = vpack.c.b16 %v628, %v628
          %630 = vrot.lane.b32.xlu0 %v629, 112
          %v631 = vpop.permute.xlu0 %630
          %v633 = vunpack.c.l.b16 %v623
          %v634 = vpack.c.b16 %v633, %v633
          %635 = vrot.lane.b32.xlu0 %v634, 112
          %v636 = vpop.permute.xlu0 %635
          %vm637 = vcmask 64512
          %v639 = vsel %vm637, %v631, 0
          %v642 = vsel %vm637, %v636, 0
          %644 = vmatpush.bf16.xpose.msra.mxu0 0
          %645 = vmatpush.bf16.xpose.msra.mxu0 0
          %646 = vmatpush.bf16.xpose.msra.mxu0 0
          %647 = vmatpush.bf16.xpose.msra.mxu0 0
          %648 = vmatpush.bf16.xpose.msra.mxu0 0
          %649 = vmatpush.bf16.xpose.msra.mxu0 0
          %650 = vmatpush.bf16.xpose.msra.mxu0 0
          %651 = vmatpush.bf16.xpose.msra.mxu0 %v642
          %652 = vmatmul.bf16.gmra.mxu0 %v639
          %v653 = vpop.f32.mrf.mxu0
          %v654 = vadd.f32 0.0, %v653
          %v655 = vpop.f32.mrf.mxu0
          %656 = vdwg.mxu0
          %v657 = vstv %s618
          %v658 = vadd.s32 %v657, %v419
          %vm659 = vcmp.ge.s32.totalorder %v417, %v658
          %v660 = vsel %vm659, %v654, -1e+30
          %v661 = vsel %vm637, %v660, -inf
          %662 = vmax.xlane.f32.xlu0 %v661
          %v663 = vpop.xlane.xlu0 %662
          %v664 = vmax.f32 %v615, %v663
          %v665 = vsub.f32 %v615, %v664
          %v666 = vmul.f32 %v665, 1.442695
          %v667 = vpow.pop %v666
          %v668 = vsub.f32 %v660, %v664
          %v669 = vmul.f32 %v668, 1.442695
          %v670 = vpow.pop %v669
          %v671 = vmul.f32 %v667, %v616
          %v672 = vsel %vm637, %v670, 0.0
          %673 = vadd.xlane.f32.xlu0 %v672
          %v674 = vpop.xlane.xlu0 %673
          %v675 = vadd.f32 %v671, %v674
          %v676 = vmul.f32 %v667, %v617
          %v677 = vpack.c.bf16 %v670, %v670
          %v679 = vunpack.c.l.b16 %v626
          %v680 = vpack.c.b16 %v679, %v679
          %681 = vrot.lane.b32.xlu0 %v680, 112
          %v682 = vpop.permute.xlu0 %681
          %v684 = vsel %vm637, %v677, 0
          %vm686 = vcmask 1043456
          %v688 = vsel %vm686, %v682, 0
          %690 = vmatpush.bf16.msra.mxu0 0
          %691 = vmatpush.bf16.msra.mxu0 0
          %692 = vmatpush.bf16.msra.mxu0 0
          %693 = vmatpush.bf16.msra.mxu0 0
          %694 = vmatpush.bf16.msra.mxu0 0
          %695 = vmatpush.bf16.msra.mxu0 0
          %696 = vmatpush.bf16.msra.mxu0 0
          %697 = vmatpush.bf16.msra.mxu0 %v688
          %698 = vmatmul.bf16.gmra.mxu0 %v684
          %v699 = vpop.f32.mrf.mxu0
          %v700 = vadd.f32 0.0, %v699
          %v701 = vpop.f32.mrf.mxu0
          %702 = vdwg.mxu0
          %v703 = vadd.f32 %v676, %v700
        $region63: #{tpu_custom_call.1} parent=39 // loop_footer
          %s612 = sadd.s32 %s610, 1
        $region64: #{tpu_custom_call.1} parent=39 // loop_footer_branch
          %609 = sbr.rel target = $region60
        $region65: #{tpu_custom_call.1} parent=39 // loop_exit
          _
        %v704 = vrcp.pop %v616
        %v705 = vmul.f32 %v617, %v704
        %v706 = vpack.c.bf16 %v705, %v705
        %708 = vrot.lane.b32.xlu0 %v706, 16
        %v709 = vpop.permute.xlu0 %708
        %vm711 = vcmask 191616
        %712 = vst.msk [vmem:[#allocation5] sm:$0xf] %vm711, %v709
        // While loop
        $region66: #{tpu_custom_call.1} parent=39 // loop_pre_header
          _
        $region67: #{tpu_custom_call.1} parent=39 // loop_header
          %s714 = sphi 0, %s716
          %p715 = scmp.ge.s32.totalorder %s714, %s413
          %v719 = vphi -1e+30, %v768
          %v720 = vphi 0.0, %v779
          %v721 = vphi 0.0, %v807
        $region68: #{tpu_custom_call.1} parent=39 // loop_header_branch
          %718 = sbr.rel (%p715) target = $region72
        $region69: #{tpu_custom_call.1} parent=39 // loop_body
          %s722 = smul.u32 %s714, 8
          %s723 = sshra.s32 %s722, 3
          %s724 = sand.u32 %s722, 7
          %s725 = smul.addr %s723, 4
          %s726 = scalar_lea.vmem [#allocation3], %s725
          %v727 = vld [vmem:[%s726] sm:$0xf]
          %s728 = smul.addr %s723, 4
          %s729 = scalar_lea.vmem [#allocation4], %s728
          %v730 = vld [vmem:[%s729] sm:$0xf]
          %v732 = vunpack.c.l.b16 %v412
          %v733 = vpack.c.b16 %v732, %v732
          %734 = vrot.lane.b32.xlu0 %v733, 104
          %v735 = vpop.permute.xlu0 %734
          %v737 = vunpack.c.l.b16 %v727
          %v738 = vpack.c.b16 %v737, %v737
          %739 = vrot.lane.b32.xlu0 %v738, 104
          %v740 = vpop.permute.xlu0 %739
          %vm741 = vcmask 64512
          %v743 = vsel %vm741, %v735, 0
          %v746 = vsel %vm741, %v740, 0
          %748 = vmatpush.bf16.xpose.msra.mxu0 0
          %749 = vmatpush.bf16.xpose.msra.mxu0 0
          %750 = vmatpush.bf16.xpose.msra.mxu0 0
          %751 = vmatpush.bf16.xpose.msra.mxu0 0
          %752 = vmatpush.bf16.xpose.msra.mxu0 0
          %753 = vmatpush.bf16.xpose.msra.mxu0 0
          %754 = vmatpush.bf16.xpose.msra.mxu0 0
          %755 = vmatpush.bf16.xpose.msra.mxu0 %v746
          %756 = vmatmul.bf16.gmra.mxu0 %v743
          %v757 = vpop.f32.mrf.mxu0
          %v758 = vadd.f32 0.0, %v757
          %v759 = vpop.f32.mrf.mxu0
          %760 = vdwg.mxu0
          %v761 = vstv %s722
          %v762 = vadd.s32 %v761, %v419
          %vm763 = vcmp.ge.s32.totalorder %v417, %v762
          %v764 = vsel %vm763, %v758, -1e+30
          %v765 = vsel %vm741, %v764, -inf
          %766 = vmax.xlane.f32.xlu0 %v765
          %v767 = vpop.xlane.xlu0 %766
          %v768 = vmax.f32 %v719, %v767
          %v769 = vsub.f32 %v719, %v768
          %v770 = vmul.f32 %v769, 1.442695
          %v771 = vpow.pop %v770
          %v772 = vsub.f32 %v764, %v768
          %v773 = vmul.f32 %v772, 1.442695
          %v774 = vpow.pop %v773
          %v775 = vmul.f32 %v771, %v720
          %v776 = vsel %vm741, %v774, 0.0
          %777 = vadd.xlane.f32.xlu0 %v776
          %v778 = vpop.xlane.xlu0 %777
          %v779 = vadd.f32 %v775, %v778
          %v780 = vmul.f32 %v771, %v721
          %v781 = vpack.c.bf16 %v774, %v774
          %v783 = vunpack.c.l.b16 %v730
          %v784 = vpack.c.b16 %v783, %v783
          %785 = vrot.lane.b32.xlu0 %v784, 104
          %v786 = vpop.permute.xlu0 %785
          %v788 = vsel %vm741, %v781, 0
          %vm790 = vcmask 1043456
          %v792 = vsel %vm790, %v786, 0
          %794 = vmatpush.bf16.msra.mxu0 0
          %795 = vmatpush.bf16.msra.mxu0 0
          %796 = vmatpush.bf16.msra.mxu0 0
          %797 = vmatpush.bf16.msra.mxu0 0
          %798 = vmatpush.bf16.msra.mxu0 0
          %799 = vmatpush.bf16.msra.mxu0 0
          %800 = vmatpush.bf16.msra.mxu0 0
          %801 = vmatpush.bf16.msra.mxu0 %v792
          %802 = vmatmul.bf16.gmra.mxu0 %v788
          %v803 = vpop.f32.mrf.mxu0
          %v804 = vadd.f32 0.0, %v803
          %v805 = vpop.f32.mrf.mxu0
          %806 = vdwg.mxu0
          %v807 = vadd.f32 %v780, %v804
        $region70: #{tpu_custom_call.1} parent=39 // loop_footer
          %s716 = sadd.s32 %s714, 1
        $region71: #{tpu_custom_call.1} parent=39 // loop_footer_branch
          %713 = sbr.rel target = $region67
        $region72: #{tpu_custom_call.1} parent=39 // loop_exit
          _
        %v808 = vrcp.pop %v720
        %v809 = vmul.f32 %v721, %v808
        %v810 = vpack.c.bf16 %v809, %v809
        %812 = vrot.lane.b32.xlu0 %v810, 24
        %v813 = vpop.permute.xlu0 %812
        %vm815 = vcmask 257216
        %816 = vst.msk [vmem:[#allocation5] sm:$0xf] %vm815, %v813
        %v817 = vld [vmem:[#allocation5] sm:$0xf]
        %v818 = vld [vmem:[%s2] sm:$0xf]
        %v819 = vld [vmem:[%s2 + $0x4] sm:$0xf]
        %v820 = vld [vmem:[%s2 + $0x8] sm:$0xf]
        %v821 = vld [vmem:[%s2 + $0xc] sm:$0xf]
        %v826 = vunpack.c.l.b16 %v818
        %v827 = vunpack.c.l.b16 %v819
        %v828 = vunpack.c.l.b16 %v820
        %v829 = vunpack.c.l.b16 %v821
        %v830 = vpack.c.b16 %v827, %v826
        %v831 = vpack.c.b16 %v829, %v828
        %vm834 = vcmask 261120
        %v836 = vsel %vm834, %v817, 0
        %838 = vmatpush.bf16.msra.mxu0 0
        %839 = vmatpush.bf16.msra.mxu0 0
        %840 = vmatpush.bf16.msra.mxu0 0
        %841 = vmatpush.bf16.msra.mxu0 0
        %842 = vmatpush.bf16.msra.mxu0 0
        %843 = vmatpush.bf16.msra.mxu0 0
        %844 = vmatpush.bf16.msra.mxu0 %v831
        %845 = vmatpush.bf16.msra.mxu0 %v830
        %846 = vmatmul.bf16.gmra.mxu0 %v836
        %v847 = vpop.f32.mrf.mxu0
        %v848 = vadd.f32 0.0, %v847
        %v849 = vpop.f32.mrf.mxu0
        %850 = vdwg.mxu0
        %v851 = vadd.f32 %v407, %v848
        %v852 = vmul.f32 %v851, %v851
        %v853 = vsel %vm834, %v852, 0.0
        %854 = vadd.xlane.f32.xlu0 %v853
        %v855 = vpop.xlane.xlu0 %854
        %v856 = vrcp.pop 32.0
        %v857 = vmul.f32 32.0, %v856
        %v858 = vsub.f32 1.0, %v857
        %v859 = vmul.f32 %v856, %v858
        %v860 = vadd.f32 %v856, %v859
        %vm861 = vweird.f32 %v856
        %v862 = vsel %vm861, %v856, %v860
        %v863 = vmul.f32 %v855, %v862
        %v864 = vadd.f32 %v863, 1.1920929e-07
        %v865 = vrsqrt.pop %v864
        %v866 = vmul.f32 %v865, %v864
        %v867 = vmul.f32 %v866, %v865
        %v868 = vmul.f32 0.5, %v867
        %v869 = vsub.f32 1.5, %v868
        %v870 = vmul.f32 %v865, %v869
        %vm871 = vweird.f32 %v864
        %vm872 = vweird.f32 %v865
        %vm873 = vmor %vm871, %vm872
        %v874 = vsel %vm873, %v865, %v870
        %v875 = vmul.f32 %v851, %v874
        %v876 = vmul.f32 %v875, 0.70710677
        %v877 = vpack.c.bf16 %v876, %v876
        %v878 = vld [vmem:[%s3] sm:$0xf]
        %v879 = vld [vmem:[%s3 + $0x4] sm:$0xf]
        %v880 = vld [vmem:[%s3 + $0x8] sm:$0xf]
        %v881 = vld [vmem:[%s3 + $0xc] sm:$0xf]
        %v886 = vunpack.c.l.b16 %v878
        %v887 = vunpack.c.l.b16 %v879
        %v888 = vunpack.c.l.b16 %v880
        %v889 = vunpack.c.l.b16 %v881
        %v890 = vpack.c.b16 %v887, %v886
        %v891 = vpack.c.b16 %v889, %v888
        %v895 = vsel %vm834, %v877, 0
        %897 = vmatpush.bf16.msra.mxu0 0
        %898 = vmatpush.bf16.msra.mxu0 0
        %899 = vmatpush.bf16.msra.mxu0 0
        %900 = vmatpush.bf16.msra.mxu0 0
        %901 = vmatpush.bf16.msra.mxu0 0
        %902 = vmatpush.bf16.msra.mxu0 0
        %903 = vmatpush.bf16.msra.mxu0 %v891
        %904 = vmatpush.bf16.msra.mxu0 %v890
        %905 = vmatmul.bf16.gmra.mxu0 %v895
        %v906 = vpop.f32.mrf.mxu0
        %v907 = vadd.f32 0.0, %v906
        %v908 = vpop.f32.mrf.mxu0
        %909 = vdwg.mxu0
        %v910 = vmax.f32 %v907, 0.0
        %v911 = vmul.f32 %v910, %v910
        %v912 = vpack.c.bf16 %v911, %v911
        %v913 = vld [vmem:[%s4] sm:$0xf]
        %v914 = vld [vmem:[%s4 + $0x4] sm:$0xf]
        %v915 = vld [vmem:[%s4 + $0x8] sm:$0xf]
        %v916 = vld [vmem:[%s4 + $0xc] sm:$0xf]
        %v917 = vld [vmem:[%s4 + $0x10] sm:$0xf]
        %v918 = vld [vmem:[%s4 + $0x14] sm:$0xf]
        %v919 = vld [vmem:[%s4 + $0x18] sm:$0xf]
        %v920 = vld [vmem:[%s4 + $0x1c] sm:$0xf]
        %v921 = vld [vmem:[%s4 + $0x20] sm:$0xf]
        %v922 = vld [vmem:[%s4 + $0x24] sm:$0xf]
        %v923 = vld [vmem:[%s4 + $0x28] sm:$0xf]
        %v924 = vld [vmem:[%s4 + $0x2c] sm:$0xf]
        %v925 = vld [vmem:[%s4 + $0x30] sm:$0xf]
        %v926 = vld [vmem:[%s4 + $0x34] sm:$0xf]
        %v927 = vld [vmem:[%s4 + $0x38] sm:$0xf]
        %v928 = vld [vmem:[%s4 + $0x3c] sm:$0xf]
        %v945 = vunpack.c.l.b16 %v913
        %v946 = vunpack.c.l.b16 %v914
        %v947 = vunpack.c.l.b16 %v915
        %v948 = vunpack.c.l.b16 %v916
        %v949 = vunpack.c.l.b16 %v917
        %v950 = vunpack.c.l.b16 %v918
        %v951 = vunpack.c.l.b16 %v919
        %v952 = vunpack.c.l.b16 %v920
        %v953 = vunpack.c.l.b16 %v921
        %v954 = vunpack.c.l.b16 %v922
        %v955 = vunpack.c.l.b16 %v923
        %v956 = vunpack.c.l.b16 %v924
        %v957 = vunpack.c.l.b16 %v925
        %v958 = vunpack.c.l.b16 %v926
        %v959 = vunpack.c.l.b16 %v927
        %v960 = vunpack.c.l.b16 %v928
        %v961 = vpack.c.b16 %v946, %v945
        %v962 = vpack.c.b16 %v948, %v947
        %v963 = vpack.c.b16 %v950, %v949
        %v964 = vpack.c.b16 %v952, %v951
        %v965 = vpack.c.b16 %v954, %v953
        %v966 = vpack.c.b16 %v956, %v955
        %v967 = vpack.c.b16 %v958, %v957
        %v968 = vpack.c.b16 %v960, %v959
        %977 = vmatpush.bf16.msra.mxu0 %v968
        %978 = vmatpush.bf16.msra.mxu0 %v967
        %979 = vmatpush.bf16.msra.mxu0 %v966
        %980 = vmatpush.bf16.msra.mxu0 %v965
        %981 = vmatpush.bf16.msra.mxu0 %v964
        %982 = vmatpush.bf16.msra.mxu0 %v963
        %983 = vmatpush.bf16.msra.mxu0 %v962
        %984 = vmatpush.bf16.msra.mxu0 %v961
        %985 = vmatmul.bf16.gmra.mxu0 %v912
        %v986 = vpop.f32.mrf.mxu0
        %v987 = vadd.f32 0.0, %v986
        %v988 = vpop.f32.mrf.mxu0
        %989 = vdwg.mxu0
        %v990 = vadd.f32 %v851, %v987
        %991 = vst.msk [vmem:[%s231] sm:$0xff] %vm834, %v990
        %s992 = sand.u32 %s151, 1
        %s993 = scalar_lea.sflag [#allocation7], %s992
        %s994 = sand.u32 %s151, 1
        %s995 = smul.addr %s994, 8
        %s996 = scalar_lea.vmem [#allocation6], %s995
        // Predicated region
        $region73: #{tpu_custom_call.1} parent=39 // pred_check
          %p997 = pneg %p161
        $region74: #{tpu_custom_call.1} parent=39 // pred_check_branch
          %999 = sbr.rel (%p997) target = $region76
        $region75: #{tpu_custom_call.1} parent=39 // pred_region
          %1001 = vsyncadd %s993, 0
          %s1002 = smul.addr %s23, 2
          %s1003 = sadd.s32 %s24, %s1002
          %s1004 = smul.addr %s1003, 8
          %s1005 = scalar_lea.hbm %s5, %s1004
          %s1007 = sshll.u32 %s996, 4
          %s1008 = int_to_ptr.vmem [resolvable:$true] %s1007
          %s1009 = sshll.u32 %s1005, 4
          %s1010 = int_to_ptr.hbm [resolvable:$true] %s1009
          %1012 = dma.vmem_to_hbm [thread:$0]  %s1008, 128, %s1010, %s993
        $region76: #{tpu_custom_call.1} parent=39 // pred_fallthru
          _
      $region40: #{tpu_custom_call.1} parent=5 // pred_fallthru
        _
      %p1013 = scmp.le.s32.totalorder 2, %s14
      // Predicated region
      $region77: #{tpu_custom_call.1} parent=5 // pred_check
        %p1014 = pneg %p1013
      $region78: #{tpu_custom_call.1} parent=5 // pred_check_branch
        %1016 = sbr.rel (%p1014) target = $region80
      $region79: #{tpu_custom_call.1} parent=5 // pred_region
        %s1017 = ssub.s32 %s14, 2
        // Predicated region
        $region81: #{tpu_custom_call.1} parent=79 // pred_check
          %p1018 = pneg %p167
        $region82: #{tpu_custom_call.1} parent=79 // pred_check_branch
          %1020 = sbr.rel (%p1018) target = $region84
        $region83: #{tpu_custom_call.1} parent=79 // pred_region
          %s1021 = sand.u32 %s152, 1
          %s1022 = scalar_lea.sflag [#allocation7], %s1021
          %s1023 = sand.u32 %s152, 1
          %s1024 = smul.addr %s1023, 8
          %s1025 = scalar_lea.vmem [#allocation6], %s1024
          %1027 = dma.done %s1022, 128
        $region84: #{tpu_custom_call.1} parent=79 // pred_fallthru
          _
      $region80: #{tpu_custom_call.1} parent=5 // pred_fallthru
        _
    $region6: #{tpu_custom_call.1} parent=1 // loop_footer
      %s18 = sadd.s32 1, %s14
    $region7: #{tpu_custom_call.1} parent=1 // loop_footer_branch
      %13 = sbr.rel target = $region3
    $region8: #{tpu_custom_call.1} parent=1 // loop_exit
      _
    %1028 = vsyncpa [#allocation7], 1
    %s1029 = scalar_lea.sflag [#allocation7], 1
    %1030 = vsyncpa %s1029, 1

// kernel: tpu_custom_call.1
$region0: #{tpu_custom_call.1}
  #allocation0 [shape = 'u32[]', space=smem, size = 0x4, offset = 0x4, fixed_abs, tag = 'smem constant byte address 0x4 - core index']
  #allocation1 [shape = 'u32[72,128]{1,0:T(1,128)}', space=vmem, size = 0x9000, scoped, tag = 'internal scratch']
  #allocation2 [shape = 'bf16[16,32]{1,0:T(8,128)(2,1)}', space=vmem, size = 0x1000, scoped, tag = 'scratch operand']
  #allocation3 [shape = 'bf16[16,32]{1,0:T(8,128)(2,1)}', space=vmem, size = 0x1000, scoped, tag = 'scratch operand']
  #allocation4 [shape = 'bf16[16,32]{1,0:T(8,128)(2,1)}', space=vmem, size = 0x1000, scoped, tag = 'scratch operand']
  #allocation5 [shape = 'bf16[8,32]{1,0:T(8,128)(2,1)}', space=vmem, size = 0x800, scoped, tag = 'scratch operand']
  %s0 = inlined_call_operand.vmem [shape: f32[2,16,32], index: 0, kind: input, shape index: {}]
  %s1 = inlined_call_operand.vmem [shape: bf16[32,96], index: 1, kind: input, shape index: {}]
  %s2 = inlined_call_operand.vmem [shape: bf16[32,32], index: 2, kind: input, shape index: {}]
  %s3 = inlined_call_operand.vmem [shape: bf16[32,128], index: 3, kind: input, shape index: {}]
  %s4 = inlined_call_operand.vmem [shape: bf16[128,32], index: 4, kind: input, shape index: {}]
  %s5 = inlined_call_operand.hbm [shape: f32[2,16,32], index: 5, kind: output, shape index: {}]
  %s6 = sld [smem:[#allocation0]]
  $region85: #{tpu_custom_call.1} parent=0
    _
  %s8 = ssub.s32 1, %s6
  %s9 = scalar_select 0, %s8, %s6
  $region1: #{tpu_custom_call.1} parent=0
    #allocation6 [shape = 'u8[8192]{0}', space=vmem, size = 0x2000, scoped, tag = 'output window, operand 0']
    #allocation7 [shape = 's32[2]{0}', space=sflag, size = 0x8, scoped, tag = 'scoped memory for tpu_custom_call.1']
    %10 = vsyncpa [#allocation7], 0
    %s11 = scalar_lea.sflag [#allocation7], 1
    %12 = vsyncpa %s11, 0
    loop: start=0, step=1, limit=6
    $region2: #{tpu_custom_call.1} parent=1 // loop_pre_header
      _
    $region3: #{tpu_custom_call.1} parent=1 // loop_header
      %s14 = sphi 0, %s18
      %p15 = scmp.ge.s32.totalorder %s14, 6
      %s21 = sphi 0, %s33
      %s22 = sphi 0, %s29
      %s23 = sphi 0, %s21
      %s24 = sphi 0, %s22
      %s25 = sphi 0, %s23
      %s26 = sphi 0, %s24
      %s36 = sphi 0, %s38
      %s39 = sphi 0, %s36
      %s40 = sphi 0, %s39
      %s56 = sphi 0, %s40
      %s60 = sphi 0, %s60
      %s62 = sphi 0, %s60
      %s63 = sphi 0, %s62
      %s77 = sphi 0, %s63
      %s81 = sphi 0, %s81
      %s83 = sphi 0, %s81
      %s84 = sphi 0, %s83
      %s98 = sphi 0, %s84
      %s102 = sphi 0, %s102
      %s104 = sphi 0, %s102
      %s105 = sphi 0, %s104
      %s119 = sphi 0, %s105
      %s123 = sphi 0, %s123
      %s125 = sphi 0, %s123
      %s126 = sphi 0, %s125
      %s140 = sphi 0, %s126
      %s148 = sphi 0, %s150
      %s151 = sphi 0, %s148
      %s152 = sphi 0, %s151
      %s168 = sphi 0, %s152
    $region4: #{tpu_custom_call.1} parent=1 // loop_header_branch
      %17 = sbr.rel (%p15) target = $region8
    $region5: #{tpu_custom_call.1} parent=1 // loop_body
      %s19 = ssub.s32 %s14, 1
      %s20 = ssub.s32 %s14, 2
      %s27 = sadd.s32 1, %s22
      %p28 = scmp.ge.s32.totalorder %s27, 2
      %s29 = scalar_select %p28, 0, %s27
      %s30 = sadd.s32 1, %s21
      %s31 = scalar_select %p28, %s30, %s21
      %p32 = scmp.ge.s32.totalorder %s31, 2
      %s33 = scalar_select %p32, 0, %s31
      %s34 = ssub.s32 %s21, %s33
      %p35 = scmp.eq.s32.totalorder %s34, 0
      %s37 = sadd.s32 %s36, 1
      %s38 = scalar_select %p35, %s36, %s37
      %p41 = pneg %p35
      %p42 = scmp.eq.s32.totalorder %s14, 3
      %p43 = por %p41, %p42
      %p44 = scmp.ne.s32.totalorder %s36, %s39
      %p45 = scmp.eq.s32.totalorder %s14, 0
      %p46 = por %p44, %p45
      %p47 = scmp.ne.s32.totalorder %s36, %s39
      %p48 = scmp.eq.s32.totalorder %s19, 3
      %p49 = por %p47, %p48
      %p50 = scmp.ne.s32.totalorder %s39, %s40
      %p51 = scmp.eq.s32.totalorder %s19, 0
      %p52 = por %p50, %p51
      %p53 = scmp.ne.s32.totalorder %s39, %s40
      %p54 = scmp.eq.s32.totalorder %s20, 3
      %p55 = por %p53, %p54
      %p57 = scmp.ne.s32.totalorder %s40, %s56
      %p58 = scmp.eq.s32.totalorder %s20, 0
      %p59 = por %p57, %p58
      %s61 = sadd.s32 %s60, 1
      %p64 = scmp.eq.s32.totalorder %s14, 3
      %p65 = scmp.ne.s32.totalorder %s60, %s62
      %p66 = scmp.eq.s32.totalorder %s14, 0
      %p67 = por %p65, %p66
      %p68 = scmp.ne.s32.totalorder %s60, %s62
      %p69 = scmp.eq.s32.totalorder %s19, 3
      %p70 = por %p68, %p69
      %p71 = scmp.ne.s32.totalorder %s62, %s63
      %p72 = scmp.eq.s32.totalorder %s19, 0
      %p73 = por %p71, %p72
      %p74 = scmp.ne.s32.totalorder %s62, %s63
      %p75 = scmp.eq.s32.totalorder %s20, 3
      %p76 = por %p74, %p75
      %p78 = scmp.ne.s32.totalorder %s63, %s77
      %p79 = scmp.eq.s32.totalorder %s20, 0
      %p80 = por %p78, %p79
      %s82 = sadd.s32 %s81, 1
      %p85 = scmp.eq.s32.totalorder %s14, 3
      %p86 = scmp.ne.s32.totalorder %s81, %s83
      %p87 = scmp.eq.s32.totalorder %s14, 0
      %p88 = por %p86, %p87
      %p89 = scmp.ne.s32.totalorder %s81, %s83
      %p90 = scmp.eq.s32.totalorder %s19, 3
      %p91 = por %p89, %p90
      %p92 = scmp.ne.s32.totalorder %s83, %s84
      %p93 = scmp.eq.s32.totalorder %s19, 0
      %p94 = por %p92, %p93
      %p95 = scmp.ne.s32.totalorder %s83, %s84
      %p96 = scmp.eq.s32.totalorder %s20, 3
      %p97 = por %p95, %p96
      %p99 = scmp.ne.s32.totalorder %s84, %s98
      %p100 = scmp.eq.s32.totalorder %s20, 0
      %p101 = por %p99, %p100
      %s103 = sadd.s32 %s102, 1
      %p106 = scmp.eq.s32.totalorder %s14, 3
      %p107 = scmp.ne.s32.totalorder %s102, %s104
      %p108 = scmp.eq.s32.totalorder %s14, 0
      %p109 = por %p107, %p108
      %p110 = scmp.ne.s32.totalorder %s102, %s104
      %p111 = scmp.eq.s32.totalorder %s19, 3
      %p112 = por %p110, %p111
      %p113 = scmp.ne.s32.totalorder %s104, %s105
      %p114 = scmp.eq.s32.totalorder %s19, 0
      %p115 = por %p113, %p114
      %p116 = scmp.ne.s32.totalorder %s104, %s105
      %p117 = scmp.eq.s32.totalorder %s20, 3
      %p118 = por %p116, %p117
      %p120 = scmp.ne.s32.totalorder %s105, %s119
      %p121 = scmp.eq.s32.totalorder %s20, 0
      %p122 = por %p120, %p121
      %s124 = sadd.s32 %s123, 1
      %p127 = scmp.eq.s32.totalorder %s14, 3
      %p128 = scmp.ne.s32.totalorder %s123, %s125
      %p129 = scmp.eq.s32.totalorder %s14, 0
      %p130 = por %p128, %p129
      %p131 = scmp.ne.s32.totalorder %s123, %s125
      %p132 = scmp.eq.s32.totalorder %s19, 3
      %p133 = por %p131, %p132
      %p134 = scmp.ne.s32.totalorder %s125, %s126
      %p135 = scmp.eq.s32.totalorder %s19, 0
      %p136 = por %p134, %p135
      %p137 = scmp.ne.s32.totalorder %s125, %s126
      %p138 = scmp.eq.s32.totalorder %s20, 3
      %p139 = por %p137, %p138
      %p141 = scmp.ne.s32.totalorder %s126, %s140
      %p142 = scmp.eq.s32.totalorder %s20, 0
      %p143 = por %p141, %p142
      %s144 = ssub.s32 %s21, %s33
      %s145 = ssub.s32 %s22, %s29
      %s146 = sor.u32 %s144, %s145
      %p147 = scmp.eq.s32.totalorder %s146, 0
      %s149 = sadd.s32 %s148, 1
      %s150 = scalar_select %p147, %s148, %s149
      %p153 = pneg %p147
      %p154 = scmp.eq.s32.totalorder %s14, 3
      %p155 = por %p153, %p154
      %p156 = scmp.ne.s32.totalorder %s148, %s151
      %p157 = scmp.eq.s32.totalorder %s14, 0
      %p158 = por %p156, %p157
      %p159 = scmp.ne.s32.totalorder %s148, %s151
      %p160 = scmp.eq.s32.totalorder %s19, 3
      %p161 = por %p159, %p160
      %p162 = scmp.ne.s32.totalorder %s151, %s152
      %p163 = scmp.eq.s32.totalorder %s19, 0
      %p164 = por %p162, %p163
      %p165 = scmp.ne.s32.totalorder %s151, %s152
      %p166 = scmp.eq.s32.totalorder %s20, 3
      %p167 = por %p165, %p166
      %p169 = scmp.ne.s32.totalorder %s152, %s168
      %p170 = scmp.eq.s32.totalorder %s20, 0
      %p171 = por %p169, %p170
      %p172 = scmp.le.s32.totalorder 1, %s14
      %p173 = scmp.lt.s32.totalorder %s14, 5
      %p174 = pnand %p172, %p173
      %p175 = pneg %p174
      // Predicated region
      $region9: #{tpu_custom_call.1} parent=5 // pred_check
        _
      $region10: #{tpu_custom_call.1} parent=5 // pred_check_branch
        %177 = sbr.rel (%p174) target = $region12
      $region11: #{tpu_custom_call.1} parent=5 // pred_region
        %s178 = ssub.s32 %s14, 1
        // Predicated region
        $region13: #{tpu_custom_call.1} parent=11 // pred_check
          %p179 = pneg %p73
        $region14: #{tpu_custom_call.1} parent=11 // pred_check_branch
          %181 = sbr.rel (%p179) target = $region16
        $region15: #{tpu_custom_call.1} parent=11 // pred_region
          _
        $region16: #{tpu_custom_call.1} parent=11 // pred_fallthru
          _
        // Predicated region
        $region17: #{tpu_custom_call.1} parent=11 // pred_check
          %p182 = pneg %p94
        $region18: #{tpu_custom_call.1} parent=11 // pred_check_branch
          %184 = sbr.rel (%p182) target = $region20
        $region19: #{tpu_custom_call.1} parent=11 // pred_region
          _
        $region20: #{tpu_custom_call.1} parent=11 // pred_fallthru
          _
        // Predicated region
        $region21: #{tpu_custom_call.1} parent=11 // pred_check
          %p185 = pneg %p115
        $region22: #{tpu_custom_call.1} parent=11 // pred_check_branch
          %187 = sbr.rel (%p185) target = $region24
        $region23: #{tpu_custom_call.1} parent=11 // pred_region
          _
        $region24: #{tpu_custom_call.1} parent=11 // pred_fallthru
          _
        // Predicated region
        $region25: #{tpu_custom_call.1} parent=11 // pred_check
          %p188 = pneg %p136
        $region26: #{tpu_custom_call.1} parent=11 // pred_check_branch
          %190 = sbr.rel (%p188) target = $region28
        $region27: #{tpu_custom_call.1} parent=11 // pred_region
          _
        $region28: #{tpu_custom_call.1} parent=11 // pred_fallthru
          _
      $region12: #{tpu_custom_call.1} parent=5 // pred_fallthru
        _
      %p191 = scmp.lt.s32.totalorder %s14, 4
      // Predicated region
      $region29: #{tpu_custom_call.1} parent=5 // pred_check
        %p192 = pneg %p191
      $region30: #{tpu_custom_call.1} parent=5 // pred_check_branch
        %194 = sbr.rel (%p192) target = $region32
      $region31: #{tpu_custom_call.1} parent=5 // pred_region
        // Predicated region
        $region33: #{tpu_custom_call.1} parent=31 // pred_check
          %p195 = pneg %p46
        $region34: #{tpu_custom_call.1} parent=31 // pred_check_branch
          %197 = sbr.rel (%p195) target = $region36
        $region35: #{tpu_custom_call.1} parent=31 // pred_region
          %p198 = scmp.lt.s32.totalorder %s21, 1
          %s199 = scalar_select %p198, %s21, 1
          %s200 = smul.addr %s199, 2
          %s201 = smul.addr %s200, 8
          %s202 = scalar_lea.vmem %s0, %s201
        $region36: #{tpu_custom_call.1} parent=31 // pred_fallthru
          _
      $region32: #{tpu_custom_call.1} parent=5 // pred_fallthru
        _
      %p203 = scmp.le.s32.totalorder 1, %s14
      %p204 = scmp.lt.s32.totalorder %s14, 5
      %p205 = pnand %p203, %p204
      %p206 = pneg %p205
      // Predicated region
      $region37: #{tpu_custom_call.1} parent=5 // pred_check
        _
      $region38: #{tpu_custom_call.1} parent=5 // pred_check_branch
        %208 = sbr.rel (%p205) target = $region40
      $region39: #{tpu_custom_call.1} parent=5 // pred_region
        %s209 = ssub.s32 %s14, 1
        %p210 = scmp.lt.s32.totalorder %s23, 1
        %s211 = scalar_select %p210, %s23, 1
        %s212 = smul.addr %s211, 2
        %s213 = smul.addr %s212, 8
        %s214 = scalar_lea.vmem %s0, %s213
        %p215 = pneg %p52
        %p216 = pneg %p49
        %p217 = pneg %p73
        %p218 = pneg %p70
        %p219 = pneg %p94
        %p220 = pneg %p91
        %p221 = pneg %p115
        %p222 = pneg %p112
        %p223 = pneg %p136
        %p224 = pneg %p133
        %p225 = pneg %p164
        %p226 = pneg %p161
        %s227 = sand.u32 %s151, 1
        %s228 = scalar_lea.sflag [#allocation7], %s227
        %s229 = sand.u32 %s151, 1
        %s230 = smul.addr %s229, 8
        %s231 = scalar_lea.vmem [#allocation6], %s230
        %p232 = scmp.lt.s32.totalorder %s23, 1
        %s233 = scalar_select %p232, %s23, 1
        %s234 = smul.addr %s233, 2
        %s235 = smul.addr %s234, 8
        %s236 = scalar_lea.vmem %s0, %s235
        %p238 = scmp.eq.s32.totalorder %s24, 0
        // Predicated region
        $region41: #{tpu_custom_call.1} parent=39 // pred_check
          %p239 = pneg %p238
        $region42: #{tpu_custom_call.1} parent=39 // pred_check_branch
          %241 = sbr.rel (%p239) target = $region44
        $region43: #{tpu_custom_call.1} parent=39 // pred_region
          %v242 = vld [vmem:[%s236] sm:$0xff]
          %v243 = vld [vmem:[%s236 + $0x8] sm:$0xff]
          %v244 = vmul.f32 %v242, %v242
          %v245 = vmul.f32 %v243, %v243
          %vm246 = vcmask 261120
          %v247 = vsel %vm246, %v244, 0.0
          %248 = vadd.xlane.f32.xlu0 %v247
          %v249 = vpop.xlane.xlu0 %248
          %v250 = vsel %vm246, %v245, 0.0
          %251 = vadd.xlane.f32.xlu0 %v250
          %v252 = vpop.xlane.xlu0 %251
          %v253 = vrcp.pop 32.0
          %v254 = vmul.f32 32.0, %v253
          %v255 = vsub.f32 1.0, %v254
          %v256 = vmul.f32 %v253, %v255
          %v257 = vadd.f32 %v253, %v256
          %vm258 = vweird.f32 %v253
          %v259 = vsel %vm258, %v253, %v257
          %v260 = vmul.f32 %v249, %v259
          %v261 = vmul.f32 %v252, %v259
          %v262 = vadd.f32 %v260, 1.1920929e-07
          %v263 = vadd.f32 %v261, 1.1920929e-07
          %v264 = vrsqrt.pop %v262
          %v265 = vmul.f32 %v264, %v262
          %v266 = vmul.f32 %v265, %v264
          %v267 = vmul.f32 0.5, %v266
          %v268 = vsub.f32 1.5, %v267
          %v269 = vmul.f32 %v264, %v268
          %vm270 = vweird.f32 %v262
          %vm271 = vweird.f32 %v264
          %vm272 = vmor %vm270, %vm271
          %v273 = vsel %vm272, %v264, %v269
          %v274 = vrsqrt.pop %v263
          %v275 = vmul.f32 %v274, %v263
          %v276 = vmul.f32 %v275, %v274
          %v277 = vmul.f32 0.5, %v276
          %v278 = vsub.f32 1.5, %v277
          %v279 = vmul.f32 %v274, %v278
          %vm280 = vweird.f32 %v263
          %vm281 = vweird.f32 %v274
          %vm282 = vmor %vm280, %vm281
          %v283 = vsel %vm282, %v274, %v279
          %v284 = vmul.f32 %v242, %v273
          %v285 = vmul.f32 %v243, %v283
          %v286 = vmul.f32 %v284, 0.70710677
          %v287 = vmul.f32 %v285, 0.70710677
          %v288 = vpack.c.bf16 %v287, %v286
          %v289 = vld [vmem:[%s1] sm:$0xf]
          %v290 = vld [vmem:[%s1 + $0x4] sm:$0xf]
          %v291 = vld [vmem:[%s1 + $0x8] sm:$0xf]
          %v292 = vld [vmem:[%s1 + $0xc] sm:$0xf]
          %v297 = vunpack.c.l.b16 %v289
          %v298 = vunpack.c.l.b16 %v290
          %v299 = vunpack.c.l.b16 %v291
          %v300 = vunpack.c.l.b16 %v292
          %v301 = vpack.c.b16 %v298, %v297
          %v302 = vpack.c.b16 %v300, %v299
          %v306 = vsel %vm246, %v288, 0
          %308 = vmatpush.bf16.msra.mxu0 0
          %309 = vmatpush.bf16.msra.mxu0 0
          %310 = vmatpush.bf16.msra.mxu0 0
          %311 = vmatpush.bf16.msra.mxu0 0
          %312 = vmatpush.bf16.msra.mxu0 0
          %313 = vmatpush.bf16.msra.mxu0 0
          %314 = vmatpush.bf16.msra.mxu0 %v302
          %315 = vmatpush.bf16.msra.mxu0 %v301
          %316 = vmatmul.bf16.gmra.mxu0 %v306
          %v317 = vpop.f32.mrf.mxu0
          %v318 = vadd.f32 0.0, %v317
          %v319 = vpop.f32.mrf.mxu0
          %v320 = vadd.f32 0.0, %v319
          %321 = vdwg.mxu0
          %v322 = vmul.f32 %v318, 0.35355338
          %v323 = vmul.f32 %v320, 0.35355338
          %v324 = vpack.c.bf16 %v322, %v322
          %v325 = vpack.c.bf16 %v323, %v323
          %vm326 = vcmask 257024
          %327 = vst.msk [vmem:[#allocation2] sm:$0xf] %vm326, %v324
          %328 = vst.msk [vmem:[#allocation2 + $0x4] sm:$0xf] %vm326, %v325
          %v329 = vld [vmem:[%s1] sm:$0xf]
          %v330 = vld [vmem:[%s1 + $0x4] sm:$0xf]
          %v331 = vld [vmem:[%s1 + $0x8] sm:$0xf]
          %v332 = vld [vmem:[%s1 + $0xc] sm:$0xf]
          %v337 = vunpack.c.l.b16 %v329
          %v338 = vunpack.c.l.b16 %v330
          %v339 = vunpack.c.l.b16 %v331
          %v340 = vunpack.c.l.b16 %v332
          %v341 = vpack.c.b16 %v338, %v337
          %v342 = vpack.c.b16 %v340, %v339
          %343 = vrot.lane.b32.xlu0 %v341, 96
          %v344 = vpop.permute.xlu0 %343
          %345 = vrot.lane.b32.xlu0 %v342, 96
          %v346 = vpop.permute.xlu0 %345
          %349 = vmatpush.bf16.msra.mxu0 0
          %350 = vmatpush.bf16.msra.mxu0 0
          %351 = vmatpush.bf16.msra.mxu0 0
          %352 = vmatpush.bf16.msra.mxu0 0
          %353 = vmatpush.bf16.msra.mxu0 0
          %354 = vmatpush.bf16.msra.mxu0 0
          %355 = vmatpush.bf16.msra.mxu0 %v346
          %356 = vmatpush.bf16.msra.mxu0 %v344
          %357 = vmatmul.bf16.gmra.mxu0 %v306
          %v358 = vpop.f32.mrf.mxu0
          %v359 = vadd.f32 0.0, %v358
          %v360 = vpop.f32.mrf.mxu0
          %v361 = vadd.f32 0.0, %v360
          %362 = vdwg.mxu0
          %v363 = vpack.c.bf16 %v359, %v359
          %v364 = vpack.c.bf16 %v361, %v361
          %365 = vst.msk [vmem:[#allocation3] sm:$0xf] %vm326, %v363
          %366 = vst.msk [vmem:[#allocation3 + $0x4] sm:$0xf] %vm326, %v364
          %v367 = vld [vmem:[%s1] sm:$0xf]
          %v368 = vld [vmem:[%s1 + $0x4] sm:$0xf]
          %v369 = vld [vmem:[%s1 + $0x8] sm:$0xf]
          %v370 = vld [vmem:[%s1 + $0xc] sm:$0xf]
          %v375 = vunpack.c.l.b16 %v367
          %v376 = vunpack.c.l.b16 %v368
          %v377 = vunpack.c.l.b16 %v369
          %v378 = vunpack.c.l.b16 %v370
          %v379 = vpack.c.b16 %v376, %v375
          %v380 = vpack.c.b16 %v378, %v377
          %381 = vrot.lane.b32.xlu0 %v379, 64
          %v382 = vpop.permute.xlu0 %381
          %383 = vrot.lane.b32.xlu0 %v380, 64
          %v384 = vpop.permute.xlu0 %383
          %387 = vmatpush.bf16.msra.mxu0 0
          %388 = vmatpush.bf16.msra.mxu0 0
          %389 = vmatpush.bf16.msra.mxu0 0
          %390 = vmatpush.bf16.msra.mxu0 0
          %391 = vmatpush.bf16.msra.mxu0 0
          %392 = vmatpush.bf16.msra.mxu0 0
          %393 = vmatpush.bf16.msra.mxu0 %v384
          %394 = vmatpush.bf16.msra.mxu0 %v382
          %395 = vmatmul.bf16.gmra.mxu0 %v306
          %v396 = vpop.f32.mrf.mxu0
          %v397 = vadd.f32 0.0, %v396
          %v398 = vpop.f32.mrf.mxu0
          %v399 = vadd.f32 0.0, %v398
          %400 = vdwg.mxu0
          %v401 = vpack.c.bf16 %v397, %v397
          %v402 = vpack.c.bf16 %v399, %v399
          %403 = vst.msk [vmem:[#allocation4] sm:$0xf] %vm326, %v401
          %404 = vst.msk [vmem:[#allocation4 + $0x4] sm:$0xf] %vm326, %v402
        $region44: #{tpu_custom_call.1} parent=39 // pred_fallthru
          _
        %s405 = smul.u32 %s24, 8
        %s406 = scalar_lea.vmem %s236, %s405
        %v407 = vld [vmem:[%s406] sm:$0xff]
        %s408 = sshra.s32 %s405, 3
        %s409 = sand.u32 %s405, 7
        %s410 = smul.addr %s408, 4
        %s411 = scalar_lea.vmem [#allocation2], %s410
        %v412 = vld [vmem:[%s411] sm:$0xf]
        %s413 = sadd.s32 %s24, 1
        %v414 = vlaneseq
        %v415 = vshrl.u32 %v414, 7
        %v416 = vstv %s405
        %v417 = vadd.s32 %v416, %v415
        %v418 = vlaneseq
        %v419 = vand.u32 %v418, 127
        // While loop
        $region45: #{tpu_custom_call.1} parent=39 // loop_pre_header
          _
        $region46: #{tpu_custom_call.1} parent=39 // loop_header
          %s421 = sphi 0, %s423
          %p422 = scmp.ge.s32.totalorder %s421, %s413
          %v426 = vphi -1e+30, %v465
          %v427 = vphi 0.0, %v476
          %v428 = vphi 0.0, %v499
        $region47: #{tpu_custom_call.1} parent=39 // loop_header_branch
          %425 = sbr.rel (%p422) target = $region51
        $region48: #{tpu_custom_call.1} parent=39 // loop_body
          %s429 = smul.u32 %s421, 8
          %s430 = sshra.s32 %s429, 3
          %s431 = sand.u32 %s429, 7
          %s432 = smul.addr %s430, 4
          %s433 = scalar_lea.vmem [#allocation3], %s432
          %v434 = vld [vmem:[%s433] sm:$0xf]
          %s435 = smul.addr %s430, 4
          %s436 = scalar_lea.vmem [#allocation4], %s435
          %v437 = vld [vmem:[%s436] sm:$0xf]
          %vm438 = vcmask 64512
          %v440 = vsel %vm438, %v412, 0
          %v443 = vsel %vm438, %v434, 0
          %445 = vmatpush.bf16.xpose.msra.mxu0 0
          %446 = vmatpush.bf16.xpose.msra.mxu0 0
          %447 = vmatpush.bf16.xpose.msra.mxu0 0
          %448 = vmatpush.bf16.xpose.msra.mxu0 0
          %449 = vmatpush.bf16.xpose.msra.mxu0 0
          %450 = vmatpush.bf16.xpose.msra.mxu0 0
          %451 = vmatpush.bf16.xpose.msra.mxu0 0
          %452 = vmatpush.bf16.xpose.msra.mxu0 %v443
          %453 = vmatmul.bf16.gmra.mxu0 %v440
          %v454 = vpop.f32.mrf.mxu0
          %v455 = vadd.f32 0.0, %v454
          %v456 = vpop.f32.mrf.mxu0
          %457 = vdwg.mxu0
          %v458 = vstv %s429
          %v459 = vadd.s32 %v458, %v419
          %vm460 = vcmp.ge.s32.totalorder %v417, %v459
          %v461 = vsel %vm460, %v455, -1e+30
          %v462 = vsel %vm438, %v461, -inf
          %463 = vmax.xlane.f32.xlu0 %v462
          %v464 = vpop.xlane.xlu0 %463
          %v465 = vmax.f32 %v426, %v464
          %v466 = vsub.f32 %v426, %v465
          %v467 = vmul.f32 %v466, 1.442695
          %v468 = vpow.pop %v467
          %v469 = vsub.f32 %v461, %v465
          %v470 = vmul.f32 %v469, 1.442695
          %v471 = vpow.pop %v470
          %v472 = vmul.f32 %v468, %v427
          %v473 = vsel %vm438, %v471, 0.0
          %474 = vadd.xlane.f32.xlu0 %v473
          %v475 = vpop.xlane.xlu0 %474
          %v476 = vadd.f32 %v472, %v475
          %v477 = vmul.f32 %v468, %v428
          %v478 = vpack.c.bf16 %v471, %v471
          %v480 = vsel %vm438, %v478, 0
          %vm482 = vcmask 1043456
          %v484 = vsel %vm482, %v437, 0
          %486 = vmatpush.bf16.msra.mxu0 0
          %487 = vmatpush.bf16.msra.mxu0 0
          %488 = vmatpush.bf16.msra.mxu0 0
          %489 = vmatpush.bf16.msra.mxu0 0
          %490 = vmatpush.bf16.msra.mxu0 0
          %491 = vmatpush.bf16.msra.mxu0 0
          %492 = vmatpush.bf16.msra.mxu0 0
          %493 = vmatpush.bf16.msra.mxu0 %v484
          %494 = vmatmul.bf16.gmra.mxu0 %v480
          %v495 = vpop.f32.mrf.mxu0
          %v496 = vadd.f32 0.0, %v495
          %v497 = vpop.f32.mrf.mxu0
          %498 = vdwg.mxu0
          %v499 = vadd.f32 %v477, %v496
        $region49: #{tpu_custom_call.1} parent=39 // loop_footer
          %s423 = sadd.s32 %s421, 1
        $region50: #{tpu_custom_call.1} parent=39 // loop_footer_branch
          %420 = sbr.rel target = $region46
        $region51: #{tpu_custom_call.1} parent=39 // loop_exit
          _
        %v500 = vrcp.pop %v427
        %v501 = vmul.f32 %v428, %v500
        %v502 = vpack.c.bf16 %v501, %v501
        %vm503 = vcmask 60416
        %504 = vst.msk [vmem:[#allocation5] sm:$0xf] %vm503, %v502
        // While loop
        $region52: #{tpu_custom_call.1} parent=39 // loop_pre_header
          _
        $region53: #{tpu_custom_call.1} parent=39 // loop_header
          %s506 = sphi 0, %s508
          %p507 = scmp.ge.s32.totalorder %s506, %s413
          %v511 = vphi -1e+30, %v560
          %v512 = vphi 0.0, %v571
          %v513 = vphi 0.0, %v599
        $region54: #{tpu_custom_call.1} parent=39 // loop_header_branch
          %510 = sbr.rel (%p507) target = $region58
        $region55: #{tpu_custom_call.1} parent=39 // loop_body
          %s514 = smul.u32 %s506, 8
          %s515 = sshra.s32 %s514, 3
          %s516 = sand.u32 %s514, 7
          %s517 = smul.addr %s515, 4
          %s518 = scalar_lea.vmem [#allocation3], %s517
          %v519 = vld [vmem:[%s518] sm:$0xf]
          %s520 = smul.addr %s515, 4
          %s521 = scalar_lea.vmem [#allocation4], %s520
          %v522 = vld [vmem:[%s521] sm:$0xf]
          %v524 = vunpack.c.l.b16 %v412
          %v525 = vpack.c.b16 %v524, %v524
          %526 = vrot.lane.b32.xlu0 %v525, 120
          %v527 = vpop.permute.xlu0 %526
          %v529 = vunpack.c.l.b16 %v519
          %v530 = vpack.c.b16 %v529, %v529
          %531 = vrot.lane.b32.xlu0 %v530, 120
          %v532 = vpop.permute.xlu0 %531
          %vm533 = vcmask 64512
          %v535 = vsel %vm533, %v527, 0
          %v538 = vsel %vm533, %v532, 0
          %540 = vmatpush.bf16.xpose.msra.mxu0 0
          %541 = vmatpush.bf16.xpose.msra.mxu0 0
          %542 = vmatpush.bf16.xpose.msra.mxu0 0
          %543 = vmatpush.bf16.xpose.msra.mxu0 0
          %544 = vmatpush.bf16.xpose.msra.mxu0 0
          %545 = vmatpush.bf16.xpose.msra.mxu0 0
          %546 = vmatpush.bf16.xpose.msra.mxu0 0
          %547 = vmatpush.bf16.xpose.msra.mxu0 %v538
          %548 = vmatmul.bf16.gmra.mxu0 %v535
          %v549 = vpop.f32.mrf.mxu0
          %v550 = vadd.f32 0.0, %v549
          %v551 = vpop.f32.mrf.mxu0
          %552 = vdwg.mxu0
          %v553 = vstv %s514
          %v554 = vadd.s32 %v553, %v419
          %vm555 = vcmp.ge.s32.totalorder %v417, %v554
          %v556 = vsel %vm555, %v550, -1e+30
          %v557 = vsel %vm533, %v556, -inf
          %558 = vmax.xlane.f32.xlu0 %v557
          %v559 = vpop.xlane.xlu0 %558
          %v560 = vmax.f32 %v511, %v559
          %v561 = vsub.f32 %v511, %v560
          %v562 = vmul.f32 %v561, 1.442695
          %v563 = vpow.pop %v562
          %v564 = vsub.f32 %v556, %v560
          %v565 = vmul.f32 %v564, 1.442695
          %v566 = vpow.pop %v565
          %v567 = vmul.f32 %v563, %v512
          %v568 = vsel %vm533, %v566, 0.0
          %569 = vadd.xlane.f32.xlu0 %v568
          %v570 = vpop.xlane.xlu0 %569
          %v571 = vadd.f32 %v567, %v570
          %v572 = vmul.f32 %v563, %v513
          %v573 = vpack.c.bf16 %v566, %v566
          %v575 = vunpack.c.l.b16 %v522
          %v576 = vpack.c.b16 %v575, %v575
          %577 = vrot.lane.b32.xlu0 %v576, 120
          %v578 = vpop.permute.xlu0 %577
          %v580 = vsel %vm533, %v573, 0
          %vm582 = vcmask 1043456
          %v584 = vsel %vm582, %v578, 0
          %586 = vmatpush.bf16.msra.mxu0 0
          %587 = vmatpush.bf16.msra.mxu0 0
          %588 = vmatpush.bf16.msra.mxu0 0
          %589 = vmatpush.bf16.msra.mxu0 0
          %590 = vmatpush.bf16.msra.mxu0 0
          %591 = vmatpush.bf16.msra.mxu0 0
          %592 = vmatpush.bf16.msra.mxu0 0
          %593 = vmatpush.bf16.msra.mxu0 %v584
          %594 = vmatmul.bf16.gmra.mxu0 %v580
          %v595 = vpop.f32.mrf.mxu0
          %v596 = vadd.f32 0.0, %v595
          %v597 = vpop.f32.mrf.mxu0
          %598 = vdwg.mxu0
          %v599 = vadd.f32 %v572, %v596
        $region56: #{tpu_custom_call.1} parent=39 // loop_footer
          %s508 = sadd.s32 %s506, 1
        $region57: #{tpu_custom_call.1} parent=39 // loop_footer_branch
          %505 = sbr.rel target = $region53
        $region58: #{tpu_custom_call.1} parent=39 // loop_exit
          _
        %v600 = vrcp.pop %v512
        %v601 = vmul.f32 %v513, %v600
        %v602 = vpack.c.bf16 %v601, %v601
        %604 = vrot.lane.b32.xlu0 %v602, 8
        %v605 = vpop.permute.xlu0 %604
        %vm607 = vcmask 126016
        %608 = vst.msk [vmem:[#allocation5] sm:$0xf] %vm607, %v605
        // While loop
        $region59: #{tpu_custom_call.1} parent=39 // loop_pre_header
          _
        $region60: #{tpu_custom_call.1} parent=39 // loop_header
          %s610 = sphi 0, %s612
          %p611 = scmp.ge.s32.totalorder %s610, %s413
          %v615 = vphi -1e+30, %v664
          %v616 = vphi 0.0, %v675
          %v617 = vphi 0.0, %v703
        $region61: #{tpu_custom_call.1} parent=39 // loop_header_branch
          %614 = sbr.rel (%p611) target = $region65
        $region62: #{tpu_custom_call.1} parent=39 // loop_body
          %s618 = smul.u32 %s610, 8
          %s619 = sshra.s32 %s618, 3
          %s620 = sand.u32 %s618, 7
          %s621 = smul.addr %s619, 4
          %s622 = scalar_lea.vmem [#allocation3], %s621
          %v623 = vld [vmem:[%s622] sm:$0xf]
          %s624 = smul.addr %s619, 4
          %s625 = scalar_lea.vmem [#allocation4], %s624
          %v626 = vld [vmem:[%s625] sm:$0xf]
          %v628 = vunpack.c.l.b16 %v412
          %v629 = vpack.c.b16 %v628, %v628
          %630 = vrot.lane.b32.xlu0 %v629, 112
          %v631 = vpop.permute.xlu0 %630
          %v633 = vunpack.c.l.b16 %v623
          %v634 = vpack.c.b16 %v633, %v633
          %635 = vrot.lane.b32.xlu0 %v634, 112
          %v636 = vpop.permute.xlu0 %635
          %vm637 = vcmask 64512
          %v639 = vsel %vm637, %v631, 0
          %v642 = vsel %vm637, %v636, 0
          %644 = vmatpush.bf16.xpose.msra.mxu0 0
          %645 = vmatpush.bf16.xpose.msra.mxu0 0
          %646 = vmatpush.bf16.xpose.msra.mxu0 0
          %647 = vmatpush.bf16.xpose.msra.mxu0 0
          %648 = vmatpush.bf16.xpose.msra.mxu0 0
          %649 = vmatpush.bf16.xpose.msra.mxu0 0
          %650 = vmatpush.bf16.xpose.msra.mxu0 0
          %651 = vmatpush.bf16.xpose.msra.mxu0 %v642
          %652 = vmatmul.bf16.gmra.mxu0 %v639
          %v653 = vpop.f32.mrf.mxu0
          %v654 = vadd.f32 0.0, %v653
          %v655 = vpop.f32.mrf.mxu0
          %656 = vdwg.mxu0
          %v657 = vstv %s618
          %v658 = vadd.s32 %v657, %v419
          %vm659 = vcmp.ge.s32.totalorder %v417, %v658
          %v660 = vsel %vm659, %v654, -1e+30
          %v661 = vsel %vm637, %v660, -inf
          %662 = vmax.xlane.f32.xlu0 %v661
          %v663 = vpop.xlane.xlu0 %662
          %v664 = vmax.f32 %v615, %v663
          %v665 = vsub.f32 %v615, %v664
          %v666 = vmul.f32 %v665, 1.442695
          %v667 = vpow.pop %v666
          %v668 = vsub.f32 %v660, %v664
          %v669 = vmul.f32 %v668, 1.442695
          %v670 = vpow.pop %v669
          %v671 = vmul.f32 %v667, %v616
          %v672 = vsel %vm637, %v670, 0.0
          %673 = vadd.xlane.f32.xlu0 %v672
          %v674 = vpop.xlane.xlu0 %673
          %v675 = vadd.f32 %v671, %v674
          %v676 = vmul.f32 %v667, %v617
          %v677 = vpack.c.bf16 %v670, %v670
          %v679 = vunpack.c.l.b16 %v626
          %v680 = vpack.c.b16 %v679, %v679
          %681 = vrot.lane.b32.xlu0 %v680, 112
          %v682 = vpop.permute.xlu0 %681
          %v684 = vsel %vm637, %v677, 0
          %vm686 = vcmask 1043456
          %v688 = vsel %vm686, %v682, 0
          %690 = vmatpush.bf16.msra.mxu0 0
          %691 = vmatpush.bf16.msra.mxu0 0
          %692 = vmatpush.bf16.msra.mxu0 0
          %693 = vmatpush.bf16.msra.mxu0 0
          %694 = vmatpush.bf16.msra.mxu0 0
          %695 = vmatpush.bf16.msra.mxu0 0
          %696 = vmatpush.bf16.msra.mxu0 0
          %697 = vmatpush.bf16.msra.mxu0 %v688
          %698 = vmatmul.bf16.gmra.mxu0 %v684
          %v699 = vpop.f32.mrf.mxu0
          %v700 = vadd.f32 0.0, %v699
          %v701 = vpop.f32.mrf.mxu0
          %702 = vdwg.mxu0
          %v703 = vadd.f32 %v676, %v700
        $region63: #{tpu_custom_call.1} parent=39 // loop_footer
          %s612 = sadd.s32 %s610, 1
        $region64: #{tpu_custom_call.1} parent=39 // loop_footer_branch
          %609 = sbr.rel target = $region60
        $region65: #{tpu_custom_call.1} parent=39 // loop_exit
          _
        %v704 = vrcp.pop %v616
        %v705 = vmul.f32 %v617, %v704
        %v706 = vpack.c.bf16 %v705, %v705
        %708 = vrot.lane.b32.xlu0 %v706, 16
        %v709 = vpop.permute.xlu0 %708
        %vm711 = vcmask 191616
        %712 = vst.msk [vmem:[#allocation5] sm:$0xf] %vm711, %v709
        // While loop
        $region66: #{tpu_custom_call.1} parent=39 // loop_pre_header
          _
        $region67: #{tpu_custom_call.1} parent=39 // loop_header
          %s714 = sphi 0, %s716
          %p715 = scmp.ge.s32.totalorder %s714, %s413
          %v719 = vphi -1e+30, %v768
          %v720 = vphi 0.0, %v779
          %v721 = vphi 0.0, %v807
        $region68: #{tpu_custom_call.1} parent=39 // loop_header_branch
          %718 = sbr.rel (%p715) target = $region72
        $region69: #{tpu_custom_call.1} parent=39 // loop_body
          %s722 = smul.u32 %s714, 8
          %s723 = sshra.s32 %s722, 3
          %s724 = sand.u32 %s722, 7
          %s725 = smul.addr %s723, 4
          %s726 = scalar_lea.vmem [#allocation3], %s725
          %v727 = vld [vmem:[%s726] sm:$0xf]
          %s728 = smul.addr %s723, 4
          %s729 = scalar_lea.vmem [#allocation4], %s728
          %v730 = vld [vmem:[%s729] sm:$0xf]
          %v732 = vunpack.c.l.b16 %v412
          %v733 = vpack.c.b16 %v732, %v732
          %734 = vrot.lane.b32.xlu0 %v733, 104
          %v735 = vpop.permute.xlu0 %734
          %v737 = vunpack.c.l.b16 %v727
          %v738 = vpack.c.b16 %v737, %v737
          %739 = vrot.lane.b32.xlu0 %v738, 104
          %v740 = vpop.permute.xlu0 %739
          %vm741 = vcmask 64512
          %v743 = vsel %vm741, %v735, 0
          %v746 = vsel %vm741, %v740, 0
          %748 = vmatpush.bf16.xpose.msra.mxu0 0
          %749 = vmatpush.bf16.xpose.msra.mxu0 0
          %750 = vmatpush.bf16.xpose.msra.mxu0 0
          %751 = vmatpush.bf16.xpose.msra.mxu0 0
          %752 = vmatpush.bf16.xpose.msra.mxu0 0
          %753 = vmatpush.bf16.xpose.msra.mxu0 0
          %754 = vmatpush.bf16.xpose.msra.mxu0 0
          %755 = vmatpush.bf16.xpose.msra.mxu0 %v746
          %756 = vmatmul.bf16.gmra.mxu0 %v743
          %v757 = vpop.f32.mrf.mxu0
          %v758 = vadd.f32 0.0, %v757
          %v759 = vpop.f32.mrf.mxu0
          %760 = vdwg.mxu0
          %v761 = vstv %s722
          %v762 = vadd.s32 %v761, %v419
          %vm763 = vcmp.ge.s32.totalorder %v417, %v762
          %v764 = vsel %vm763, %v758, -1e+30
          %v765 = vsel %vm741, %v764, -inf
          %766 = vmax.xlane.f32.xlu0 %v765
          %v767 = vpop.xlane.xlu0 %766
          %v768 = vmax.f32 %v719, %v767
          %v769 = vsub.f32 %v719, %v768
          %v770 = vmul.f32 %v769, 1.442695
          %v771 = vpow.pop %v770
          %v772 = vsub.f32 %v764, %v768
          %v773 = vmul.f32 %v772, 1.442695
          %v774 = vpow.pop %v773
          %v775 = vmul.f32 %v771, %v720
          %v776 = vsel %vm741, %v774, 0.0
          %777 = vadd.xlane.f32.xlu0 %v776
          %v778 = vpop.xlane.xlu0 %777
          %v779 = vadd.f32 %v775, %v778
          %v780 = vmul.f32 %v771, %v721
          %v781 = vpack.c.bf16 %v774, %v774
          %v783 = vunpack.c.l.b16 %v730
          %v784 = vpack.c.b16 %v783, %v783
          %785 = vrot.lane.b32.xlu0 %v784, 104
          %v786 = vpop.permute.xlu0 %785
          %v788 = vsel %vm741, %v781, 0
          %vm790 = vcmask 1043456
          %v792 = vsel %vm790, %v786, 0
          %794 = vmatpush.bf16.msra.mxu0 0
          %795 = vmatpush.bf16.msra.mxu0 0
          %796 = vmatpush.bf16.msra.mxu0 0
          %797 = vmatpush.bf16.msra.mxu0 0
          %798 = vmatpush.bf16.msra.mxu0 0
          %799 = vmatpush.bf16.msra.mxu0 0
          %800 = vmatpush.bf16.msra.mxu0 0
          %801 = vmatpush.bf16.msra.mxu0 %v792
          %802 = vmatmul.bf16.gmra.mxu0 %v788
          %v803 = vpop.f32.mrf.mxu0
          %v804 = vadd.f32 0.0, %v803
          %v805 = vpop.f32.mrf.mxu0
          %806 = vdwg.mxu0
          %v807 = vadd.f32 %v780, %v804
        $region70: #{tpu_custom_call.1} parent=39 // loop_footer
          %s716 = sadd.s32 %s714, 1
        $region71: #{tpu_custom_call.1} parent=39 // loop_footer_branch
          %713 = sbr.rel target = $region67
        $region72: #{tpu_custom_call.1} parent=39 // loop_exit
          _
        %v808 = vrcp.pop %v720
        %v809 = vmul.f32 %v721, %v808
        %v810 = vpack.c.bf16 %v809, %v809
        %812 = vrot.lane.b32.xlu0 %v810, 24
        %v813 = vpop.permute.xlu0 %812
        %vm815 = vcmask 257216
        %816 = vst.msk [vmem:[#allocation5] sm:$0xf] %vm815, %v813
        %v817 = vld [vmem:[#allocation5] sm:$0xf]
        %v818 = vld [vmem:[%s2] sm:$0xf]
        %v819 = vld [vmem:[%s2 + $0x4] sm:$0xf]
        %v820 = vld [vmem:[%s2 + $0x8] sm:$0xf]
        %v821 = vld [vmem:[%s2 + $0xc] sm:$0xf]
        %v826 = vunpack.c.l.b16 %v818
        %v827 = vunpack.c.l.b16 %v819
        %v828 = vunpack.c.l.b16 %v820
        %v829 = vunpack.c.l.b16 %v821
        %v830 = vpack.c.b16 %v827, %v826
        %v831 = vpack.c.b16 %v829, %v828
        %vm834 = vcmask 261120
        %v836 = vsel %vm834, %v817, 0
        %838 = vmatpush.bf16.msra.mxu0 0
        %839 = vmatpush.bf16.msra.mxu0 0
        %840 = vmatpush.bf16.msra.mxu0 0
        %841 = vmatpush.bf16.msra.mxu0 0
        %842 = vmatpush.bf16.msra.mxu0 0
        %843 = vmatpush.bf16.msra.mxu0 0
        %844 = vmatpush.bf16.msra.mxu0 %v831
        %845 = vmatpush.bf16.msra.mxu0 %v830
        %846 = vmatmul.bf16.gmra.mxu0 %v836
        %v847 = vpop.f32.mrf.mxu0
        %v848 = vadd.f32 0.0, %v847
        %v849 = vpop.f32.mrf.mxu0
        %850 = vdwg.mxu0
        %v851 = vadd.f32 %v407, %v848
        %v852 = vmul.f32 %v851, %v851
        %v853 = vsel %vm834, %v852, 0.0
        %854 = vadd.xlane.f32.xlu0 %v853
        %v855 = vpop.xlane.xlu0 %854
        %v856 = vrcp.pop 32.0
        %v857 = vmul.f32 32.0, %v856
        %v858 = vsub.f32 1.0, %v857
        %v859 = vmul.f32 %v856, %v858
        %v860 = vadd.f32 %v856, %v859
        %vm861 = vweird.f32 %v856
        %v862 = vsel %vm861, %v856, %v860
        %v863 = vmul.f32 %v855, %v862
        %v864 = vadd.f32 %v863, 1.1920929e-07
        %v865 = vrsqrt.pop %v864
        %v866 = vmul.f32 %v865, %v864
        %v867 = vmul.f32 %v866, %v865
        %v868 = vmul.f32 0.5, %v867
        %v869 = vsub.f32 1.5, %v868
        %v870 = vmul.f32 %v865, %v869
        %vm871 = vweird.f32 %v864
        %vm872 = vweird.f32 %v865
        %vm873 = vmor %vm871, %vm872
        %v874 = vsel %vm873, %v865, %v870
        %v875 = vmul.f32 %v851, %v874
        %v876 = vmul.f32 %v875, 0.70710677
        %v877 = vpack.c.bf16 %v876, %v876
        %v878 = vld [vmem:[%s3] sm:$0xf]
        %v879 = vld [vmem:[%s3 + $0x4] sm:$0xf]
        %v880 = vld [vmem:[%s3 + $0x8] sm:$0xf]
        %v881 = vld [vmem:[%s3 + $0xc] sm:$0xf]
        %v886 = vunpack.c.l.b16 %v878
        %v887 = vunpack.c.l.b16 %v879
        %v888 = vunpack.c.l.b16 %v880
        %v889 = vunpack.c.l.b16 %v881
        %v890 = vpack.c.b16 %v887, %v886
        %v891 = vpack.c.b16 %v889, %v888
        %v895 = vsel %vm834, %v877, 0
        %897 = vmatpush.bf16.msra.mxu0 0
        %898 = vmatpush.bf16.msra.mxu0 0
        %899 = vmatpush.bf16.msra.mxu0 0
        %900 = vmatpush.bf16.msra.mxu0 0
        %901 = vmatpush.bf16.msra.mxu0 0
        %902 = vmatpush.bf16.msra.mxu0 0
        %903 = vmatpush.bf16.msra.mxu0 %v891
        %904 = vmatpush.bf16.msra.mxu0 %v890
        %905 = vmatmul.bf16.gmra.mxu0 %v895
        %v906 = vpop.f32.mrf.mxu0
        %v907 = vadd.f32 0.0, %v906
        %v908 = vpop.f32.mrf.mxu0
        %909 = vdwg.mxu0
        %v910 = vmax.f32 %v907, 0.0
        %v911 = vmul.f32 %v910, %v910
        %v912 = vpack.c.bf16 %v911, %v911
        %v913 = vld [vmem:[%s4] sm:$0xf]
        %v914 = vld [vmem:[%s4 + $0x4] sm:$0xf]
        %v915 = vld [vmem:[%s4 + $0x8] sm:$0xf]
        %v916 = vld [vmem:[%s4 + $0xc] sm:$0xf]
        %v917 = vld [vmem:[%s4 + $0x10] sm:$0xf]
        %v918 = vld [vmem:[%s4 + $0x14] sm:$0xf]
        %v919 = vld [vmem:[%s4 + $0x18] sm:$0xf]
        %v920 = vld [vmem:[%s4 + $0x1c] sm:$0xf]
        %v921 = vld [vmem:[%s4 + $0x20] sm:$0xf]
        %v922 = vld [vmem:[%s4 + $0x24] sm:$0xf]
        %v923 = vld [vmem:[%s4 + $0x28] sm:$0xf]
        %v924 = vld [vmem:[%s4 + $0x2c] sm:$0xf]
        %v925 = vld [vmem:[%s4 + $0x30] sm:$0xf]
        %v926 = vld [vmem:[%s4 + $0x34] sm:$0xf]
        %v927 = vld [vmem:[%s4 + $0x38] sm:$0xf]
        %v928 = vld [vmem:[%s4 + $0x3c] sm:$0xf]
        %v945 = vunpack.c.l.b16 %v913
        %v946 = vunpack.c.l.b16 %v914
        %v947 = vunpack.c.l.b16 %v915
        %v948 = vunpack.c.l.b16 %v916
        %v949 = vunpack.c.l.b16 %v917
        %v950 = vunpack.c.l.b16 %v918
        %v951 = vunpack.c.l.b16 %v919
        %v952 = vunpack.c.l.b16 %v920
        %v953 = vunpack.c.l.b16 %v921
        %v954 = vunpack.c.l.b16 %v922
        %v955 = vunpack.c.l.b16 %v923
        %v956 = vunpack.c.l.b16 %v924
        %v957 = vunpack.c.l.b16 %v925
        %v958 = vunpack.c.l.b16 %v926
        %v959 = vunpack.c.l.b16 %v927
        %v960 = vunpack.c.l.b16 %v928
        %v961 = vpack.c.b16 %v946, %v945
        %v962 = vpack.c.b16 %v948, %v947
        %v963 = vpack.c.b16 %v950, %v949
        %v964 = vpack.c.b16 %v952, %v951
        %v965 = vpack.c.b16 %v954, %v953
        %v966 = vpack.c.b16 %v956, %v955
        %v967 = vpack.c.b16 %v958, %v957
        %v968 = vpack.c.b16 %v960, %v959
        %977 = vmatpush.bf16.msra.mxu0 %v968
        %978 = vmatpush.bf16.msra.mxu0 %v967
        %979 = vmatpush.bf16.msra.mxu0 %v966
        %980 = vmatpush.bf16.msra.mxu0 %v965
        %981 = vmatpush.bf16.msra.mxu0 %v964
        %982 = vmatpush.bf16.msra.mxu0 %v963
        %983 = vmatpush.bf16.msra.mxu0 %v962
        %984 = vmatpush.bf16.msra.mxu0 %v961
        %985 = vmatmul.bf16.gmra.mxu0 %v912
        %v986 = vpop.f32.mrf.mxu0
        %v987 = vadd.f32 0.0, %v986
        %v988 = vpop.f32.mrf.mxu0
        %989 = vdwg.mxu0
        %v990 = vadd.f32 %v851, %v987
        %991 = vst.msk [vmem:[%s231] sm:$0xff] %vm834, %v990
        %s992 = sand.u32 %s151, 1
        %s993 = scalar_lea.sflag [#allocation7], %s992
        %s994 = sand.u32 %s151, 1
        %s995 = smul.addr %s994, 8
        %s996 = scalar_lea.vmem [#allocation6], %s995
        // Predicated region
        $region73: #{tpu_custom_call.1} parent=39 // pred_check
          %p997 = pneg %p161
        $region74: #{tpu_custom_call.1} parent=39 // pred_check_branch
          %999 = sbr.rel (%p997) target = $region76
        $region75: #{tpu_custom_call.1} parent=39 // pred_region
          %1001 = vsyncadd %s993, 0
          %s1002 = smul.addr %s23, 2
          %s1003 = sadd.s32 %s24, %s1002
          %s1004 = smul.addr %s1003, 8
          %s1005 = scalar_lea.hbm %s5, %s1004
          %s1007 = sshll.u32 %s996, 4
          %s1008 = int_to_ptr.vmem [resolvable:$true] %s1007
          %s1009 = sshll.u32 %s1005, 4
          %s1010 = int_to_ptr.hbm [resolvable:$true] %s1009
          %1012 = dma.vmem_to_hbm [thread:$0]  %s1008, 128, %s1010, %s993
        $region76: #{tpu_custom_call.1} parent=39 // pred_fallthru
          _
      $region40: #{tpu_custom_call.1} parent=5 // pred_fallthru
        _
      %p1013 = scmp.le.s32.totalorder 2, %s14
      // Predicated region
      $region77: #{tpu_custom_call.1} parent=5 // pred_check
        %p1014 = pneg %p1013
      $region78: #{tpu_custom_call.1} parent=5 // pred_check_branch
        %1016 = sbr.rel (%p1014) target = $region80
      $region79: #{tpu_custom_call.1} parent=5 // pred_region
        %s1017 = ssub.s32 %s14, 2
        // Predicated region
        $region81: #{tpu_custom_call.1} parent=79 // pred_check
          %p1018 = pneg %p167
        $region82: #{tpu_custom_call.1} parent=79 // pred_check_branch
          %1020 = sbr.rel (%p1018) target = $region84
        $region83: #{tpu_custom_call.1} parent=79 // pred_region
          %s1021 = sand.u32 %s152, 1
          %s1022 = scalar_lea.sflag [#allocation7], %s1021
          %s1023 = sand.u32 %s152, 1
          %s1024 = smul.addr %s1023, 8
          %s1025 = scalar_lea.vmem [#allocation6], %s1024
          %1027 = dma.done %s1022, 128
        $region84: #{tpu_custom_call.1} parent=79 // pred_fallthru
          _
      $region80: #{tpu_custom_call.1} parent=5 // pred_fallthru
        _
    $region6: #{tpu_custom_call.1} parent=1 // loop_footer
      %s18 = sadd.s32 1, %s14
    $region7: #{tpu_custom_call.1} parent=1 // loop_footer_branch
      %13 = sbr.rel target = $region3
    $region8: #{tpu_custom_call.1} parent=1 // loop_exit
      _
    %1028 = vsyncpa [#allocation7], 1
    %s1029 = scalar_lea.sflag [#allocation7], 1
    %1030 = vsyncpa %s1029, 1

</llo_original>
